<compile_context>
chip_gen: v7x
topology: tpu7x:2x2x1
jax: 0.10.0
libtpu: 0.0.40
codegen_flags: <defaults>
</compile_context>

<pallas_src>
import math

import jax
import jax.numpy as jnp
from jax.experimental import pallas as pl
from jax.experimental.pallas import tpu as pltpu


# ----------------------------- hyper-parameters ------------------------------
INPUT_DIM = 4 * 3            # 12   (x is (B, W, 4, 3), flattened)
D_MODEL = 32                 # transformer_dim
NHEAD = 4
HEAD_DIM = D_MODEL // NHEAD  # 8
DIM_FF = 64                  # dim_feedforward
NUM_LAYERS = 2               # num_encoder_layers
WINDOW = 8                   # window_size W (small test shape)
HEAD_HIDDEN = D_MODEL // 4   # 8
OUT_DIM = 8 * 3              # 24 regression outputs per frame
LN_EPS = 1e-5


# ----------------------------- in-kernel helpers -----------------------------
def _gelu(x):
    # tanh-approximate GELU (exact erf-GELU has no clean Mosaic lowering).
    c = math.sqrt(2.0 / math.pi)
    return 0.5 * x * (1.0 + jnp.tanh(c * (x + 0.044715 * x * x * x)))


def _layernorm(x, gamma, beta):
    mu = jnp.mean(x, axis=-1, keepdims=True)
    xc = x - mu
    var = jnp.mean(xc * xc, axis=-1, keepdims=True)
    return xc * jax.lax.rsqrt(var + LN_EPS) * gamma + beta


# --------------------------------- kernel ------------------------------------
def conv_transformer_kernel(
    x_ref,                                           # (1, W, INPUT_DIM)
    cw1_ref, cb1_ref, cwr_ref, cbr_ref,              # input_proj (1x1 convs)
    qkv_w_ref, qkv_b_ref, out_w_ref, out_b_ref,      # attention (stacked over L)
    n1_w_ref, n1_b_ref,                              # norm1 (stacked over L)
    ff1_w_ref, ff1_b_ref, ff2_w_ref, ff2_b_ref,      # FFN (stacked over L)
    n2_w_ref, n2_b_ref,                              # norm2 (stacked over L)
    fn_w_ref, fn_b_ref,                              # final encoder LayerNorm
    hln_w_ref, hln_b_ref, hw1_ref, hb1_ref, hw2_ref, hb2_ref,  # regression head
    o_ref,                                           # (1, W, OUT_DIM)
):
    """Full ConvTransformer forward for one batch element (grid axis = B)."""
    f32 = jnp.float32
    x = x_ref[0].astype(f32)                                       # (W, 12)

    # --- input_proj: 4 x (1x1 Conv1d == per-frame Linear) + GELU, fused.
    h = _gelu(jnp.dot(x, cw1_ref[...], preferred_element_type=f32) + cb1_ref[...])
    for i in range(3):                                             # static unroll
        h = _gelu(jnp.dot(h, cwr_ref[i], preferred_element_type=f32) + cbr_ref[i])

    # (encode_position=False by default -> no position_embed add.)

    # --- Transformer encoder layers (PyTorch post-norm; dropout == identity).
    scale = 1.0 / math.sqrt(HEAD_DIM)
    for l in range(NUM_LAYERS):                                    # static unroll
        # Self-attention: combined in-projection, per-head softmax attention.
        qkv = jnp.dot(h, qkv_w_ref[l], preferred_element_type=f32) + qkv_b_ref[l]
        q = qkv[:, 0 * D_MODEL:1 * D_MODEL]
        k = qkv[:, 1 * D_MODEL:2 * D_MODEL]
        v = qkv[:, 2 * D_MODEL:3 * D_MODEL]

        heads = []
        for hh in range(NHEAD):                                    # static unroll
            lo, hi = hh * HEAD_DIM, (hh + 1) * HEAD_DIM
            q_h, k_h, v_h = q[:, lo:hi], k[:, lo:hi], v[:, lo:hi]
            s = jax.lax.dot_general(
                q_h, k_h, (((1,), (1,)), ((), ())),
                preferred_element_type=f32) * scale                # (W, W)
            s = s - jnp.max(s, axis=-1, keepdims=True)
            p = jnp.exp(s)
            p = p * pl.reciprocal(jnp.sum(p, axis=-1, keepdims=True), approx=True)
            heads.append(jnp.dot(p, v_h, preferred_element_type=f32))  # (W, hd)
        attn = jnp.concatenate(heads, axis=-1)                     # (W, D)
        attn = jnp.dot(attn, out_w_ref[l], preferred_element_type=f32) + out_b_ref[l]
        h = _layernorm(h + attn, n1_w_ref[l], n1_b_ref[l])

        # Feed-forward (activation = "gelu").
        ff = _gelu(jnp.dot(h, ff1_w_ref[l], preferred_element_type=f32) + ff1_b_ref[l])
        ff = jnp.dot(ff, ff2_w_ref[l], preferred_element_type=f32) + ff2_b_ref[l]
        h = _layernorm(h + ff, n2_w_ref[l], n2_b_ref[l])

    # --- final encoder LayerNorm.
    h = _layernorm(h, fn_w_ref[...], fn_b_ref[...])

    # --- regression head: LayerNorm -> Linear -> GELU -> (Dropout) -> Linear.
    h = _layernorm(h, hln_w_ref[...], hln_b_ref[...])
    h = _gelu(jnp.dot(h, hw1_ref[...], preferred_element_type=f32) + hb1_ref[...])
    out = jnp.dot(h, hw2_ref[...], preferred_element_type=f32) + hb2_ref[...]

    o_ref[0] = out.astype(o_ref.dtype)                             # (W, 24)


# --------------------------------- wrapper ------------------------------------
_PARAM_ORDER = [
    "cw1", "cb1", "cwr", "cbr",
    "qkv_w", "qkv_b", "out_w", "out_b",
    "n1_w", "n1_b",
    "ff1_w", "ff1_b", "ff2_w", "ff2_b",
    "n2_w", "n2_b",
    "fn_w", "fn_b",
    "hln_w", "hln_b", "hw1", "hb1", "hw2", "hb2",
]


def conv_transformer_forward(x, params):
    """x: (B, W, 4, 3) float32  ->  (B, W * 24) float32."""
    B, W = x.shape[0], x.shape[1]
    x = x.reshape(B, W, -1).astype(jnp.float32)                    # (B, W, 12)
    assert x.shape[-1] == INPUT_DIM and W == WINDOW

    weights = [params[name] for name in _PARAM_ORDER]

    in_specs = [pl.BlockSpec((1, W, INPUT_DIM), lambda b: (b, 0, 0))]
    for w in weights:
        # Full-array block, same block for every grid step (weights stay resident).
        in_specs.append(pl.BlockSpec(w.shape, lambda b, _nd=w.ndim: (0,) * _nd))

    out = pl.pallas_call(
        conv_transformer_kernel,
        out_shape=jax.ShapeDtypeStruct((B, W, OUT_DIM), jnp.float32),
        grid_spec=pltpu.PrefetchScalarGridSpec(
            num_scalar_prefetch=0,
            grid=(B,),                                  # batch-parallel grid
            in_specs=in_specs,
            out_specs=pl.BlockSpec((1, W, OUT_DIM), lambda b: (b, 0, 0)),
        ),
        compiler_params=pltpu.CompilerParams(
            dimension_semantics=("parallel",),          # megacore split over B
        ),
    )(x, *weights)

    return out.reshape(B, W * OUT_DIM)


# ------------------------------ parameter init --------------------------------
def _xavier_uniform(key, shape):
    fan_in, fan_out = shape[-2], shape[-1]
    limit = math.sqrt(6.0 / (fan_in + fan_out))
    return jax.random.uniform(key, shape, jnp.float32, -limit, limit)


def init_params(key):
    D, F, L = D_MODEL, DIM_FF, NUM_LAYERS
    ks = iter(jax.random.split(key, 16))
    p = {}
    # input_proj: first conv (12 -> D) + three (D -> D) convs, weights pre-transposed.
    p["cw1"] = _xavier_uniform(next(ks), (INPUT_DIM, D))
    p["cb1"] = jnp.zeros((1, D), jnp.float32)
    p["cwr"] = _xavier_uniform(next(ks), (3, D, D))
    p["cbr"] = jnp.zeros((3, 1, D), jnp.float32)
    # encoder layers, stacked along a leading L axis.
    p["qkv_w"] = _xavier_uniform(next(ks), (L, D, 3 * D))
    p["qkv_b"] = jnp.zeros((L, 1, 3 * D), jnp.float32)
    p["out_w"] = _xavier_uniform(next(ks), (L, D, D))
    p["out_b"] = jnp.zeros((L, 1, D), jnp.float32)
    p["n1_w"] = jnp.ones((L, 1, D), jnp.float32)
    p["n1_b"] = jnp.zeros((L, 1, D), jnp.float32)
    p["ff1_w"] = _xavier_uniform(next(ks), (L, D, F))
    p["ff1_b"] = jnp.zeros((L, 1, F), jnp.float32)
    p["ff2_w"] = _xavier_uniform(next(ks), (L, F, D))
    p["ff2_b"] = jnp.zeros((L, 1, D), jnp.float32)
    p["n2_w"] = jnp.ones((L, 1, D), jnp.float32)
    p["n2_b"] = jnp.zeros((L, 1, D), jnp.float32)
    # final encoder norm.
    p["fn_w"] = jnp.ones((1, D), jnp.float32)
    p["fn_b"] = jnp.zeros((1, D), jnp.float32)
    # regression head.
    p["hln_w"] = jnp.ones((1, D), jnp.float32)
    p["hln_b"] = jnp.zeros((1, D), jnp.float32)
    p["hw1"] = _xavier_uniform(next(ks), (D, HEAD_HIDDEN))
    p["hb1"] = jnp.zeros((1, HEAD_HIDDEN), jnp.float32)
    p["hw2"] = _xavier_uniform(next(ks), (HEAD_HIDDEN, OUT_DIM))
    p["hb2"] = jnp.zeros((1, OUT_DIM), jnp.float32)
    return p


# ----------------------------------- main --------------------------------------
if __name__ == "__main__":
    B, W = 2, WINDOW

    key = jax.random.PRNGKey(0)
    key, xk = jax.random.split(key)
    x = jax.random.normal(xk, (B, W, 4, 3), dtype=jnp.float32)

    params = init_params(key)

    out = conv_transformer_forward(x, params)
    out = jax.block_until_ready(out)

    assert out.shape == (B, W * OUT_DIM), out.shape
    assert out.dtype == jnp.float32
    assert bool(jnp.all(jnp.isfinite(out)))
    print("KERNEL_OK")
</pallas_src>

<mosaic_0001>
module attributes {stable_mosaic.version = 11 : i64} {
  func.func @conv_transformer_kernel(%arg0: i32, %arg1: memref<1x8x12xf32, #tpu.memory_space<vmem>>, %arg2: memref<12x32xf32, #tpu.memory_space<vmem>>, %arg3: memref<1x32xf32, #tpu.memory_space<vmem>>, %arg4: memref<3x32x32xf32, #tpu.memory_space<vmem>>, %arg5: memref<3x1x32xf32, #tpu.memory_space<vmem>>, %arg6: memref<2x32x96xf32, #tpu.memory_space<vmem>>, %arg7: memref<2x1x96xf32, #tpu.memory_space<vmem>>, %arg8: memref<2x32x32xf32, #tpu.memory_space<vmem>>, %arg9: memref<2x1x32xf32, #tpu.memory_space<vmem>>, %arg10: memref<2x1x32xf32, #tpu.memory_space<vmem>>, %arg11: memref<2x1x32xf32, #tpu.memory_space<vmem>>, %arg12: memref<2x32x64xf32, #tpu.memory_space<vmem>>, %arg13: memref<2x1x64xf32, #tpu.memory_space<vmem>>, %arg14: memref<2x64x32xf32, #tpu.memory_space<vmem>>, %arg15: memref<2x1x32xf32, #tpu.memory_space<vmem>>, %arg16: memref<2x1x32xf32, #tpu.memory_space<vmem>>, %arg17: memref<2x1x32xf32, #tpu.memory_space<vmem>>, %arg18: memref<1x32xf32, #tpu.memory_space<vmem>>, %arg19: memref<1x32xf32, #tpu.memory_space<vmem>>, %arg20: memref<1x32xf32, #tpu.memory_space<vmem>>, %arg21: memref<1x32xf32, #tpu.memory_space<vmem>>, %arg22: memref<32x8xf32, #tpu.memory_space<vmem>>, %arg23: memref<1x8xf32, #tpu.memory_space<vmem>>, %arg24: memref<8x24xf32, #tpu.memory_space<vmem>>, %arg25: memref<1x24xf32, #tpu.memory_space<vmem>>, %arg26: memref<1x8x24xf32, #tpu.memory_space<vmem>>) attributes {dimension_semantics = [#tpu.dimension_semantics<parallel>], iteration_bounds = array<i64: 2>, scalar_prefetch = 0 : i64, scratch_operands = 0 : i64, tpu.core_type = #tpu.core_type<tc>, window_params = [{transform_indices = @transform_0, window_bounds = array<i64: 1, 8, 12>}, {pipeline_mode = #tpu.pipeline_mode<synchronous>, transform_indices = @transform_1, window_bounds = array<i64: 12, 32>}, {pipeline_mode = #tpu.pipeline_mode<synchronous>, transform_indices = @transform_2, window_bounds = array<i64: 1, 32>}, {pipeline_mode = #tpu.pipeline_mode<synchronous>, transform_indices = @transform_3, window_bounds = array<i64: 3, 32, 32>}, {pipeline_mode = #tpu.pipeline_mode<synchronous>, transform_indices = @transform_4, window_bounds = array<i64: 3, 1, 32>}, {pipeline_mode = #tpu.pipeline_mode<synchronous>, transform_indices = @transform_5, window_bounds = array<i64: 2, 32, 96>}, {pipeline_mode = #tpu.pipeline_mode<synchronous>, transform_indices = @transform_6, window_bounds = array<i64: 2, 1, 96>}, {pipeline_mode = #tpu.pipeline_mode<synchronous>, transform_indices = @transform_7, window_bounds = array<i64: 2, 32, 32>}, {pipeline_mode = #tpu.pipeline_mode<synchronous>, transform_indices = @transform_8, window_bounds = array<i64: 2, 1, 32>}, {pipeline_mode = #tpu.pipeline_mode<synchronous>, transform_indices = @transform_9, window_bounds = array<i64: 2, 1, 32>}, {pipeline_mode = #tpu.pipeline_mode<synchronous>, transform_indices = @transform_10, window_bounds = array<i64: 2, 1, 32>}, {pipeline_mode = #tpu.pipeline_mode<synchronous>, transform_indices = @transform_11, window_bounds = array<i64: 2, 32, 64>}, {pipeline_mode = #tpu.pipeline_mode<synchronous>, transform_indices = @transform_12, window_bounds = array<i64: 2, 1, 64>}, {pipeline_mode = #tpu.pipeline_mode<synchronous>, transform_indices = @transform_13, window_bounds = array<i64: 2, 64, 32>}, {pipeline_mode = #tpu.pipeline_mode<synchronous>, transform_indices = @transform_14, window_bounds = array<i64: 2, 1, 32>}, {pipeline_mode = #tpu.pipeline_mode<synchronous>, transform_indices = @transform_15, window_bounds = array<i64: 2, 1, 32>}, {pipeline_mode = #tpu.pipeline_mode<synchronous>, transform_indices = @transform_16, window_bounds = array<i64: 2, 1, 32>}, {pipeline_mode = #tpu.pipeline_mode<synchronous>, transform_indices = @transform_17, window_bounds = array<i64: 1, 32>}, {pipeline_mode = #tpu.pipeline_mode<synchronous>, transform_indices = @transform_18, window_bounds = array<i64: 1, 32>}, {pipeline_mode = #tpu.pipeline_mode<synchronous>, transform_indices = @transform_19, window_bounds = array<i64: 1, 32>}, {pipeline_mode = #tpu.pipeline_mode<synchronous>, transform_indices = @transform_20, window_bounds = array<i64: 1, 32>}, {pipeline_mode = #tpu.pipeline_mode<synchronous>, transform_indices = @transform_21, window_bounds = array<i64: 32, 8>}, {pipeline_mode = #tpu.pipeline_mode<synchronous>, transform_indices = @transform_22, window_bounds = array<i64: 1, 8>}, {pipeline_mode = #tpu.pipeline_mode<synchronous>, transform_indices = @transform_23, window_bounds = array<i64: 8, 24>}, {pipeline_mode = #tpu.pipeline_mode<synchronous>, transform_indices = @transform_24, window_bounds = array<i64: 1, 24>}, {transform_indices = @transform_25, window_bounds = array<i64: 1, 8, 24>}]} {
    %c0 = arith.constant 0 : index
    %c0_0 = arith.constant 0 : index
    %c0_1 = arith.constant 0 : index
    %0 = vector.load %arg1[%c0, %c0_0, %c0_1] : memref<1x8x12xf32, #tpu.memory_space<vmem>>, vector<1x8x12xf32>
    %1 = vector.shape_cast %0 : vector<1x8x12xf32> to vector<8x12xf32>
    %c0_2 = arith.constant 0 : index
    %c0_3 = arith.constant 0 : index
    %2 = vector.load %arg2[%c0_2, %c0_3] : memref<12x32xf32, #tpu.memory_space<vmem>>, vector<12x32xf32>
    %cst = arith.constant dense<0.000000e+00> : vector<8x32xf32>
    %3 = tpu.matmul %1, %2, %cst {dimension_numbers = #tpu.dot_dimension_numbers<[1], [0], [0], [1], [0, 0, 1, 1], [], []>} : vector<8x12xf32>, vector<12x32xf32>, vector<8x32xf32> -> vector<8x32xf32>
    %c0_4 = arith.constant 0 : index
    %c0_5 = arith.constant 0 : index
    %4 = vector.load %arg3[%c0_4, %c0_5] : memref<1x32xf32, #tpu.memory_space<vmem>>, vector<1x32xf32>
    %5 = vector.broadcast %4 : vector<1x32xf32> to vector<8x32xf32>
    %6 = arith.addf %3, %5 : vector<8x32xf32>
    %cst_6 = arith.constant 5.000000e-01 : f32
    %7 = vector.broadcast %cst_6 : f32 to vector<8x32xf32>
    %8 = arith.mulf %7, %6 : vector<8x32xf32>
    %cst_7 = arith.constant 4.471500e-02 : f32
    %9 = vector.broadcast %cst_7 : f32 to vector<8x32xf32>
    %10 = arith.mulf %9, %6 : vector<8x32xf32>
    %11 = arith.mulf %10, %6 : vector<8x32xf32>
    %12 = arith.mulf %11, %6 : vector<8x32xf32>
    %13 = arith.addf %6, %12 : vector<8x32xf32>
    %cst_8 = arith.constant 0.797884583 : f32
    %14 = vector.broadcast %cst_8 : f32 to vector<8x32xf32>
    %15 = arith.mulf %14, %13 : vector<8x32xf32>
    %16 = math.tanh %15 : vector<8x32xf32>
    %cst_9 = arith.constant 1.000000e+00 : f32
    %17 = vector.broadcast %cst_9 : f32 to vector<8x32xf32>
    %18 = arith.addf %17, %16 : vector<8x32xf32>
    %19 = arith.mulf %8, %18 : vector<8x32xf32>
    %c0_10 = arith.constant 0 : index
    %c0_11 = arith.constant 0 : index
    %c0_12 = arith.constant 0 : index
    %20 = vector.load %arg4[%c0_10, %c0_11, %c0_12] : memref<3x32x32xf32, #tpu.memory_space<vmem>>, vector<1x32x32xf32>
    %21 = vector.shape_cast %20 : vector<1x32x32xf32> to vector<32x32xf32>
    %cst_13 = arith.constant dense<0.000000e+00> : vector<8x32xf32>
    %22 = tpu.matmul %19, %21, %cst_13 {dimension_numbers = #tpu.dot_dimension_numbers<[1], [0], [0], [1], [0, 0, 1, 1], [], []>} : vector<8x32xf32>, vector<32x32xf32>, vector<8x32xf32> -> vector<8x32xf32>
    %c0_14 = arith.constant 0 : index
    %c0_15 = arith.constant 0 : index
    %c0_16 = arith.constant 0 : index
    %23 = vector.load %arg5[%c0_14, %c0_15, %c0_16] : memref<3x1x32xf32, #tpu.memory_space<vmem>>, vector<1x1x32xf32>
    %24 = vector.shape_cast %23 : vector<1x1x32xf32> to vector<1x32xf32>
    %25 = vector.broadcast %24 : vector<1x32xf32> to vector<8x32xf32>
    %26 = arith.addf %22, %25 : vector<8x32xf32>
    %cst_17 = arith.constant 5.000000e-01 : f32
    %27 = vector.broadcast %cst_17 : f32 to vector<8x32xf32>
    %28 = arith.mulf %27, %26 : vector<8x32xf32>
    %cst_18 = arith.constant 4.471500e-02 : f32
    %29 = vector.broadcast %cst_18 : f32 to vector<8x32xf32>
    %30 = arith.mulf %29, %26 : vector<8x32xf32>
    %31 = arith.mulf %30, %26 : vector<8x32xf32>
    %32 = arith.mulf %31, %26 : vector<8x32xf32>
    %33 = arith.addf %26, %32 : vector<8x32xf32>
    %cst_19 = arith.constant 0.797884583 : f32
    %34 = vector.broadcast %cst_19 : f32 to vector<8x32xf32>
    %35 = arith.mulf %34, %33 : vector<8x32xf32>
    %36 = math.tanh %35 : vector<8x32xf32>
    %cst_20 = arith.constant 1.000000e+00 : f32
    %37 = vector.broadcast %cst_20 : f32 to vector<8x32xf32>
    %38 = arith.addf %37, %36 : vector<8x32xf32>
    %39 = arith.mulf %28, %38 : vector<8x32xf32>
    %c1 = arith.constant 1 : index
    %c0_21 = arith.constant 0 : index
    %c0_22 = arith.constant 0 : index
    %40 = vector.load %arg4[%c1, %c0_21, %c0_22] : memref<3x32x32xf32, #tpu.memory_space<vmem>>, vector<1x32x32xf32>
    %41 = vector.shape_cast %40 : vector<1x32x32xf32> to vector<32x32xf32>
    %cst_23 = arith.constant dense<0.000000e+00> : vector<8x32xf32>
    %42 = tpu.matmul %39, %41, %cst_23 {dimension_numbers = #tpu.dot_dimension_numbers<[1], [0], [0], [1], [0, 0, 1, 1], [], []>} : vector<8x32xf32>, vector<32x32xf32>, vector<8x32xf32> -> vector<8x32xf32>
    %c1_24 = arith.constant 1 : index
    %c0_25 = arith.constant 0 : index
    %c0_26 = arith.constant 0 : index
    %43 = vector.load %arg5[%c1_24, %c0_25, %c0_26] : memref<3x1x32xf32, #tpu.memory_space<vmem>>, vector<1x1x32xf32>
    %44 = vector.shape_cast %43 : vector<1x1x32xf32> to vector<1x32xf32>
    %45 = vector.broadcast %44 : vector<1x32xf32> to vector<8x32xf32>
    %46 = arith.addf %42, %45 : vector<8x32xf32>
    %cst_27 = arith.constant 5.000000e-01 : f32
    %47 = vector.broadcast %cst_27 : f32 to vector<8x32xf32>
    %48 = arith.mulf %47, %46 : vector<8x32xf32>
    %cst_28 = arith.constant 4.471500e-02 : f32
    %49 = vector.broadcast %cst_28 : f32 to vector<8x32xf32>
    %50 = arith.mulf %49, %46 : vector<8x32xf32>
    %51 = arith.mulf %50, %46 : vector<8x32xf32>
    %52 = arith.mulf %51, %46 : vector<8x32xf32>
    %53 = arith.addf %46, %52 : vector<8x32xf32>
    %cst_29 = arith.constant 0.797884583 : f32
    %54 = vector.broadcast %cst_29 : f32 to vector<8x32xf32>
    %55 = arith.mulf %54, %53 : vector<8x32xf32>
    %56 = math.tanh %55 : vector<8x32xf32>
    %cst_30 = arith.constant 1.000000e+00 : f32
    %57 = vector.broadcast %cst_30 : f32 to vector<8x32xf32>
    %58 = arith.addf %57, %56 : vector<8x32xf32>
    %59 = arith.mulf %48, %58 : vector<8x32xf32>
    %c2 = arith.constant 2 : index
    %c0_31 = arith.constant 0 : index
    %c0_32 = arith.constant 0 : index
    %60 = vector.load %arg4[%c2, %c0_31, %c0_32] : memref<3x32x32xf32, #tpu.memory_space<vmem>>, vector<1x32x32xf32>
    %61 = vector.shape_cast %60 : vector<1x32x32xf32> to vector<32x32xf32>
    %cst_33 = arith.constant dense<0.000000e+00> : vector<8x32xf32>
    %62 = tpu.matmul %59, %61, %cst_33 {dimension_numbers = #tpu.dot_dimension_numbers<[1], [0], [0], [1], [0, 0, 1, 1], [], []>} : vector<8x32xf32>, vector<32x32xf32>, vector<8x32xf32> -> vector<8x32xf32>
    %c2_34 = arith.constant 2 : index
    %c0_35 = arith.constant 0 : index
    %c0_36 = arith.constant 0 : index
    %63 = vector.load %arg5[%c2_34, %c0_35, %c0_36] : memref<3x1x32xf32, #tpu.memory_space<vmem>>, vector<1x1x32xf32>
    %64 = vector.shape_cast %63 : vector<1x1x32xf32> to vector<1x32xf32>
    %65 = vector.broadcast %64 : vector<1x32xf32> to vector<8x32xf32>
    %66 = arith.addf %62, %65 : vector<8x32xf32>
    %cst_37 = arith.constant 5.000000e-01 : f32
    %67 = vector.broadcast %cst_37 : f32 to vector<8x32xf32>
    %68 = arith.mulf %67, %66 : vector<8x32xf32>
    %cst_38 = arith.constant 4.471500e-02 : f32
    %69 = vector.broadcast %cst_38 : f32 to vector<8x32xf32>
    %70 = arith.mulf %69, %66 : vector<8x32xf32>
    %71 = arith.mulf %70, %66 : vector<8x32xf32>
    %72 = arith.mulf %71, %66 : vector<8x32xf32>
    %73 = arith.addf %66, %72 : vector<8x32xf32>
    %cst_39 = arith.constant 0.797884583 : f32
    %74 = vector.broadcast %cst_39 : f32 to vector<8x32xf32>
    %75 = arith.mulf %74, %73 : vector<8x32xf32>
    %76 = math.tanh %75 : vector<8x32xf32>
    %cst_40 = arith.constant 1.000000e+00 : f32
    %77 = vector.broadcast %cst_40 : f32 to vector<8x32xf32>
    %78 = arith.addf %77, %76 : vector<8x32xf32>
    %79 = arith.mulf %68, %78 : vector<8x32xf32>
    %c0_41 = arith.constant 0 : index
    %c0_42 = arith.constant 0 : index
    %c0_43 = arith.constant 0 : index
    %80 = vector.load %arg6[%c0_41, %c0_42, %c0_43] : memref<2x32x96xf32, #tpu.memory_space<vmem>>, vector<1x32x96xf32>
    %81 = vector.shape_cast %80 : vector<1x32x96xf32> to vector<32x96xf32>
    %cst_44 = arith.constant dense<0.000000e+00> : vector<8x96xf32>
    %82 = tpu.matmul %79, %81, %cst_44 {dimension_numbers = #tpu.dot_dimension_numbers<[1], [0], [0], [1], [0, 0, 1, 1], [], []>} : vector<8x32xf32>, vector<32x96xf32>, vector<8x96xf32> -> vector<8x96xf32>
    %c0_45 = arith.constant 0 : index
    %c0_46 = arith.constant 0 : index
    %c0_47 = arith.constant 0 : index
    %83 = vector.load %arg7[%c0_45, %c0_46, %c0_47] : memref<2x1x96xf32, #tpu.memory_space<vmem>>, vector<1x1x96xf32>
    %84 = vector.shape_cast %83 : vector<1x1x96xf32> to vector<1x96xf32>
    %85 = vector.broadcast %84 : vector<1x96xf32> to vector<8x96xf32>
    %86 = arith.addf %82, %85 : vector<8x96xf32>
    %87 = vector.extract_strided_slice %86 {offsets = [0, 0], sizes = [8, 32], strides = [1, 1]} : vector<8x96xf32> to vector<8x32xf32>
    %88 = vector.extract_strided_slice %86 {offsets = [0, 32], sizes = [8, 32], strides = [1, 1]} : vector<8x96xf32> to vector<8x32xf32>
    %89 = vector.extract_strided_slice %86 {offsets = [0, 64], sizes = [8, 32], strides = [1, 1]} : vector<8x96xf32> to vector<8x32xf32>
    %90 = vector.extract_strided_slice %87 {offsets = [0, 0], sizes = [8, 8], strides = [1, 1]} : vector<8x32xf32> to vector<8x8xf32>
    %91 = vector.extract_strided_slice %88 {offsets = [0, 0], sizes = [8, 8], strides = [1, 1]} : vector<8x32xf32> to vector<8x8xf32>
    %92 = vector.extract_strided_slice %89 {offsets = [0, 0], sizes = [8, 8], strides = [1, 1]} : vector<8x32xf32> to vector<8x8xf32>
    %cst_48 = arith.constant dense<0.000000e+00> : vector<8x8xf32>
    %93 = tpu.matmul %90, %91, %cst_48 {dimension_numbers = #tpu.dot_dimension_numbers<[1], [1], [0], [0], [0, 0, 1, 0], [], []>} : vector<8x8xf32>, vector<8x8xf32>, vector<8x8xf32> -> vector<8x8xf32>
    %cst_49 = arith.constant 0.353553385 : f32
    %94 = vector.broadcast %cst_49 : f32 to vector<8x8xf32>
    %95 = arith.mulf %93, %94 : vector<8x8xf32>
    %cst_50 = arith.constant dense<0xFF800000> : vector<8xf32>
    %96 = vector.multi_reduction <maximumf>, %95, %cst_50 [1] : vector<8x8xf32> to vector<8xf32>
    %97 = vector.shape_cast %96 : vector<8xf32> to vector<8x1xf32>
    %98 = vector.broadcast %97 : vector<8x1xf32> to vector<8x8xf32>
    %99 = arith.subf %95, %98 : vector<8x8xf32>
    %100 = math.exp %99 : vector<8x8xf32>
    %cst_51 = arith.constant dense<0.000000e+00> : vector<8xf32>
    %101 = vector.multi_reduction <add>, %100, %cst_51 [1] : vector<8x8xf32> to vector<8xf32>
    %102 = vector.shape_cast %101 : vector<8xf32> to vector<8x1xf32>
    %103 = tpu.reciprocal %102 {approx = true} : vector<8x1xf32> -> vector<8x1xf32>
    %104 = vector.broadcast %103 : vector<8x1xf32> to vector<8x8xf32>
    %105 = arith.mulf %100, %104 : vector<8x8xf32>
    %cst_52 = arith.constant dense<0.000000e+00> : vector<8x8xf32>
    %106 = tpu.matmul %105, %92, %cst_52 {dimension_numbers = #tpu.dot_dimension_numbers<[1], [0], [0], [1], [0, 0, 1, 1], [], []>} : vector<8x8xf32>, vector<8x8xf32>, vector<8x8xf32> -> vector<8x8xf32>
    %107 = vector.extract_strided_slice %87 {offsets = [0, 8], sizes = [8, 8], strides = [1, 1]} : vector<8x32xf32> to vector<8x8xf32>
    %108 = vector.extract_strided_slice %88 {offsets = [0, 8], sizes = [8, 8], strides = [1, 1]} : vector<8x32xf32> to vector<8x8xf32>
    %109 = vector.extract_strided_slice %89 {offsets = [0, 8], sizes = [8, 8], strides = [1, 1]} : vector<8x32xf32> to vector<8x8xf32>
    %cst_53 = arith.constant dense<0.000000e+00> : vector<8x8xf32>
    %110 = tpu.matmul %107, %108, %cst_53 {dimension_numbers = #tpu.dot_dimension_numbers<[1], [1], [0], [0], [0, 0, 1, 0], [], []>} : vector<8x8xf32>, vector<8x8xf32>, vector<8x8xf32> -> vector<8x8xf32>
    %cst_54 = arith.constant 0.353553385 : f32
    %111 = vector.broadcast %cst_54 : f32 to vector<8x8xf32>
    %112 = arith.mulf %110, %111 : vector<8x8xf32>
    %cst_55 = arith.constant dense<0xFF800000> : vector<8xf32>
    %113 = vector.multi_reduction <maximumf>, %112, %cst_55 [1] : vector<8x8xf32> to vector<8xf32>
    %114 = vector.shape_cast %113 : vector<8xf32> to vector<8x1xf32>
    %115 = vector.broadcast %114 : vector<8x1xf32> to vector<8x8xf32>
    %116 = arith.subf %112, %115 : vector<8x8xf32>
    %117 = math.exp %116 : vector<8x8xf32>
    %cst_56 = arith.constant dense<0.000000e+00> : vector<8xf32>
    %118 = vector.multi_reduction <add>, %117, %cst_56 [1] : vector<8x8xf32> to vector<8xf32>
    %119 = vector.shape_cast %118 : vector<8xf32> to vector<8x1xf32>
    %120 = tpu.reciprocal %119 {approx = true} : vector<8x1xf32> -> vector<8x1xf32>
    %121 = vector.broadcast %120 : vector<8x1xf32> to vector<8x8xf32>
    %122 = arith.mulf %117, %121 : vector<8x8xf32>
    %cst_57 = arith.constant dense<0.000000e+00> : vector<8x8xf32>
    %123 = tpu.matmul %122, %109, %cst_57 {dimension_numbers = #tpu.dot_dimension_numbers<[1], [0], [0], [1], [0, 0, 1, 1], [], []>} : vector<8x8xf32>, vector<8x8xf32>, vector<8x8xf32> -> vector<8x8xf32>
    %124 = vector.extract_strided_slice %87 {offsets = [0, 16], sizes = [8, 8], strides = [1, 1]} : vector<8x32xf32> to vector<8x8xf32>
    %125 = vector.extract_strided_slice %88 {offsets = [0, 16], sizes = [8, 8], strides = [1, 1]} : vector<8x32xf32> to vector<8x8xf32>
    %126 = vector.extract_strided_slice %89 {offsets = [0, 16], sizes = [8, 8], strides = [1, 1]} : vector<8x32xf32> to vector<8x8xf32>
    %cst_58 = arith.constant dense<0.000000e+00> : vector<8x8xf32>
    %127 = tpu.matmul %124, %125, %cst_58 {dimension_numbers = #tpu.dot_dimension_numbers<[1], [1], [0], [0], [0, 0, 1, 0], [], []>} : vector<8x8xf32>, vector<8x8xf32>, vector<8x8xf32> -> vector<8x8xf32>
    %cst_59 = arith.constant 0.353553385 : f32
    %128 = vector.broadcast %cst_59 : f32 to vector<8x8xf32>
    %129 = arith.mulf %127, %128 : vector<8x8xf32>
    %cst_60 = arith.constant dense<0xFF800000> : vector<8xf32>
    %130 = vector.multi_reduction <maximumf>, %129, %cst_60 [1] : vector<8x8xf32> to vector<8xf32>
    %131 = vector.shape_cast %130 : vector<8xf32> to vector<8x1xf32>
    %132 = vector.broadcast %131 : vector<8x1xf32> to vector<8x8xf32>
    %133 = arith.subf %129, %132 : vector<8x8xf32>
    %134 = math.exp %133 : vector<8x8xf32>
    %cst_61 = arith.constant dense<0.000000e+00> : vector<8xf32>
    %135 = vector.multi_reduction <add>, %134, %cst_61 [1] : vector<8x8xf32> to vector<8xf32>
    %136 = vector.shape_cast %135 : vector<8xf32> to vector<8x1xf32>
    %137 = tpu.reciprocal %136 {approx = true} : vector<8x1xf32> -> vector<8x1xf32>
    %138 = vector.broadcast %137 : vector<8x1xf32> to vector<8x8xf32>
    %139 = arith.mulf %134, %138 : vector<8x8xf32>
    %cst_62 = arith.constant dense<0.000000e+00> : vector<8x8xf32>
    %140 = tpu.matmul %139, %126, %cst_62 {dimension_numbers = #tpu.dot_dimension_numbers<[1], [0], [0], [1], [0, 0, 1, 1], [], []>} : vector<8x8xf32>, vector<8x8xf32>, vector<8x8xf32> -> vector<8x8xf32>
    %141 = vector.extract_strided_slice %87 {offsets = [0, 24], sizes = [8, 8], strides = [1, 1]} : vector<8x32xf32> to vector<8x8xf32>
    %142 = vector.extract_strided_slice %88 {offsets = [0, 24], sizes = [8, 8], strides = [1, 1]} : vector<8x32xf32> to vector<8x8xf32>
    %143 = vector.extract_strided_slice %89 {offsets = [0, 24], sizes = [8, 8], strides = [1, 1]} : vector<8x32xf32> to vector<8x8xf32>
    %cst_63 = arith.constant dense<0.000000e+00> : vector<8x8xf32>
    %144 = tpu.matmul %141, %142, %cst_63 {dimension_numbers = #tpu.dot_dimension_numbers<[1], [1], [0], [0], [0, 0, 1, 0], [], []>} : vector<8x8xf32>, vector<8x8xf32>, vector<8x8xf32> -> vector<8x8xf32>
    %cst_64 = arith.constant 0.353553385 : f32
    %145 = vector.broadcast %cst_64 : f32 to vector<8x8xf32>
    %146 = arith.mulf %144, %145 : vector<8x8xf32>
    %cst_65 = arith.constant dense<0xFF800000> : vector<8xf32>
    %147 = vector.multi_reduction <maximumf>, %146, %cst_65 [1] : vector<8x8xf32> to vector<8xf32>
    %148 = vector.shape_cast %147 : vector<8xf32> to vector<8x1xf32>
    %149 = vector.broadcast %148 : vector<8x1xf32> to vector<8x8xf32>
    %150 = arith.subf %146, %149 : vector<8x8xf32>
    %151 = math.exp %150 : vector<8x8xf32>
    %cst_66 = arith.constant dense<0.000000e+00> : vector<8xf32>
    %152 = vector.multi_reduction <add>, %151, %cst_66 [1] : vector<8x8xf32> to vector<8xf32>
    %153 = vector.shape_cast %152 : vector<8xf32> to vector<8x1xf32>
    %154 = tpu.reciprocal %153 {approx = true} : vector<8x1xf32> -> vector<8x1xf32>
    %155 = vector.broadcast %154 : vector<8x1xf32> to vector<8x8xf32>
    %156 = arith.mulf %151, %155 : vector<8x8xf32>
    %cst_67 = arith.constant dense<0.000000e+00> : vector<8x8xf32>
    %157 = tpu.matmul %156, %143, %cst_67 {dimension_numbers = #tpu.dot_dimension_numbers<[1], [0], [0], [1], [0, 0, 1, 1], [], []>} : vector<8x8xf32>, vector<8x8xf32>, vector<8x8xf32> -> vector<8x8xf32>
    %158 = tpu.concatenate %106, %123, %140, %157 in 1 : vector<8x8xf32>, vector<8x8xf32>, vector<8x8xf32>, vector<8x8xf32> -> vector<8x32xf32>
    %c0_68 = arith.constant 0 : index
    %c0_69 = arith.constant 0 : index
    %c0_70 = arith.constant 0 : index
    %159 = vector.load %arg8[%c0_68, %c0_69, %c0_70] : memref<2x32x32xf32, #tpu.memory_space<vmem>>, vector<1x32x32xf32>
    %160 = vector.shape_cast %159 : vector<1x32x32xf32> to vector<32x32xf32>
    %cst_71 = arith.constant dense<0.000000e+00> : vector<8x32xf32>
    %161 = tpu.matmul %158, %160, %cst_71 {dimension_numbers = #tpu.dot_dimension_numbers<[1], [0], [0], [1], [0, 0, 1, 1], [], []>} : vector<8x32xf32>, vector<32x32xf32>, vector<8x32xf32> -> vector<8x32xf32>
    %c0_72 = arith.constant 0 : index
    %c0_73 = arith.constant 0 : index
    %c0_74 = arith.constant 0 : index
    %162 = vector.load %arg9[%c0_72, %c0_73, %c0_74] : memref<2x1x32xf32, #tpu.memory_space<vmem>>, vector<1x1x32xf32>
    %163 = vector.shape_cast %162 : vector<1x1x32xf32> to vector<1x32xf32>
    %164 = vector.broadcast %163 : vector<1x32xf32> to vector<8x32xf32>
    %165 = arith.addf %161, %164 : vector<8x32xf32>
    %166 = arith.addf %79, %165 : vector<8x32xf32>
    %c0_75 = arith.constant 0 : index
    %c0_76 = arith.constant 0 : index
    %c0_77 = arith.constant 0 : index
    %167 = vector.load %arg10[%c0_75, %c0_76, %c0_77] : memref<2x1x32xf32, #tpu.memory_space<vmem>>, vector<1x1x32xf32>
    %168 = vector.shape_cast %167 : vector<1x1x32xf32> to vector<1x32xf32>
    %c0_78 = arith.constant 0 : index
    %c0_79 = arith.constant 0 : index
    %c0_80 = arith.constant 0 : index
    %169 = vector.load %arg11[%c0_78, %c0_79, %c0_80] : memref<2x1x32xf32, #tpu.memory_space<vmem>>, vector<1x1x32xf32>
    %170 = vector.shape_cast %169 : vector<1x1x32xf32> to vector<1x32xf32>
    %cst_81 = arith.constant dense<0.000000e+00> : vector<8xf32>
    %171 = vector.multi_reduction <add>, %166, %cst_81 [1] : vector<8x32xf32> to vector<8xf32>
    %172 = vector.shape_cast %171 : vector<8xf32> to vector<8x1xf32>
    %cst_82 = arith.constant 3.200000e+01 : f32
    %173 = vector.broadcast %cst_82 : f32 to vector<8x1xf32>
    %174 = arith.divf %172, %173 : vector<8x1xf32>
    %175 = vector.broadcast %174 : vector<8x1xf32> to vector<8x32xf32>
    %176 = arith.subf %166, %175 : vector<8x32xf32>
    %177 = arith.mulf %176, %176 : vector<8x32xf32>
    %cst_83 = arith.constant dense<0.000000e+00> : vector<8xf32>
    %178 = vector.multi_reduction <add>, %177, %cst_83 [1] : vector<8x32xf32> to vector<8xf32>
    %179 = vector.shape_cast %178 : vector<8xf32> to vector<8x1xf32>
    %cst_84 = arith.constant 3.200000e+01 : f32
    %180 = vector.broadcast %cst_84 : f32 to vector<8x1xf32>
    %181 = arith.divf %179, %180 : vector<8x1xf32>
    %cst_85 = arith.constant 9.99999974E-6 : f32
    %182 = vector.broadcast %cst_85 : f32 to vector<8x1xf32>
    %183 = arith.addf %181, %182 : vector<8x1xf32>
    %184 = math.rsqrt %183 : vector<8x1xf32>
    %185 = vector.broadcast %184 : vector<8x1xf32> to vector<8x32xf32>
    %186 = arith.mulf %176, %185 : vector<8x32xf32>
    %187 = vector.broadcast %168 : vector<1x32xf32> to vector<8x32xf32>
    %188 = arith.mulf %186, %187 : vector<8x32xf32>
    %189 = vector.broadcast %170 : vector<1x32xf32> to vector<8x32xf32>
    %190 = arith.addf %188, %189 : vector<8x32xf32>
    %c0_86 = arith.constant 0 : index
    %c0_87 = arith.constant 0 : index
    %c0_88 = arith.constant 0 : index
    %191 = vector.load %arg12[%c0_86, %c0_87, %c0_88] : memref<2x32x64xf32, #tpu.memory_space<vmem>>, vector<1x32x64xf32>
    %192 = vector.shape_cast %191 : vector<1x32x64xf32> to vector<32x64xf32>
    %cst_89 = arith.constant dense<0.000000e+00> : vector<8x64xf32>
    %193 = tpu.matmul %190, %192, %cst_89 {dimension_numbers = #tpu.dot_dimension_numbers<[1], [0], [0], [1], [0, 0, 1, 1], [], []>} : vector<8x32xf32>, vector<32x64xf32>, vector<8x64xf32> -> vector<8x64xf32>
    %c0_90 = arith.constant 0 : index
    %c0_91 = arith.constant 0 : index
    %c0_92 = arith.constant 0 : index
    %194 = vector.load %arg13[%c0_90, %c0_91, %c0_92] : memref<2x1x64xf32, #tpu.memory_space<vmem>>, vector<1x1x64xf32>
    %195 = vector.shape_cast %194 : vector<1x1x64xf32> to vector<1x64xf32>
    %196 = vector.broadcast %195 : vector<1x64xf32> to vector<8x64xf32>
    %197 = arith.addf %193, %196 : vector<8x64xf32>
    %cst_93 = arith.constant 5.000000e-01 : f32
    %198 = vector.broadcast %cst_93 : f32 to vector<8x64xf32>
    %199 = arith.mulf %198, %197 : vector<8x64xf32>
    %cst_94 = arith.constant 4.471500e-02 : f32
    %200 = vector.broadcast %cst_94 : f32 to vector<8x64xf32>
    %201 = arith.mulf %200, %197 : vector<8x64xf32>
    %202 = arith.mulf %201, %197 : vector<8x64xf32>
    %203 = arith.mulf %202, %197 : vector<8x64xf32>
    %204 = arith.addf %197, %203 : vector<8x64xf32>
    %cst_95 = arith.constant 0.797884583 : f32
    %205 = vector.broadcast %cst_95 : f32 to vector<8x64xf32>
    %206 = arith.mulf %205, %204 : vector<8x64xf32>
    %207 = math.tanh %206 : vector<8x64xf32>
    %cst_96 = arith.constant 1.000000e+00 : f32
    %208 = vector.broadcast %cst_96 : f32 to vector<8x64xf32>
    %209 = arith.addf %208, %207 : vector<8x64xf32>
    %210 = arith.mulf %199, %209 : vector<8x64xf32>
    %c0_97 = arith.constant 0 : index
    %c0_98 = arith.constant 0 : index
    %c0_99 = arith.constant 0 : index
    %211 = vector.load %arg14[%c0_97, %c0_98, %c0_99] : memref<2x64x32xf32, #tpu.memory_space<vmem>>, vector<1x64x32xf32>
    %212 = vector.shape_cast %211 : vector<1x64x32xf32> to vector<64x32xf32>
    %cst_100 = arith.constant dense<0.000000e+00> : vector<8x32xf32>
    %213 = tpu.matmul %210, %212, %cst_100 {dimension_numbers = #tpu.dot_dimension_numbers<[1], [0], [0], [1], [0, 0, 1, 1], [], []>} : vector<8x64xf32>, vector<64x32xf32>, vector<8x32xf32> -> vector<8x32xf32>
    %c0_101 = arith.constant 0 : index
    %c0_102 = arith.constant 0 : index
    %c0_103 = arith.constant 0 : index
    %214 = vector.load %arg15[%c0_101, %c0_102, %c0_103] : memref<2x1x32xf32, #tpu.memory_space<vmem>>, vector<1x1x32xf32>
    %215 = vector.shape_cast %214 : vector<1x1x32xf32> to vector<1x32xf32>
    %216 = vector.broadcast %215 : vector<1x32xf32> to vector<8x32xf32>
    %217 = arith.addf %213, %216 : vector<8x32xf32>
    %218 = arith.addf %190, %217 : vector<8x32xf32>
    %c0_104 = arith.constant 0 : index
    %c0_105 = arith.constant 0 : index
    %c0_106 = arith.constant 0 : index
    %219 = vector.load %arg16[%c0_104, %c0_105, %c0_106] : memref<2x1x32xf32, #tpu.memory_space<vmem>>, vector<1x1x32xf32>
    %220 = vector.shape_cast %219 : vector<1x1x32xf32> to vector<1x32xf32>
    %c0_107 = arith.constant 0 : index
    %c0_108 = arith.constant 0 : index
    %c0_109 = arith.constant 0 : index
    %221 = vector.load %arg17[%c0_107, %c0_108, %c0_109] : memref<2x1x32xf32, #tpu.memory_space<vmem>>, vector<1x1x32xf32>
    %222 = vector.shape_cast %221 : vector<1x1x32xf32> to vector<1x32xf32>
    %cst_110 = arith.constant dense<0.000000e+00> : vector<8xf32>
    %223 = vector.multi_reduction <add>, %218, %cst_110 [1] : vector<8x32xf32> to vector<8xf32>
    %224 = vector.shape_cast %223 : vector<8xf32> to vector<8x1xf32>
    %cst_111 = arith.constant 3.200000e+01 : f32
    %225 = vector.broadcast %cst_111 : f32 to vector<8x1xf32>
    %226 = arith.divf %224, %225 : vector<8x1xf32>
    %227 = vector.broadcast %226 : vector<8x1xf32> to vector<8x32xf32>
    %228 = arith.subf %218, %227 : vector<8x32xf32>
    %229 = arith.mulf %228, %228 : vector<8x32xf32>
    %cst_112 = arith.constant dense<0.000000e+00> : vector<8xf32>
    %230 = vector.multi_reduction <add>, %229, %cst_112 [1] : vector<8x32xf32> to vector<8xf32>
    %231 = vector.shape_cast %230 : vector<8xf32> to vector<8x1xf32>
    %cst_113 = arith.constant 3.200000e+01 : f32
    %232 = vector.broadcast %cst_113 : f32 to vector<8x1xf32>
    %233 = arith.divf %231, %232 : vector<8x1xf32>
    %cst_114 = arith.constant 9.99999974E-6 : f32
    %234 = vector.broadcast %cst_114 : f32 to vector<8x1xf32>
    %235 = arith.addf %233, %234 : vector<8x1xf32>
    %236 = math.rsqrt %235 : vector<8x1xf32>
    %237 = vector.broadcast %236 : vector<8x1xf32> to vector<8x32xf32>
    %238 = arith.mulf %228, %237 : vector<8x32xf32>
    %239 = vector.broadcast %220 : vector<1x32xf32> to vector<8x32xf32>
    %240 = arith.mulf %238, %239 : vector<8x32xf32>
    %241 = vector.broadcast %222 : vector<1x32xf32> to vector<8x32xf32>
    %242 = arith.addf %240, %241 : vector<8x32xf32>
    %c1_115 = arith.constant 1 : index
    %c0_116 = arith.constant 0 : index
    %c0_117 = arith.constant 0 : index
    %243 = vector.load %arg6[%c1_115, %c0_116, %c0_117] : memref<2x32x96xf32, #tpu.memory_space<vmem>>, vector<1x32x96xf32>
    %244 = vector.shape_cast %243 : vector<1x32x96xf32> to vector<32x96xf32>
    %cst_118 = arith.constant dense<0.000000e+00> : vector<8x96xf32>
    %245 = tpu.matmul %242, %244, %cst_118 {dimension_numbers = #tpu.dot_dimension_numbers<[1], [0], [0], [1], [0, 0, 1, 1], [], []>} : vector<8x32xf32>, vector<32x96xf32>, vector<8x96xf32> -> vector<8x96xf32>
    %c1_119 = arith.constant 1 : index
    %c0_120 = arith.constant 0 : index
    %c0_121 = arith.constant 0 : index
    %246 = vector.load %arg7[%c1_119, %c0_120, %c0_121] : memref<2x1x96xf32, #tpu.memory_space<vmem>>, vector<1x1x96xf32>
    %247 = vector.shape_cast %246 : vector<1x1x96xf32> to vector<1x96xf32>
    %248 = vector.broadcast %247 : vector<1x96xf32> to vector<8x96xf32>
    %249 = arith.addf %245, %248 : vector<8x96xf32>
    %250 = vector.extract_strided_slice %249 {offsets = [0, 0], sizes = [8, 32], strides = [1, 1]} : vector<8x96xf32> to vector<8x32xf32>
    %251 = vector.extract_strided_slice %249 {offsets = [0, 32], sizes = [8, 32], strides = [1, 1]} : vector<8x96xf32> to vector<8x32xf32>
    %252 = vector.extract_strided_slice %249 {offsets = [0, 64], sizes = [8, 32], strides = [1, 1]} : vector<8x96xf32> to vector<8x32xf32>
    %253 = vector.extract_strided_slice %250 {offsets = [0, 0], sizes = [8, 8], strides = [1, 1]} : vector<8x32xf32> to vector<8x8xf32>
    %254 = vector.extract_strided_slice %251 {offsets = [0, 0], sizes = [8, 8], strides = [1, 1]} : vector<8x32xf32> to vector<8x8xf32>
    %255 = vector.extract_strided_slice %252 {offsets = [0, 0], sizes = [8, 8], strides = [1, 1]} : vector<8x32xf32> to vector<8x8xf32>
    %cst_122 = arith.constant dense<0.000000e+00> : vector<8x8xf32>
    %256 = tpu.matmul %253, %254, %cst_122 {dimension_numbers = #tpu.dot_dimension_numbers<[1], [1], [0], [0], [0, 0, 1, 0], [], []>} : vector<8x8xf32>, vector<8x8xf32>, vector<8x8xf32> -> vector<8x8xf32>
    %cst_123 = arith.constant 0.353553385 : f32
    %257 = vector.broadcast %cst_123 : f32 to vector<8x8xf32>
    %258 = arith.mulf %256, %257 : vector<8x8xf32>
    %cst_124 = arith.constant dense<0xFF800000> : vector<8xf32>
    %259 = vector.multi_reduction <maximumf>, %258, %cst_124 [1] : vector<8x8xf32> to vector<8xf32>
    %260 = vector.shape_cast %259 : vector<8xf32> to vector<8x1xf32>
    %261 = vector.broadcast %260 : vector<8x1xf32> to vector<8x8xf32>
    %262 = arith.subf %258, %261 : vector<8x8xf32>
    %263 = math.exp %262 : vector<8x8xf32>
    %cst_125 = arith.constant dense<0.000000e+00> : vector<8xf32>
    %264 = vector.multi_reduction <add>, %263, %cst_125 [1] : vector<8x8xf32> to vector<8xf32>
    %265 = vector.shape_cast %264 : vector<8xf32> to vector<8x1xf32>
    %266 = tpu.reciprocal %265 {approx = true} : vector<8x1xf32> -> vector<8x1xf32>
    %267 = vector.broadcast %266 : vector<8x1xf32> to vector<8x8xf32>
    %268 = arith.mulf %263, %267 : vector<8x8xf32>
    %cst_126 = arith.constant dense<0.000000e+00> : vector<8x8xf32>
    %269 = tpu.matmul %268, %255, %cst_126 {dimension_numbers = #tpu.dot_dimension_numbers<[1], [0], [0], [1], [0, 0, 1, 1], [], []>} : vector<8x8xf32>, vector<8x8xf32>, vector<8x8xf32> -> vector<8x8xf32>
    %270 = vector.extract_strided_slice %250 {offsets = [0, 8], sizes = [8, 8], strides = [1, 1]} : vector<8x32xf32> to vector<8x8xf32>
    %271 = vector.extract_strided_slice %251 {offsets = [0, 8], sizes = [8, 8], strides = [1, 1]} : vector<8x32xf32> to vector<8x8xf32>
    %272 = vector.extract_strided_slice %252 {offsets = [0, 8], sizes = [8, 8], strides = [1, 1]} : vector<8x32xf32> to vector<8x8xf32>
    %cst_127 = arith.constant dense<0.000000e+00> : vector<8x8xf32>
    %273 = tpu.matmul %270, %271, %cst_127 {dimension_numbers = #tpu.dot_dimension_numbers<[1], [1], [0], [0], [0, 0, 1, 0], [], []>} : vector<8x8xf32>, vector<8x8xf32>, vector<8x8xf32> -> vector<8x8xf32>
    %cst_128 = arith.constant 0.353553385 : f32
    %274 = vector.broadcast %cst_128 : f32 to vector<8x8xf32>
    %275 = arith.mulf %273, %274 : vector<8x8xf32>
    %cst_129 = arith.constant dense<0xFF800000> : vector<8xf32>
    %276 = vector.multi_reduction <maximumf>, %275, %cst_129 [1] : vector<8x8xf32> to vector<8xf32>
    %277 = vector.shape_cast %276 : vector<8xf32> to vector<8x1xf32>
    %278 = vector.broadcast %277 : vector<8x1xf32> to vector<8x8xf32>
    %279 = arith.subf %275, %278 : vector<8x8xf32>
    %280 = math.exp %279 : vector<8x8xf32>
    %cst_130 = arith.constant dense<0.000000e+00> : vector<8xf32>
    %281 = vector.multi_reduction <add>, %280, %cst_130 [1] : vector<8x8xf32> to vector<8xf32>
    %282 = vector.shape_cast %281 : vector<8xf32> to vector<8x1xf32>
    %283 = tpu.reciprocal %282 {approx = true} : vector<8x1xf32> -> vector<8x1xf32>
    %284 = vector.broadcast %283 : vector<8x1xf32> to vector<8x8xf32>
    %285 = arith.mulf %280, %284 : vector<8x8xf32>
    %cst_131 = arith.constant dense<0.000000e+00> : vector<8x8xf32>
    %286 = tpu.matmul %285, %272, %cst_131 {dimension_numbers = #tpu.dot_dimension_numbers<[1], [0], [0], [1], [0, 0, 1, 1], [], []>} : vector<8x8xf32>, vector<8x8xf32>, vector<8x8xf32> -> vector<8x8xf32>
    %287 = vector.extract_strided_slice %250 {offsets = [0, 16], sizes = [8, 8], strides = [1, 1]} : vector<8x32xf32> to vector<8x8xf32>
    %288 = vector.extract_strided_slice %251 {offsets = [0, 16], sizes = [8, 8], strides = [1, 1]} : vector<8x32xf32> to vector<8x8xf32>
    %289 = vector.extract_strided_slice %252 {offsets = [0, 16], sizes = [8, 8], strides = [1, 1]} : vector<8x32xf32> to vector<8x8xf32>
    %cst_132 = arith.constant dense<0.000000e+00> : vector<8x8xf32>
    %290 = tpu.matmul %287, %288, %cst_132 {dimension_numbers = #tpu.dot_dimension_numbers<[1], [1], [0], [0], [0, 0, 1, 0], [], []>} : vector<8x8xf32>, vector<8x8xf32>, vector<8x8xf32> -> vector<8x8xf32>
    %cst_133 = arith.constant 0.353553385 : f32
    %291 = vector.broadcast %cst_133 : f32 to vector<8x8xf32>
    %292 = arith.mulf %290, %291 : vector<8x8xf32>
    %cst_134 = arith.constant dense<0xFF800000> : vector<8xf32>
    %293 = vector.multi_reduction <maximumf>, %292, %cst_134 [1] : vector<8x8xf32> to vector<8xf32>
    %294 = vector.shape_cast %293 : vector<8xf32> to vector<8x1xf32>
    %295 = vector.broadcast %294 : vector<8x1xf32> to vector<8x8xf32>
    %296 = arith.subf %292, %295 : vector<8x8xf32>
    %297 = math.exp %296 : vector<8x8xf32>
    %cst_135 = arith.constant dense<0.000000e+00> : vector<8xf32>
    %298 = vector.multi_reduction <add>, %297, %cst_135 [1] : vector<8x8xf32> to vector<8xf32>
    %299 = vector.shape_cast %298 : vector<8xf32> to vector<8x1xf32>
    %300 = tpu.reciprocal %299 {approx = true} : vector<8x1xf32> -> vector<8x1xf32>
    %301 = vector.broadcast %300 : vector<8x1xf32> to vector<8x8xf32>
    %302 = arith.mulf %297, %301 : vector<8x8xf32>
    %cst_136 = arith.constant dense<0.000000e+00> : vector<8x8xf32>
    %303 = tpu.matmul %302, %289, %cst_136 {dimension_numbers = #tpu.dot_dimension_numbers<[1], [0], [0], [1], [0, 0, 1, 1], [], []>} : vector<8x8xf32>, vector<8x8xf32>, vector<8x8xf32> -> vector<8x8xf32>
    %304 = vector.extract_strided_slice %250 {offsets = [0, 24], sizes = [8, 8], strides = [1, 1]} : vector<8x32xf32> to vector<8x8xf32>
    %305 = vector.extract_strided_slice %251 {offsets = [0, 24], sizes = [8, 8], strides = [1, 1]} : vector<8x32xf32> to vector<8x8xf32>
    %306 = vector.extract_strided_slice %252 {offsets = [0, 24], sizes = [8, 8], strides = [1, 1]} : vector<8x32xf32> to vector<8x8xf32>
    %cst_137 = arith.constant dense<0.000000e+00> : vector<8x8xf32>
    %307 = tpu.matmul %304, %305, %cst_137 {dimension_numbers = #tpu.dot_dimension_numbers<[1], [1], [0], [0], [0, 0, 1, 0], [], []>} : vector<8x8xf32>, vector<8x8xf32>, vector<8x8xf32> -> vector<8x8xf32>
    %cst_138 = arith.constant 0.353553385 : f32
    %308 = vector.broadcast %cst_138 : f32 to vector<8x8xf32>
    %309 = arith.mulf %307, %308 : vector<8x8xf32>
    %cst_139 = arith.constant dense<0xFF800000> : vector<8xf32>
    %310 = vector.multi_reduction <maximumf>, %309, %cst_139 [1] : vector<8x8xf32> to vector<8xf32>
    %311 = vector.shape_cast %310 : vector<8xf32> to vector<8x1xf32>
    %312 = vector.broadcast %311 : vector<8x1xf32> to vector<8x8xf32>
    %313 = arith.subf %309, %312 : vector<8x8xf32>
    %314 = math.exp %313 : vector<8x8xf32>
    %cst_140 = arith.constant dense<0.000000e+00> : vector<8xf32>
    %315 = vector.multi_reduction <add>, %314, %cst_140 [1] : vector<8x8xf32> to vector<8xf32>
    %316 = vector.shape_cast %315 : vector<8xf32> to vector<8x1xf32>
    %317 = tpu.reciprocal %316 {approx = true} : vector<8x1xf32> -> vector<8x1xf32>
    %318 = vector.broadcast %317 : vector<8x1xf32> to vector<8x8xf32>
    %319 = arith.mulf %314, %318 : vector<8x8xf32>
    %cst_141 = arith.constant dense<0.000000e+00> : vector<8x8xf32>
    %320 = tpu.matmul %319, %306, %cst_141 {dimension_numbers = #tpu.dot_dimension_numbers<[1], [0], [0], [1], [0, 0, 1, 1], [], []>} : vector<8x8xf32>, vector<8x8xf32>, vector<8x8xf32> -> vector<8x8xf32>
    %321 = tpu.concatenate %269, %286, %303, %320 in 1 : vector<8x8xf32>, vector<8x8xf32>, vector<8x8xf32>, vector<8x8xf32> -> vector<8x32xf32>
    %c1_142 = arith.constant 1 : index
    %c0_143 = arith.constant 0 : index
    %c0_144 = arith.constant 0 : index
    %322 = vector.load %arg8[%c1_142, %c0_143, %c0_144] : memref<2x32x32xf32, #tpu.memory_space<vmem>>, vector<1x32x32xf32>
    %323 = vector.shape_cast %322 : vector<1x32x32xf32> to vector<32x32xf32>
    %cst_145 = arith.constant dense<0.000000e+00> : vector<8x32xf32>
    %324 = tpu.matmul %321, %323, %cst_145 {dimension_numbers = #tpu.dot_dimension_numbers<[1], [0], [0], [1], [0, 0, 1, 1], [], []>} : vector<8x32xf32>, vector<32x32xf32>, vector<8x32xf32> -> vector<8x32xf32>
    %c1_146 = arith.constant 1 : index
    %c0_147 = arith.constant 0 : index
    %c0_148 = arith.constant 0 : index
    %325 = vector.load %arg9[%c1_146, %c0_147, %c0_148] : memref<2x1x32xf32, #tpu.memory_space<vmem>>, vector<1x1x32xf32>
    %326 = vector.shape_cast %325 : vector<1x1x32xf32> to vector<1x32xf32>
    %327 = vector.broadcast %326 : vector<1x32xf32> to vector<8x32xf32>
    %328 = arith.addf %324, %327 : vector<8x32xf32>
    %329 = arith.addf %242, %328 : vector<8x32xf32>
    %c1_149 = arith.constant 1 : index
    %c0_150 = arith.constant 0 : index
    %c0_151 = arith.constant 0 : index
    %330 = vector.load %arg10[%c1_149, %c0_150, %c0_151] : memref<2x1x32xf32, #tpu.memory_space<vmem>>, vector<1x1x32xf32>
    %331 = vector.shape_cast %330 : vector<1x1x32xf32> to vector<1x32xf32>
    %c1_152 = arith.constant 1 : index
    %c0_153 = arith.constant 0 : index
    %c0_154 = arith.constant 0 : index
    %332 = vector.load %arg11[%c1_152, %c0_153, %c0_154] : memref<2x1x32xf32, #tpu.memory_space<vmem>>, vector<1x1x32xf32>
    %333 = vector.shape_cast %332 : vector<1x1x32xf32> to vector<1x32xf32>
    %cst_155 = arith.constant dense<0.000000e+00> : vector<8xf32>
    %334 = vector.multi_reduction <add>, %329, %cst_155 [1] : vector<8x32xf32> to vector<8xf32>
    %335 = vector.shape_cast %334 : vector<8xf32> to vector<8x1xf32>
    %cst_156 = arith.constant 3.200000e+01 : f32
    %336 = vector.broadcast %cst_156 : f32 to vector<8x1xf32>
    %337 = arith.divf %335, %336 : vector<8x1xf32>
    %338 = vector.broadcast %337 : vector<8x1xf32> to vector<8x32xf32>
    %339 = arith.subf %329, %338 : vector<8x32xf32>
    %340 = arith.mulf %339, %339 : vector<8x32xf32>
    %cst_157 = arith.constant dense<0.000000e+00> : vector<8xf32>
    %341 = vector.multi_reduction <add>, %340, %cst_157 [1] : vector<8x32xf32> to vector<8xf32>
    %342 = vector.shape_cast %341 : vector<8xf32> to vector<8x1xf32>
    %cst_158 = arith.constant 3.200000e+01 : f32
    %343 = vector.broadcast %cst_158 : f32 to vector<8x1xf32>
    %344 = arith.divf %342, %343 : vector<8x1xf32>
    %cst_159 = arith.constant 9.99999974E-6 : f32
    %345 = vector.broadcast %cst_159 : f32 to vector<8x1xf32>
    %346 = arith.addf %344, %345 : vector<8x1xf32>
    %347 = math.rsqrt %346 : vector<8x1xf32>
    %348 = vector.broadcast %347 : vector<8x1xf32> to vector<8x32xf32>
    %349 = arith.mulf %339, %348 : vector<8x32xf32>
    %350 = vector.broadcast %331 : vector<1x32xf32> to vector<8x32xf32>
    %351 = arith.mulf %349, %350 : vector<8x32xf32>
    %352 = vector.broadcast %333 : vector<1x32xf32> to vector<8x32xf32>
    %353 = arith.addf %351, %352 : vector<8x32xf32>
    %c1_160 = arith.constant 1 : index
    %c0_161 = arith.constant 0 : index
    %c0_162 = arith.constant 0 : index
    %354 = vector.load %arg12[%c1_160, %c0_161, %c0_162] : memref<2x32x64xf32, #tpu.memory_space<vmem>>, vector<1x32x64xf32>
    %355 = vector.shape_cast %354 : vector<1x32x64xf32> to vector<32x64xf32>
    %cst_163 = arith.constant dense<0.000000e+00> : vector<8x64xf32>
    %356 = tpu.matmul %353, %355, %cst_163 {dimension_numbers = #tpu.dot_dimension_numbers<[1], [0], [0], [1], [0, 0, 1, 1], [], []>} : vector<8x32xf32>, vector<32x64xf32>, vector<8x64xf32> -> vector<8x64xf32>
    %c1_164 = arith.constant 1 : index
    %c0_165 = arith.constant 0 : index
    %c0_166 = arith.constant 0 : index
    %357 = vector.load %arg13[%c1_164, %c0_165, %c0_166] : memref<2x1x64xf32, #tpu.memory_space<vmem>>, vector<1x1x64xf32>
    %358 = vector.shape_cast %357 : vector<1x1x64xf32> to vector<1x64xf32>
    %359 = vector.broadcast %358 : vector<1x64xf32> to vector<8x64xf32>
    %360 = arith.addf %356, %359 : vector<8x64xf32>
    %cst_167 = arith.constant 5.000000e-01 : f32
    %361 = vector.broadcast %cst_167 : f32 to vector<8x64xf32>
    %362 = arith.mulf %361, %360 : vector<8x64xf32>
    %cst_168 = arith.constant 4.471500e-02 : f32
    %363 = vector.broadcast %cst_168 : f32 to vector<8x64xf32>
    %364 = arith.mulf %363, %360 : vector<8x64xf32>
    %365 = arith.mulf %364, %360 : vector<8x64xf32>
    %366 = arith.mulf %365, %360 : vector<8x64xf32>
    %367 = arith.addf %360, %366 : vector<8x64xf32>
    %cst_169 = arith.constant 0.797884583 : f32
    %368 = vector.broadcast %cst_169 : f32 to vector<8x64xf32>
    %369 = arith.mulf %368, %367 : vector<8x64xf32>
    %370 = math.tanh %369 : vector<8x64xf32>
    %cst_170 = arith.constant 1.000000e+00 : f32
    %371 = vector.broadcast %cst_170 : f32 to vector<8x64xf32>
    %372 = arith.addf %371, %370 : vector<8x64xf32>
    %373 = arith.mulf %362, %372 : vector<8x64xf32>
    %c1_171 = arith.constant 1 : index
    %c0_172 = arith.constant 0 : index
    %c0_173 = arith.constant 0 : index
    %374 = vector.load %arg14[%c1_171, %c0_172, %c0_173] : memref<2x64x32xf32, #tpu.memory_space<vmem>>, vector<1x64x32xf32>
    %375 = vector.shape_cast %374 : vector<1x64x32xf32> to vector<64x32xf32>
    %cst_174 = arith.constant dense<0.000000e+00> : vector<8x32xf32>
    %376 = tpu.matmul %373, %375, %cst_174 {dimension_numbers = #tpu.dot_dimension_numbers<[1], [0], [0], [1], [0, 0, 1, 1], [], []>} : vector<8x64xf32>, vector<64x32xf32>, vector<8x32xf32> -> vector<8x32xf32>
    %c1_175 = arith.constant 1 : index
    %c0_176 = arith.constant 0 : index
    %c0_177 = arith.constant 0 : index
    %377 = vector.load %arg15[%c1_175, %c0_176, %c0_177] : memref<2x1x32xf32, #tpu.memory_space<vmem>>, vector<1x1x32xf32>
    %378 = vector.shape_cast %377 : vector<1x1x32xf32> to vector<1x32xf32>
    %379 = vector.broadcast %378 : vector<1x32xf32> to vector<8x32xf32>
    %380 = arith.addf %376, %379 : vector<8x32xf32>
    %381 = arith.addf %353, %380 : vector<8x32xf32>
    %c1_178 = arith.constant 1 : index
    %c0_179 = arith.constant 0 : index
    %c0_180 = arith.constant 0 : index
    %382 = vector.load %arg16[%c1_178, %c0_179, %c0_180] : memref<2x1x32xf32, #tpu.memory_space<vmem>>, vector<1x1x32xf32>
    %383 = vector.shape_cast %382 : vector<1x1x32xf32> to vector<1x32xf32>
    %c1_181 = arith.constant 1 : index
    %c0_182 = arith.constant 0 : index
    %c0_183 = arith.constant 0 : index
    %384 = vector.load %arg17[%c1_181, %c0_182, %c0_183] : memref<2x1x32xf32, #tpu.memory_space<vmem>>, vector<1x1x32xf32>
    %385 = vector.shape_cast %384 : vector<1x1x32xf32> to vector<1x32xf32>
    %cst_184 = arith.constant dense<0.000000e+00> : vector<8xf32>
    %386 = vector.multi_reduction <add>, %381, %cst_184 [1] : vector<8x32xf32> to vector<8xf32>
    %387 = vector.shape_cast %386 : vector<8xf32> to vector<8x1xf32>
    %cst_185 = arith.constant 3.200000e+01 : f32
    %388 = vector.broadcast %cst_185 : f32 to vector<8x1xf32>
    %389 = arith.divf %387, %388 : vector<8x1xf32>
    %390 = vector.broadcast %389 : vector<8x1xf32> to vector<8x32xf32>
    %391 = arith.subf %381, %390 : vector<8x32xf32>
    %392 = arith.mulf %391, %391 : vector<8x32xf32>
    %cst_186 = arith.constant dense<0.000000e+00> : vector<8xf32>
    %393 = vector.multi_reduction <add>, %392, %cst_186 [1] : vector<8x32xf32> to vector<8xf32>
    %394 = vector.shape_cast %393 : vector<8xf32> to vector<8x1xf32>
    %cst_187 = arith.constant 3.200000e+01 : f32
    %395 = vector.broadcast %cst_187 : f32 to vector<8x1xf32>
    %396 = arith.divf %394, %395 : vector<8x1xf32>
    %cst_188 = arith.constant 9.99999974E-6 : f32
    %397 = vector.broadcast %cst_188 : f32 to vector<8x1xf32>
    %398 = arith.addf %396, %397 : vector<8x1xf32>
    %399 = math.rsqrt %398 : vector<8x1xf32>
    %400 = vector.broadcast %399 : vector<8x1xf32> to vector<8x32xf32>
    %401 = arith.mulf %391, %400 : vector<8x32xf32>
    %402 = vector.broadcast %383 : vector<1x32xf32> to vector<8x32xf32>
    %403 = arith.mulf %401, %402 : vector<8x32xf32>
    %404 = vector.broadcast %385 : vector<1x32xf32> to vector<8x32xf32>
    %405 = arith.addf %403, %404 : vector<8x32xf32>
    %c0_189 = arith.constant 0 : index
    %c0_190 = arith.constant 0 : index
    %406 = vector.load %arg18[%c0_189, %c0_190] : memref<1x32xf32, #tpu.memory_space<vmem>>, vector<1x32xf32>
    %c0_191 = arith.constant 0 : index
    %c0_192 = arith.constant 0 : index
    %407 = vector.load %arg19[%c0_191, %c0_192] : memref<1x32xf32, #tpu.memory_space<vmem>>, vector<1x32xf32>
    %cst_193 = arith.constant dense<0.000000e+00> : vector<8xf32>
    %408 = vector.multi_reduction <add>, %405, %cst_193 [1] : vector<8x32xf32> to vector<8xf32>
    %409 = vector.shape_cast %408 : vector<8xf32> to vector<8x1xf32>
    %cst_194 = arith.constant 3.200000e+01 : f32
    %410 = vector.broadcast %cst_194 : f32 to vector<8x1xf32>
    %411 = arith.divf %409, %410 : vector<8x1xf32>
    %412 = vector.broadcast %411 : vector<8x1xf32> to vector<8x32xf32>
    %413 = arith.subf %405, %412 : vector<8x32xf32>
    %414 = arith.mulf %413, %413 : vector<8x32xf32>
    %cst_195 = arith.constant dense<0.000000e+00> : vector<8xf32>
    %415 = vector.multi_reduction <add>, %414, %cst_195 [1] : vector<8x32xf32> to vector<8xf32>
    %416 = vector.shape_cast %415 : vector<8xf32> to vector<8x1xf32>
    %cst_196 = arith.constant 3.200000e+01 : f32
    %417 = vector.broadcast %cst_196 : f32 to vector<8x1xf32>
    %418 = arith.divf %416, %417 : vector<8x1xf32>
    %cst_197 = arith.constant 9.99999974E-6 : f32
    %419 = vector.broadcast %cst_197 : f32 to vector<8x1xf32>
    %420 = arith.addf %418, %419 : vector<8x1xf32>
    %421 = math.rsqrt %420 : vector<8x1xf32>
    %422 = vector.broadcast %421 : vector<8x1xf32> to vector<8x32xf32>
    %423 = arith.mulf %413, %422 : vector<8x32xf32>
    %424 = vector.broadcast %406 : vector<1x32xf32> to vector<8x32xf32>
    %425 = arith.mulf %423, %424 : vector<8x32xf32>
    %426 = vector.broadcast %407 : vector<1x32xf32> to vector<8x32xf32>
    %427 = arith.addf %425, %426 : vector<8x32xf32>
    %c0_198 = arith.constant 0 : index
    %c0_199 = arith.constant 0 : index
    %428 = vector.load %arg20[%c0_198, %c0_199] : memref<1x32xf32, #tpu.memory_space<vmem>>, vector<1x32xf32>
    %c0_200 = arith.constant 0 : index
    %c0_201 = arith.constant 0 : index
    %429 = vector.load %arg21[%c0_200, %c0_201] : memref<1x32xf32, #tpu.memory_space<vmem>>, vector<1x32xf32>
    %cst_202 = arith.constant dense<0.000000e+00> : vector<8xf32>
    %430 = vector.multi_reduction <add>, %427, %cst_202 [1] : vector<8x32xf32> to vector<8xf32>
    %431 = vector.shape_cast %430 : vector<8xf32> to vector<8x1xf32>
    %cst_203 = arith.constant 3.200000e+01 : f32
    %432 = vector.broadcast %cst_203 : f32 to vector<8x1xf32>
    %433 = arith.divf %431, %432 : vector<8x1xf32>
    %434 = vector.broadcast %433 : vector<8x1xf32> to vector<8x32xf32>
    %435 = arith.subf %427, %434 : vector<8x32xf32>
    %436 = arith.mulf %435, %435 : vector<8x32xf32>
    %cst_204 = arith.constant dense<0.000000e+00> : vector<8xf32>
    %437 = vector.multi_reduction <add>, %436, %cst_204 [1] : vector<8x32xf32> to vector<8xf32>
    %438 = vector.shape_cast %437 : vector<8xf32> to vector<8x1xf32>
    %cst_205 = arith.constant 3.200000e+01 : f32
    %439 = vector.broadcast %cst_205 : f32 to vector<8x1xf32>
    %440 = arith.divf %438, %439 : vector<8x1xf32>
    %cst_206 = arith.constant 9.99999974E-6 : f32
    %441 = vector.broadcast %cst_206 : f32 to vector<8x1xf32>
    %442 = arith.addf %440, %441 : vector<8x1xf32>
    %443 = math.rsqrt %442 : vector<8x1xf32>
    %444 = vector.broadcast %443 : vector<8x1xf32> to vector<8x32xf32>
    %445 = arith.mulf %435, %444 : vector<8x32xf32>
    %446 = vector.broadcast %428 : vector<1x32xf32> to vector<8x32xf32>
    %447 = arith.mulf %445, %446 : vector<8x32xf32>
    %448 = vector.broadcast %429 : vector<1x32xf32> to vector<8x32xf32>
    %449 = arith.addf %447, %448 : vector<8x32xf32>
    %c0_207 = arith.constant 0 : index
    %c0_208 = arith.constant 0 : index
    %450 = vector.load %arg22[%c0_207, %c0_208] : memref<32x8xf32, #tpu.memory_space<vmem>>, vector<32x8xf32>
    %cst_209 = arith.constant dense<0.000000e+00> : vector<8x8xf32>
    %451 = tpu.matmul %449, %450, %cst_209 {dimension_numbers = #tpu.dot_dimension_numbers<[1], [0], [0], [1], [0, 0, 1, 1], [], []>} : vector<8x32xf32>, vector<32x8xf32>, vector<8x8xf32> -> vector<8x8xf32>
    %c0_210 = arith.constant 0 : index
    %c0_211 = arith.constant 0 : index
    %452 = vector.load %arg23[%c0_210, %c0_211] : memref<1x8xf32, #tpu.memory_space<vmem>>, vector<1x8xf32>
    %453 = vector.broadcast %452 : vector<1x8xf32> to vector<8x8xf32>
    %454 = arith.addf %451, %453 : vector<8x8xf32>
    %cst_212 = arith.constant 5.000000e-01 : f32
    %455 = vector.broadcast %cst_212 : f32 to vector<8x8xf32>
    %456 = arith.mulf %455, %454 : vector<8x8xf32>
    %cst_213 = arith.constant 4.471500e-02 : f32
    %457 = vector.broadcast %cst_213 : f32 to vector<8x8xf32>
    %458 = arith.mulf %457, %454 : vector<8x8xf32>
    %459 = arith.mulf %458, %454 : vector<8x8xf32>
    %460 = arith.mulf %459, %454 : vector<8x8xf32>
    %461 = arith.addf %454, %460 : vector<8x8xf32>
    %cst_214 = arith.constant 0.797884583 : f32
    %462 = vector.broadcast %cst_214 : f32 to vector<8x8xf32>
    %463 = arith.mulf %462, %461 : vector<8x8xf32>
    %464 = math.tanh %463 : vector<8x8xf32>
    %cst_215 = arith.constant 1.000000e+00 : f32
    %465 = vector.broadcast %cst_215 : f32 to vector<8x8xf32>
    %466 = arith.addf %465, %464 : vector<8x8xf32>
    %467 = arith.mulf %456, %466 : vector<8x8xf32>
    %c0_216 = arith.constant 0 : index
    %c0_217 = arith.constant 0 : index
    %468 = vector.load %arg24[%c0_216, %c0_217] : memref<8x24xf32, #tpu.memory_space<vmem>>, vector<8x24xf32>
    %cst_218 = arith.constant dense<0.000000e+00> : vector<8x24xf32>
    %469 = tpu.matmul %467, %468, %cst_218 {dimension_numbers = #tpu.dot_dimension_numbers<[1], [0], [0], [1], [0, 0, 1, 1], [], []>} : vector<8x8xf32>, vector<8x24xf32>, vector<8x24xf32> -> vector<8x24xf32>
    %c0_219 = arith.constant 0 : index
    %c0_220 = arith.constant 0 : index
    %470 = vector.load %arg25[%c0_219, %c0_220] : memref<1x24xf32, #tpu.memory_space<vmem>>, vector<1x24xf32>
    %471 = vector.broadcast %470 : vector<1x24xf32> to vector<8x24xf32>
    %472 = arith.addf %469, %471 : vector<8x24xf32>
    %c0_221 = arith.constant 0 : index
    %c0_222 = arith.constant 0 : index
    %c0_223 = arith.constant 0 : index
    %473 = vector.load %arg26[%c0_221, %c0_222, %c0_223] : memref<1x8x24xf32, #tpu.memory_space<vmem>>, vector<1x8x24xf32>
    %474 = vector.shape_cast %473 : vector<1x8x24xf32> to vector<8x24xf32>
    %475 = vector.shape_cast %472 : vector<8x24xf32> to vector<1x8x24xf32>
    tpu.vector_store %arg26[%c0_221, %c0_222, %c0_223], %475 {strides = array<i32>} : memref<1x8x24xf32, #tpu.memory_space<vmem>>, vector<1x8x24xf32>,
    return
  }
  func.func @transform_0(%arg0: i32) -> (i32, i32, i32) {
    %c0_i32 = arith.constant 0 : i32
    %c0_i32_0 = arith.constant 0 : i32
    %c0_i32_1 = arith.constant 0 : i32
    return %arg0, %c0_i32, %c0_i32_0 : i32, i32, i32
  }
  func.func @transform_1(%arg0: i32) -> (i32, i32) {
    %c0_i32 = arith.constant 0 : i32
    %c0_i32_0 = arith.constant 0 : i32
    %c0_i32_1 = arith.constant 0 : i32
    return %c0_i32, %c0_i32_0 : i32, i32
  }
  func.func @transform_2(%arg0: i32) -> (i32, i32) {
    %c0_i32 = arith.constant 0 : i32
    %c0_i32_0 = arith.constant 0 : i32
    %c0_i32_1 = arith.constant 0 : i32
    return %c0_i32, %c0_i32_0 : i32, i32
  }
  func.func @transform_3(%arg0: i32) -> (i32, i32, i32) {
    %c0_i32 = arith.constant 0 : i32
    %c0_i32_0 = arith.constant 0 : i32
    %c0_i32_1 = arith.constant 0 : i32
    %c0_i32_2 = arith.constant 0 : i32
    return %c0_i32, %c0_i32_0, %c0_i32_1 : i32, i32, i32
  }
  func.func @transform_4(%arg0: i32) -> (i32, i32, i32) {
    %c0_i32 = arith.constant 0 : i32
    %c0_i32_0 = arith.constant 0 : i32
    %c0_i32_1 = arith.constant 0 : i32
    %c0_i32_2 = arith.constant 0 : i32
    return %c0_i32, %c0_i32_0, %c0_i32_1 : i32, i32, i32
  }
  func.func @transform_5(%arg0: i32) -> (i32, i32, i32) {
    %c0_i32 = arith.constant 0 : i32
    %c0_i32_0 = arith.constant 0 : i32
    %c0_i32_1 = arith.constant 0 : i32
    %c0_i32_2 = arith.constant 0 : i32
    return %c0_i32, %c0_i32_0, %c0_i32_1 : i32, i32, i32
  }
  func.func @transform_6(%arg0: i32) -> (i32, i32, i32) {
    %c0_i32 = arith.constant 0 : i32
    %c0_i32_0 = arith.constant 0 : i32
    %c0_i32_1 = arith.constant 0 : i32
    %c0_i32_2 = arith.constant 0 : i32
    return %c0_i32, %c0_i32_0, %c0_i32_1 : i32, i32, i32
  }
  func.func @transform_7(%arg0: i32) -> (i32, i32, i32) {
    %c0_i32 = arith.constant 0 : i32
    %c0_i32_0 = arith.constant 0 : i32
    %c0_i32_1 = arith.constant 0 : i32
    %c0_i32_2 = arith.constant 0 : i32
    return %c0_i32, %c0_i32_0, %c0_i32_1 : i32, i32, i32
  }
  func.func @transform_8(%arg0: i32) -> (i32, i32, i32) {
    %c0_i32 = arith.constant 0 : i32
    %c0_i32_0 = arith.constant 0 : i32
    %c0_i32_1 = arith.constant 0 : i32
    %c0_i32_2 = arith.constant 0 : i32
    return %c0_i32, %c0_i32_0, %c0_i32_1 : i32, i32, i32
  }
  func.func @transform_9(%arg0: i32) -> (i32, i32, i32) {
    %c0_i32 = arith.constant 0 : i32
    %c0_i32_0 = arith.constant 0 : i32
    %c0_i32_1 = arith.constant 0 : i32
    %c0_i32_2 = arith.constant 0 : i32
    return %c0_i32, %c0_i32_0, %c0_i32_1 : i32, i32, i32
  }
  func.func @transform_10(%arg0: i32) -> (i32, i32, i32) {
    %c0_i32 = arith.constant 0 : i32
    %c0_i32_0 = arith.constant 0 : i32
    %c0_i32_1 = arith.constant 0 : i32
    %c0_i32_2 = arith.constant 0 : i32
    return %c0_i32, %c0_i32_0, %c0_i32_1 : i32, i32, i32
  }
  func.func @transform_11(%arg0: i32) -> (i32, i32, i32) {
    %c0_i32 = arith.constant 0 : i32
    %c0_i32_0 = arith.constant 0 : i32
    %c0_i32_1 = arith.constant 0 : i32
    %c0_i32_2 = arith.constant 0 : i32
    return %c0_i32, %c0_i32_0, %c0_i32_1 : i32, i32, i32
  }
  func.func @transform_12(%arg0: i32) -> (i32, i32, i32) {
    %c0_i32 = arith.constant 0 : i32
    %c0_i32_0 = arith.constant 0 : i32
    %c0_i32_1 = arith.constant 0 : i32
    %c0_i32_2 = arith.constant 0 : i32
    return %c0_i32, %c0_i32_0, %c0_i32_1 : i32, i32, i32
  }
  func.func @transform_13(%arg0: i32) -> (i32, i32, i32) {
    %c0_i32 = arith.constant 0 : i32
    %c0_i32_0 = arith.constant 0 : i32
    %c0_i32_1 = arith.constant 0 : i32
    %c0_i32_2 = arith.constant 0 : i32
    return %c0_i32, %c0_i32_0, %c0_i32_1 : i32, i32, i32
  }
  func.func @transform_14(%arg0: i32) -> (i32, i32, i32) {
    %c0_i32 = arith.constant 0 : i32
    %c0_i32_0 = arith.constant 0 : i32
    %c0_i32_1 = arith.constant 0 : i32
    %c0_i32_2 = arith.constant 0 : i32
    return %c0_i32, %c0_i32_0, %c0_i32_1 : i32, i32, i32
  }
  func.func @transform_15(%arg0: i32) -> (i32, i32, i32) {
    %c0_i32 = arith.constant 0 : i32
    %c0_i32_0 = arith.constant 0 : i32
    %c0_i32_1 = arith.constant 0 : i32
    %c0_i32_2 = arith.constant 0 : i32
    return %c0_i32, %c0_i32_0, %c0_i32_1 : i32, i32, i32
  }
  func.func @transform_16(%arg0: i32) -> (i32, i32, i32) {
    %c0_i32 = arith.constant 0 : i32
    %c0_i32_0 = arith.constant 0 : i32
    %c0_i32_1 = arith.constant 0 : i32
    %c0_i32_2 = arith.constant 0 : i32
    return %c0_i32, %c0_i32_0, %c0_i32_1 : i32, i32, i32
  }
  func.func @transform_17(%arg0: i32) -> (i32, i32) {
    %c0_i32 = arith.constant 0 : i32
    %c0_i32_0 = arith.constant 0 : i32
    %c0_i32_1 = arith.constant 0 : i32
    return %c0_i32, %c0_i32_0 : i32, i32
  }
  func.func @transform_18(%arg0: i32) -> (i32, i32) {
    %c0_i32 = arith.constant 0 : i32
    %c0_i32_0 = arith.constant 0 : i32
    %c0_i32_1 = arith.constant 0 : i32
    return %c0_i32, %c0_i32_0 : i32, i32
  }
  func.func @transform_19(%arg0: i32) -> (i32, i32) {
    %c0_i32 = arith.constant 0 : i32
    %c0_i32_0 = arith.constant 0 : i32
    %c0_i32_1 = arith.constant 0 : i32
    return %c0_i32, %c0_i32_0 : i32, i32
  }
  func.func @transform_20(%arg0: i32) -> (i32, i32) {
    %c0_i32 = arith.constant 0 : i32
    %c0_i32_0 = arith.constant 0 : i32
    %c0_i32_1 = arith.constant 0 : i32
    return %c0_i32, %c0_i32_0 : i32, i32
  }
  func.func @transform_21(%arg0: i32) -> (i32, i32) {
    %c0_i32 = arith.constant 0 : i32
    %c0_i32_0 = arith.constant 0 : i32
    %c0_i32_1 = arith.constant 0 : i32
    return %c0_i32, %c0_i32_0 : i32, i32
  }
  func.func @transform_22(%arg0: i32) -> (i32, i32) {
    %c0_i32 = arith.constant 0 : i32
    %c0_i32_0 = arith.constant 0 : i32
    %c0_i32_1 = arith.constant 0 : i32
    return %c0_i32, %c0_i32_0 : i32, i32
  }
  func.func @transform_23(%arg0: i32) -> (i32, i32) {
    %c0_i32 = arith.constant 0 : i32
    %c0_i32_0 = arith.constant 0 : i32
    %c0_i32_1 = arith.constant 0 : i32
    return %c0_i32, %c0_i32_0 : i32, i32
  }
  func.func @transform_24(%arg0: i32) -> (i32, i32) {
    %c0_i32 = arith.constant 0 : i32
    %c0_i32_0 = arith.constant 0 : i32
    %c0_i32_1 = arith.constant 0 : i32
    return %c0_i32, %c0_i32_0 : i32, i32
  }
  func.func @transform_25(%arg0: i32) -> (i32, i32, i32) {
    %c0_i32 = arith.constant 0 : i32
    %c0_i32_0 = arith.constant 0 : i32
    %c0_i32_1 = arith.constant 0 : i32
    return %arg0, %c0_i32, %c0_i32_0 : i32, i32, i32
  }
}

</mosaic_0001>

<llo_original>
// kernel: tpu_custom_call.1
$region0: #{tpu_custom_call.1}
  #allocation0 [shape = 'u32[]', space=smem, size = 0x4, offset = 0x4, fixed_abs, tag = 'smem constant byte address 0x4 - core index']
  #allocation1 [shape = 'u32[144,128]{1,0:T(1,128)}', space=vmem, size = 0x12000, scoped, tag = 'internal scratch']
  %s0 = inlined_call_operand.vmem [shape: f32[2,8,12], index: 0, kind: input, shape index: {}]
  %s1 = inlined_call_operand.vmem [shape: f32[12,32], index: 1, kind: input, shape index: {}]
  %s2 = inlined_call_operand.hbm [shape: f32[1,32], index: 2, kind: input, shape index: {}]
  %s3 = inlined_call_operand.vmem [shape: f32[3,32,32], index: 3, kind: input, shape index: {}]
  %s4 = inlined_call_operand.vmem [shape: f32[3,1,32], index: 4, kind: input, shape index: {}]
  %s5 = inlined_call_operand.vmem [shape: f32[2,32,96], index: 5, kind: input, shape index: {}]
  %s6 = inlined_call_operand.vmem [shape: f32[2,1,96], index: 6, kind: input, shape index: {}]
  %s7 = inlined_call_operand.hbm [shape: f32[2,32,32], index: 7, kind: input, shape index: {}]
  %s8 = inlined_call_operand.vmem [shape: f32[2,1,32], index: 8, kind: input, shape index: {}]
  %s9 = inlined_call_operand.vmem [shape: f32[2,1,32], index: 9, kind: input, shape index: {}]
  %s10 = inlined_call_operand.vmem [shape: f32[2,1,32], index: 10, kind: input, shape index: {}]
  %s11 = inlined_call_operand.hbm [shape: f32[2,32,64], index: 11, kind: input, shape index: {}]
  %s12 = inlined_call_operand.vmem [shape: f32[2,1,64], index: 12, kind: input, shape index: {}]
  %s13 = inlined_call_operand.vmem [shape: f32[2,64,32], index: 13, kind: input, shape index: {}]
  %s14 = inlined_call_operand.hbm [shape: f32[2,1,32], index: 14, kind: input, shape index: {}]
  %s15 = inlined_call_operand.vmem [shape: f32[2,1,32], index: 15, kind: input, shape index: {}]
  %s16 = inlined_call_operand.vmem [shape: f32[2,1,32], index: 16, kind: input, shape index: {}]
  %s17 = inlined_call_operand.vmem [shape: f32[1,32], index: 17, kind: input, shape index: {}]
  %s18 = inlined_call_operand.vmem [shape: f32[1,32], index: 18, kind: input, shape index: {}]
  %s19 = inlined_call_operand.vmem [shape: f32[1,32], index: 19, kind: input, shape index: {}]
  %s20 = inlined_call_operand.vmem [shape: f32[1,32], index: 20, kind: input, shape index: {}]
  %s21 = inlined_call_operand.vmem [shape: f32[32,8], index: 21, kind: input, shape index: {}]
  %s22 = inlined_call_operand.vmem [shape: f32[1,8], index: 22, kind: input, shape index: {}]
  %s23 = inlined_call_operand.vmem [shape: f32[8,24], index: 23, kind: input, shape index: {}]
  %s24 = inlined_call_operand.vmem [shape: f32[1,24], index: 24, kind: input, shape index: {}]
  %s25 = inlined_call_operand.hbm [shape: f32[2,8,24], index: 25, kind: output, shape index: {}]
  %s26 = sld [smem:[#allocation0]]
  $region149: #{tpu_custom_call.1} parent=0
    _
  %s28 = ssub.s32 1, %s26
  %s29 = scalar_select 0, %s28, %s26
  $region1: #{tpu_custom_call.1} parent=0
    #allocation2 [shape = 'u8[512]{0}', space=vmem, size = 0x400, scoped, tag = 'input window, operand 2, single buffered']
    #allocation3 [shape = 's32[2]{0}', space=sflag, size = 0x8, scoped, tag = 'scoped memory for tpu_custom_call.1']
    #allocation4 [shape = 's32[2]{0}', space=sflag, size = 0x8, scoped, tag = 'scoped memory for tpu_custom_call.1']
    #allocation5 [shape = 'u8[32768]{0}', space=vmem, size = 0x8000, scoped, tag = 'input window, operand 7, single buffered']
    #allocation6 [shape = 's32[1]{0}', space=sflag, size = 0x4, scoped, tag = 'scoped memory for tpu_custom_call.1']
    #allocation7 [shape = 'u8[32768]{0}', space=vmem, size = 0x8000, scoped, tag = 'input window, operand 11, single buffered']
    #allocation8 [shape = 'u8[1024]{0}', space=vmem, size = 0x400, scoped, tag = 'input window, operand 14, single buffered']
    #allocation9 [shape = 's32[1]{0}', space=sflag, size = 0x4, scoped, tag = 'scoped memory for tpu_custom_call.1']
    #allocation10 [shape = 'u8[8192]{0}', space=vmem, size = 0x2000, scoped, tag = 'output window, operand 0']
    %30 = vsyncpa [#allocation3], 0
    %31 = vsyncpa [#allocation6], 0
    %32 = vsyncpa [#allocation9], 0
    %33 = vsyncpa [#allocation4], 0
    %s34 = scalar_lea.sflag [#allocation4], 1
    %35 = vsyncpa %s34, 0
    loop: start=0, step=1, limit=4
    $region2: #{tpu_custom_call.1} parent=1 // loop_pre_header
      _
    $region3: #{tpu_custom_call.1} parent=1 // loop_header
      %s37 = sphi 0, %s41
      %p38 = scmp.ge.s32.totalorder %s37, 4
      %s47 = sphi 0, %s49
      %s50 = sphi 0, %s47
      %s51 = sphi 0, %s50
      %s67 = sphi 0, %s51
      %s71 = sphi 0, %s71
      %s73 = sphi 0, %s71
      %s74 = sphi 0, %s73
      %s88 = sphi 0, %s74
      %s92 = sphi 0, %s92
      %s94 = sphi 0, %s92
      %s95 = sphi 0, %s94
      %s109 = sphi 0, %s95
      %s113 = sphi 0, %s113
      %s115 = sphi 0, %s113
      %s116 = sphi 0, %s115
      %s130 = sphi 0, %s116
      %s134 = sphi 0, %s134
      %s136 = sphi 0, %s134
      %s137 = sphi 0, %s136
      %s151 = sphi 0, %s137
      %s155 = sphi 0, %s155
      %s157 = sphi 0, %s155
      %s158 = sphi 0, %s157
      %s172 = sphi 0, %s158
      %s176 = sphi 0, %s176
      %s178 = sphi 0, %s176
      %s179 = sphi 0, %s178
      %s193 = sphi 0, %s179
      %s197 = sphi 0, %s197
      %s199 = sphi 0, %s197
      %s200 = sphi 0, %s199
      %s214 = sphi 0, %s200
      %s218 = sphi 0, %s218
      %s220 = sphi 0, %s218
      %s221 = sphi 0, %s220
      %s235 = sphi 0, %s221
      %s239 = sphi 0, %s239
      %s241 = sphi 0, %s239
      %s242 = sphi 0, %s241
      %s256 = sphi 0, %s242
      %s260 = sphi 0, %s260
      %s262 = sphi 0, %s260
      %s263 = sphi 0, %s262
      %s277 = sphi 0, %s263
      %s281 = sphi 0, %s281
      %s283 = sphi 0, %s281
      %s284 = sphi 0, %s283
      %s298 = sphi 0, %s284
      %s302 = sphi 0, %s302
      %s304 = sphi 0, %s302
      %s305 = sphi 0, %s304
      %s319 = sphi 0, %s305
      %s323 = sphi 0, %s323
      %s325 = sphi 0, %s323
      %s326 = sphi 0, %s325
      %s340 = sphi 0, %s326
      %s344 = sphi 0, %s344
      %s346 = sphi 0, %s344
      %s347 = sphi 0, %s346
      %s361 = sphi 0, %s347
      %s365 = sphi 0, %s365
      %s367 = sphi 0, %s365
      %s368 = sphi 0, %s367
      %s382 = sphi 0, %s368
      %s386 = sphi 0, %s386
      %s388 = sphi 0, %s386
      %s389 = sphi 0, %s388
      %s403 = sphi 0, %s389
      %s407 = sphi 0, %s407
      %s409 = sphi 0, %s407
      %s410 = sphi 0, %s409
      %s424 = sphi 0, %s410
      %s428 = sphi 0, %s428
      %s430 = sphi 0, %s428
      %s431 = sphi 0, %s430
      %s445 = sphi 0, %s431
      %s449 = sphi 0, %s449
      %s451 = sphi 0, %s449
      %s452 = sphi 0, %s451
      %s466 = sphi 0, %s452
      %s470 = sphi 0, %s470
      %s472 = sphi 0, %s470
      %s473 = sphi 0, %s472
      %s487 = sphi 0, %s473
      %s491 = sphi 0, %s491
      %s493 = sphi 0, %s491
      %s494 = sphi 0, %s493
      %s508 = sphi 0, %s494
      %s512 = sphi 0, %s512
      %s514 = sphi 0, %s512
      %s515 = sphi 0, %s514
      %s529 = sphi 0, %s515
      %s533 = sphi 0, %s533
      %s535 = sphi 0, %s533
      %s536 = sphi 0, %s535
      %s550 = sphi 0, %s536
      %s554 = sphi 0, %s554
      %s556 = sphi 0, %s554
      %s557 = sphi 0, %s556
      %s571 = sphi 0, %s557
      %s577 = sphi 0, %s579
      %s580 = sphi 0, %s577
      %s581 = sphi 0, %s580
      %s597 = sphi 0, %s581
    $region4: #{tpu_custom_call.1} parent=1 // loop_header_branch
      %40 = sbr.rel (%p38) target = $region8
    $region5: #{tpu_custom_call.1} parent=1 // loop_body
      %s42 = ssub.s32 %s37, 1
      %s43 = ssub.s32 %s37, 2
      %s44 = sadd.s32 %s37, 1
      %s45 = ssub.s32 %s37, %s44
      %p46 = scmp.eq.s32.totalorder %s45, 0
      %s48 = sadd.s32 %s47, 1
      %s49 = scalar_select %p46, %s47, %s48
      %p52 = pneg %p46
      %p53 = scmp.eq.s32.totalorder %s37, 1
      %p54 = por %p52, %p53
      %p55 = scmp.ne.s32.totalorder %s47, %s50
      %p56 = scmp.eq.s32.totalorder %s37, 0
      %p57 = por %p55, %p56
      %p58 = scmp.ne.s32.totalorder %s47, %s50
      %p59 = scmp.eq.s32.totalorder %s42, 1
      %p60 = por %p58, %p59
      %p61 = scmp.ne.s32.totalorder %s50, %s51
      %p62 = scmp.eq.s32.totalorder %s42, 0
      %p63 = por %p61, %p62
      %p64 = scmp.ne.s32.totalorder %s50, %s51
      %p65 = scmp.eq.s32.totalorder %s43, 1
      %p66 = por %p64, %p65
      %p68 = scmp.ne.s32.totalorder %s51, %s67
      %p69 = scmp.eq.s32.totalorder %s43, 0
      %p70 = por %p68, %p69
      %s72 = sadd.s32 %s71, 1
      %p75 = scmp.eq.s32.totalorder %s37, 1
      %p76 = scmp.ne.s32.totalorder %s71, %s73
      %p77 = scmp.eq.s32.totalorder %s37, 0
      %p78 = por %p76, %p77
      %p79 = scmp.ne.s32.totalorder %s71, %s73
      %p80 = scmp.eq.s32.totalorder %s42, 1
      %p81 = por %p79, %p80
      %p82 = scmp.ne.s32.totalorder %s73, %s74
      %p83 = scmp.eq.s32.totalorder %s42, 0
      %p84 = por %p82, %p83
      %p85 = scmp.ne.s32.totalorder %s73, %s74
      %p86 = scmp.eq.s32.totalorder %s43, 1
      %p87 = por %p85, %p86
      %p89 = scmp.ne.s32.totalorder %s74, %s88
      %p90 = scmp.eq.s32.totalorder %s43, 0
      %p91 = por %p89, %p90
      %s93 = sadd.s32 %s92, 1
      %p96 = scmp.eq.s32.totalorder %s37, 1
      %p97 = scmp.ne.s32.totalorder %s92, %s94
      %p98 = scmp.eq.s32.totalorder %s37, 0
      %p99 = por %p97, %p98
      %p100 = scmp.ne.s32.totalorder %s92, %s94
      %p101 = scmp.eq.s32.totalorder %s42, 1
      %p102 = por %p100, %p101
      %p103 = scmp.ne.s32.totalorder %s94, %s95
      %p104 = scmp.eq.s32.totalorder %s42, 0
      %p105 = por %p103, %p104
      %p106 = scmp.ne.s32.totalorder %s94, %s95
      %p107 = scmp.eq.s32.totalorder %s43, 1
      %p108 = por %p106, %p107
      %p110 = scmp.ne.s32.totalorder %s95, %s109
      %p111 = scmp.eq.s32.totalorder %s43, 0
      %p112 = por %p110, %p111
      %s114 = sadd.s32 %s113, 1
      %p117 = scmp.eq.s32.totalorder %s37, 1
      %p118 = scmp.ne.s32.totalorder %s113, %s115
      %p119 = scmp.eq.s32.totalorder %s37, 0
      %p120 = por %p118, %p119
      %p121 = scmp.ne.s32.totalorder %s113, %s115
      %p122 = scmp.eq.s32.totalorder %s42, 1
      %p123 = por %p121, %p122
      %p124 = scmp.ne.s32.totalorder %s115, %s116
      %p125 = scmp.eq.s32.totalorder %s42, 0
      %p126 = por %p124, %p125
      %p127 = scmp.ne.s32.totalorder %s115, %s116
      %p128 = scmp.eq.s32.totalorder %s43, 1
      %p129 = por %p127, %p128
      %p131 = scmp.ne.s32.totalorder %s116, %s130
      %p132 = scmp.eq.s32.totalorder %s43, 0
      %p133 = por %p131, %p132
      %s135 = sadd.s32 %s134, 1
      %p138 = scmp.eq.s32.totalorder %s37, 1
      %p139 = scmp.ne.s32.totalorder %s134, %s136
      %p140 = scmp.eq.s32.totalorder %s37, 0
      %p141 = por %p139, %p140
      %p142 = scmp.ne.s32.totalorder %s134, %s136
      %p143 = scmp.eq.s32.totalorder %s42, 1
      %p144 = por %p142, %p143
      %p145 = scmp.ne.s32.totalorder %s136, %s137
      %p146 = scmp.eq.s32.totalorder %s42, 0
      %p147 = por %p145, %p146
      %p148 = scmp.ne.s32.totalorder %s136, %s137
      %p149 = scmp.eq.s32.totalorder %s43, 1
      %p150 = por %p148, %p149
      %p152 = scmp.ne.s32.totalorder %s137, %s151
      %p153 = scmp.eq.s32.totalorder %s43, 0
      %p154 = por %p152, %p153
      %s156 = sadd.s32 %s155, 1
      %p159 = scmp.eq.s32.totalorder %s37, 1
      %p160 = scmp.ne.s32.totalorder %s155, %s157
      %p161 = scmp.eq.s32.totalorder %s37, 0
      %p162 = por %p160, %p161
      %p163 = scmp.ne.s32.totalorder %s155, %s157
      %p164 = scmp.eq.s32.totalorder %s42, 1
      %p165 = por %p163, %p164
      %p166 = scmp.ne.s32.totalorder %s157, %s158
      %p167 = scmp.eq.s32.totalorder %s42, 0
      %p168 = por %p166, %p167
      %p169 = scmp.ne.s32.totalorder %s157, %s158
      %p170 = scmp.eq.s32.totalorder %s43, 1
      %p171 = por %p169, %p170
      %p173 = scmp.ne.s32.totalorder %s158, %s172
      %p174 = scmp.eq.s32.totalorder %s43, 0
      %p175 = por %p173, %p174
      %s177 = sadd.s32 %s176, 1
      %p180 = scmp.eq.s32.totalorder %s37, 1
      %p181 = scmp.ne.s32.totalorder %s176, %s178
      %p182 = scmp.eq.s32.totalorder %s37, 0
      %p183 = por %p181, %p182
      %p184 = scmp.ne.s32.totalorder %s176, %s178
      %p185 = scmp.eq.s32.totalorder %s42, 1
      %p186 = por %p184, %p185
      %p187 = scmp.ne.s32.totalorder %s178, %s179
      %p188 = scmp.eq.s32.totalorder %s42, 0
      %p189 = por %p187, %p188
      %p190 = scmp.ne.s32.totalorder %s178, %s179
      %p191 = scmp.eq.s32.totalorder %s43, 1
      %p192 = por %p190, %p191
      %p194 = scmp.ne.s32.totalorder %s179, %s193
      %p195 = scmp.eq.s32.totalorder %s43, 0
      %p196 = por %p194, %p195
      %s198 = sadd.s32 %s197, 1
      %p201 = scmp.eq.s32.totalorder %s37, 1
      %p202 = scmp.ne.s32.totalorder %s197, %s199
      %p203 = scmp.eq.s32.totalorder %s37, 0
      %p204 = por %p202, %p203
      %p205 = scmp.ne.s32.totalorder %s197, %s199
      %p206 = scmp.eq.s32.totalorder %s42, 1
      %p207 = por %p205, %p206
      %p208 = scmp.ne.s32.totalorder %s199, %s200
      %p209 = scmp.eq.s32.totalorder %s42, 0
      %p210 = por %p208, %p209
      %p211 = scmp.ne.s32.totalorder %s199, %s200
      %p212 = scmp.eq.s32.totalorder %s43, 1
      %p213 = por %p211, %p212
      %p215 = scmp.ne.s32.totalorder %s200, %s214
      %p216 = scmp.eq.s32.totalorder %s43, 0
      %p217 = por %p215, %p216
      %s219 = sadd.s32 %s218, 1
      %p222 = scmp.eq.s32.totalorder %s37, 1
      %p223 = scmp.ne.s32.totalorder %s218, %s220
      %p224 = scmp.eq.s32.totalorder %s37, 0
      %p225 = por %p223, %p224
      %p226 = scmp.ne.s32.totalorder %s218, %s220
      %p227 = scmp.eq.s32.totalorder %s42, 1
      %p228 = por %p226, %p227
      %p229 = scmp.ne.s32.totalorder %s220, %s221
      %p230 = scmp.eq.s32.totalorder %s42, 0
      %p231 = por %p229, %p230
      %p232 = scmp.ne.s32.totalorder %s220, %s221
      %p233 = scmp.eq.s32.totalorder %s43, 1
      %p234 = por %p232, %p233
      %p236 = scmp.ne.s32.totalorder %s221, %s235
      %p237 = scmp.eq.s32.totalorder %s43, 0
      %p238 = por %p236, %p237
      %s240 = sadd.s32 %s239, 1
      %p243 = scmp.eq.s32.totalorder %s37, 1
      %p244 = scmp.ne.s32.totalorder %s239, %s241
      %p245 = scmp.eq.s32.totalorder %s37, 0
      %p246 = por %p244, %p245
      %p247 = scmp.ne.s32.totalorder %s239, %s241
      %p248 = scmp.eq.s32.totalorder %s42, 1
      %p249 = por %p247, %p248
      %p250 = scmp.ne.s32.totalorder %s241, %s242
      %p251 = scmp.eq.s32.totalorder %s42, 0
      %p252 = por %p250, %p251
      %p253 = scmp.ne.s32.totalorder %s241, %s242
      %p254 = scmp.eq.s32.totalorder %s43, 1
      %p255 = por %p253, %p254
      %p257 = scmp.ne.s32.totalorder %s242, %s256
      %p258 = scmp.eq.s32.totalorder %s43, 0
      %p259 = por %p257, %p258
      %s261 = sadd.s32 %s260, 1
      %p264 = scmp.eq.s32.totalorder %s37, 1
      %p265 = scmp.ne.s32.totalorder %s260, %s262
      %p266 = scmp.eq.s32.totalorder %s37, 0
      %p267 = por %p265, %p266
      %p268 = scmp.ne.s32.totalorder %s260, %s262
      %p269 = scmp.eq.s32.totalorder %s42, 1
      %p270 = por %p268, %p269
      %p271 = scmp.ne.s32.totalorder %s262, %s263
      %p272 = scmp.eq.s32.totalorder %s42, 0
      %p273 = por %p271, %p272
      %p274 = scmp.ne.s32.totalorder %s262, %s263
      %p275 = scmp.eq.s32.totalorder %s43, 1
      %p276 = por %p274, %p275
      %p278 = scmp.ne.s32.totalorder %s263, %s277
      %p279 = scmp.eq.s32.totalorder %s43, 0
      %p280 = por %p278, %p279
      %s282 = sadd.s32 %s281, 1
      %p285 = scmp.eq.s32.totalorder %s37, 1
      %p286 = scmp.ne.s32.totalorder %s281, %s283
      %p287 = scmp.eq.s32.totalorder %s37, 0
      %p288 = por %p286, %p287
      %p289 = scmp.ne.s32.totalorder %s281, %s283
      %p290 = scmp.eq.s32.totalorder %s42, 1
      %p291 = por %p289, %p290
      %p292 = scmp.ne.s32.totalorder %s283, %s284
      %p293 = scmp.eq.s32.totalorder %s42, 0
      %p294 = por %p292, %p293
      %p295 = scmp.ne.s32.totalorder %s283, %s284
      %p296 = scmp.eq.s32.totalorder %s43, 1
      %p297 = por %p295, %p296
      %p299 = scmp.ne.s32.totalorder %s284, %s298
      %p300 = scmp.eq.s32.totalorder %s43, 0
      %p301 = por %p299, %p300
      %s303 = sadd.s32 %s302, 1
      %p306 = scmp.eq.s32.totalorder %s37, 1
      %p307 = scmp.ne.s32.totalorder %s302, %s304
      %p308 = scmp.eq.s32.totalorder %s37, 0
      %p309 = por %p307, %p308
      %p310 = scmp.ne.s32.totalorder %s302, %s304
      %p311 = scmp.eq.s32.totalorder %s42, 1
      %p312 = por %p310, %p311
      %p313 = scmp.ne.s32.totalorder %s304, %s305
      %p314 = scmp.eq.s32.totalorder %s42, 0
      %p315 = por %p313, %p314
      %p316 = scmp.ne.s32.totalorder %s304, %s305
      %p317 = scmp.eq.s32.totalorder %s43, 1
      %p318 = por %p316, %p317
      %p320 = scmp.ne.s32.totalorder %s305, %s319
      %p321 = scmp.eq.s32.totalorder %s43, 0
      %p322 = por %p320, %p321
      %s324 = sadd.s32 %s323, 1
      %p327 = scmp.eq.s32.totalorder %s37, 1
      %p328 = scmp.ne.s32.totalorder %s323, %s325
      %p329 = scmp.eq.s32.totalorder %s37, 0
      %p330 = por %p328, %p329
      %p331 = scmp.ne.s32.totalorder %s323, %s325
      %p332 = scmp.eq.s32.totalorder %s42, 1
      %p333 = por %p331, %p332
      %p334 = scmp.ne.s32.totalorder %s325, %s326
      %p335 = scmp.eq.s32.totalorder %s42, 0
      %p336 = por %p334, %p335
      %p337 = scmp.ne.s32.totalorder %s325, %s326
      %p338 = scmp.eq.s32.totalorder %s43, 1
      %p339 = por %p337, %p338
      %p341 = scmp.ne.s32.totalorder %s326, %s340
      %p342 = scmp.eq.s32.totalorder %s43, 0
      %p343 = por %p341, %p342
      %s345 = sadd.s32 %s344, 1
      %p348 = scmp.eq.s32.totalorder %s37, 1
      %p349 = scmp.ne.s32.totalorder %s344, %s346
      %p350 = scmp.eq.s32.totalorder %s37, 0
      %p351 = por %p349, %p350
      %p352 = scmp.ne.s32.totalorder %s344, %s346
      %p353 = scmp.eq.s32.totalorder %s42, 1
      %p354 = por %p352, %p353
      %p355 = scmp.ne.s32.totalorder %s346, %s347
      %p356 = scmp.eq.s32.totalorder %s42, 0
      %p357 = por %p355, %p356
      %p358 = scmp.ne.s32.totalorder %s346, %s347
      %p359 = scmp.eq.s32.totalorder %s43, 1
      %p360 = por %p358, %p359
      %p362 = scmp.ne.s32.totalorder %s347, %s361
      %p363 = scmp.eq.s32.totalorder %s43, 0
      %p364 = por %p362, %p363
      %s366 = sadd.s32 %s365, 1
      %p369 = scmp.eq.s32.totalorder %s37, 1
      %p370 = scmp.ne.s32.totalorder %s365, %s367
      %p371 = scmp.eq.s32.totalorder %s37, 0
      %p372 = por %p370, %p371
      %p373 = scmp.ne.s32.totalorder %s365, %s367
      %p374 = scmp.eq.s32.totalorder %s42, 1
      %p375 = por %p373, %p374
      %p376 = scmp.ne.s32.totalorder %s367, %s368
      %p377 = scmp.eq.s32.totalorder %s42, 0
      %p378 = por %p376, %p377
      %p379 = scmp.ne.s32.totalorder %s367, %s368
      %p380 = scmp.eq.s32.totalorder %s43, 1
      %p381 = por %p379, %p380
      %p383 = scmp.ne.s32.totalorder %s368, %s382
      %p384 = scmp.eq.s32.totalorder %s43, 0
      %p385 = por %p383, %p384
      %s387 = sadd.s32 %s386, 1
      %p390 = scmp.eq.s32.totalorder %s37, 1
      %p391 = scmp.ne.s32.totalorder %s386, %s388
      %p392 = scmp.eq.s32.totalorder %s37, 0
      %p393 = por %p391, %p392
      %p394 = scmp.ne.s32.totalorder %s386, %s388
      %p395 = scmp.eq.s32.totalorder %s42, 1
      %p396 = por %p394, %p395
      %p397 = scmp.ne.s32.totalorder %s388, %s389
      %p398 = scmp.eq.s32.totalorder %s42, 0
      %p399 = por %p397, %p398
      %p400 = scmp.ne.s32.totalorder %s388, %s389
      %p401 = scmp.eq.s32.totalorder %s43, 1
      %p402 = por %p400, %p401
      %p404 = scmp.ne.s32.totalorder %s389, %s403
      %p405 = scmp.eq.s32.totalorder %s43, 0
      %p406 = por %p404, %p405
      %s408 = sadd.s32 %s407, 1
      %p411 = scmp.eq.s32.totalorder %s37, 1
      %p412 = scmp.ne.s32.totalorder %s407, %s409
      %p413 = scmp.eq.s32.totalorder %s37, 0
      %p414 = por %p412, %p413
      %p415 = scmp.ne.s32.totalorder %s407, %s409
      %p416 = scmp.eq.s32.totalorder %s42, 1
      %p417 = por %p415, %p416
      %p418 = scmp.ne.s32.totalorder %s409, %s410
      %p419 = scmp.eq.s32.totalorder %s42, 0
      %p420 = por %p418, %p419
      %p421 = scmp.ne.s32.totalorder %s409, %s410
      %p422 = scmp.eq.s32.totalorder %s43, 1
      %p423 = por %p421, %p422
      %p425 = scmp.ne.s32.totalorder %s410, %s424
      %p426 = scmp.eq.s32.totalorder %s43, 0
      %p427 = por %p425, %p426
      %s429 = sadd.s32 %s428, 1
      %p432 = scmp.eq.s32.totalorder %s37, 1
      %p433 = scmp.ne.s32.totalorder %s428, %s430
      %p434 = scmp.eq.s32.totalorder %s37, 0
      %p435 = por %p433, %p434
      %p436 = scmp.ne.s32.totalorder %s428, %s430
      %p437 = scmp.eq.s32.totalorder %s42, 1
      %p438 = por %p436, %p437
      %p439 = scmp.ne.s32.totalorder %s430, %s431
      %p440 = scmp.eq.s32.totalorder %s42, 0
      %p441 = por %p439, %p440
      %p442 = scmp.ne.s32.totalorder %s430, %s431
      %p443 = scmp.eq.s32.totalorder %s43, 1
      %p444 = por %p442, %p443
      %p446 = scmp.ne.s32.totalorder %s431, %s445
      %p447 = scmp.eq.s32.totalorder %s43, 0
      %p448 = por %p446, %p447
      %s450 = sadd.s32 %s449, 1
      %p453 = scmp.eq.s32.totalorder %s37, 1
      %p454 = scmp.ne.s32.totalorder %s449, %s451
      %p455 = scmp.eq.s32.totalorder %s37, 0
      %p456 = por %p454, %p455
      %p457 = scmp.ne.s32.totalorder %s449, %s451
      %p458 = scmp.eq.s32.totalorder %s42, 1
      %p459 = por %p457, %p458
      %p460 = scmp.ne.s32.totalorder %s451, %s452
      %p461 = scmp.eq.s32.totalorder %s42, 0
      %p462 = por %p460, %p461
      %p463 = scmp.ne.s32.totalorder %s451, %s452
      %p464 = scmp.eq.s32.totalorder %s43, 1
      %p465 = por %p463, %p464
      %p467 = scmp.ne.s32.totalorder %s452, %s466
      %p468 = scmp.eq.s32.totalorder %s43, 0
      %p469 = por %p467, %p468
      %s471 = sadd.s32 %s470, 1
      %p474 = scmp.eq.s32.totalorder %s37, 1
      %p475 = scmp.ne.s32.totalorder %s470, %s472
      %p476 = scmp.eq.s32.totalorder %s37, 0
      %p477 = por %p475, %p476
      %p478 = scmp.ne.s32.totalorder %s470, %s472
      %p479 = scmp.eq.s32.totalorder %s42, 1
      %p480 = por %p478, %p479
      %p481 = scmp.ne.s32.totalorder %s472, %s473
      %p482 = scmp.eq.s32.totalorder %s42, 0
      %p483 = por %p481, %p482
      %p484 = scmp.ne.s32.totalorder %s472, %s473
      %p485 = scmp.eq.s32.totalorder %s43, 1
      %p486 = por %p484, %p485
      %p488 = scmp.ne.s32.totalorder %s473, %s487
      %p489 = scmp.eq.s32.totalorder %s43, 0
      %p490 = por %p488, %p489
      %s492 = sadd.s32 %s491, 1
      %p495 = scmp.eq.s32.totalorder %s37, 1
      %p496 = scmp.ne.s32.totalorder %s491, %s493
      %p497 = scmp.eq.s32.totalorder %s37, 0
      %p498 = por %p496, %p497
      %p499 = scmp.ne.s32.totalorder %s491, %s493
      %p500 = scmp.eq.s32.totalorder %s42, 1
      %p501 = por %p499, %p500
      %p502 = scmp.ne.s32.totalorder %s493, %s494
      %p503 = scmp.eq.s32.totalorder %s42, 0
      %p504 = por %p502, %p503
      %p505 = scmp.ne.s32.totalorder %s493, %s494
      %p506 = scmp.eq.s32.totalorder %s43, 1
      %p507 = por %p505, %p506
      %p509 = scmp.ne.s32.totalorder %s494, %s508
      %p510 = scmp.eq.s32.totalorder %s43, 0
      %p511 = por %p509, %p510
      %s513 = sadd.s32 %s512, 1
      %p516 = scmp.eq.s32.totalorder %s37, 1
      %p517 = scmp.ne.s32.totalorder %s512, %s514
      %p518 = scmp.eq.s32.totalorder %s37, 0
      %p519 = por %p517, %p518
      %p520 = scmp.ne.s32.totalorder %s512, %s514
      %p521 = scmp.eq.s32.totalorder %s42, 1
      %p522 = por %p520, %p521
      %p523 = scmp.ne.s32.totalorder %s514, %s515
      %p524 = scmp.eq.s32.totalorder %s42, 0
      %p525 = por %p523, %p524
      %p526 = scmp.ne.s32.totalorder %s514, %s515
      %p527 = scmp.eq.s32.totalorder %s43, 1
      %p528 = por %p526, %p527
      %p530 = scmp.ne.s32.totalorder %s515, %s529
      %p531 = scmp.eq.s32.totalorder %s43, 0
      %p532 = por %p530, %p531
      %s534 = sadd.s32 %s533, 1
      %p537 = scmp.eq.s32.totalorder %s37, 1
      %p538 = scmp.ne.s32.totalorder %s533, %s535
      %p539 = scmp.eq.s32.totalorder %s37, 0
      %p540 = por %p538, %p539
      %p541 = scmp.ne.s32.totalorder %s533, %s535
      %p542 = scmp.eq.s32.totalorder %s42, 1
      %p543 = por %p541, %p542
      %p544 = scmp.ne.s32.totalorder %s535, %s536
      %p545 = scmp.eq.s32.totalorder %s42, 0
      %p546 = por %p544, %p545
      %p547 = scmp.ne.s32.totalorder %s535, %s536
      %p548 = scmp.eq.s32.totalorder %s43, 1
      %p549 = por %p547, %p548
      %p551 = scmp.ne.s32.totalorder %s536, %s550
      %p552 = scmp.eq.s32.totalorder %s43, 0
      %p553 = por %p551, %p552
      %s555 = sadd.s32 %s554, 1
      %p558 = scmp.eq.s32.totalorder %s37, 1
      %p559 = scmp.ne.s32.totalorder %s554, %s556
      %p560 = scmp.eq.s32.totalorder %s37, 0
      %p561 = por %p559, %p560
      %p562 = scmp.ne.s32.totalorder %s554, %s556
      %p563 = scmp.eq.s32.totalorder %s42, 1
      %p564 = por %p562, %p563
      %p565 = scmp.ne.s32.totalorder %s556, %s557
      %p566 = scmp.eq.s32.totalorder %s42, 0
      %p567 = por %p565, %p566
      %p568 = scmp.ne.s32.totalorder %s556, %s557
      %p569 = scmp.eq.s32.totalorder %s43, 1
      %p570 = por %p568, %p569
      %p572 = scmp.ne.s32.totalorder %s557, %s571
      %p573 = scmp.eq.s32.totalorder %s43, 0
      %p574 = por %p572, %p573
      %s575 = ssub.s32 %s37, %s44
      %p576 = scmp.eq.s32.totalorder %s575, 0
      %s578 = sadd.s32 %s577, 1
      %s579 = scalar_select %p576, %s577, %s578
      %p582 = pneg %p576
      %p583 = scmp.eq.s32.totalorder %s37, 1
      %p584 = por %p582, %p583
      %p585 = scmp.ne.s32.totalorder %s577, %s580
      %p586 = scmp.eq.s32.totalorder %s37, 0
      %p587 = por %p585, %p586
      %p588 = scmp.ne.s32.totalorder %s577, %s580
      %p589 = scmp.eq.s32.totalorder %s42, 1
      %p590 = por %p588, %p589
      %p591 = scmp.ne.s32.totalorder %s580, %s581
      %p592 = scmp.eq.s32.totalorder %s42, 0
      %p593 = por %p591, %p592
      %p594 = scmp.ne.s32.totalorder %s580, %s581
      %p595 = scmp.eq.s32.totalorder %s43, 1
      %p596 = por %p594, %p595
      %p598 = scmp.ne.s32.totalorder %s581, %s597
      %p599 = scmp.eq.s32.totalorder %s43, 0
      %p600 = por %p598, %p599
      %p601 = scmp.le.s32.totalorder 1, %s37
      %p602 = scmp.lt.s32.totalorder %s37, 3
      %p603 = pnand %p601, %p602
      %p604 = pneg %p603
      // Predicated region
      $region9: #{tpu_custom_call.1} parent=5 // pred_check
        _
      $region10: #{tpu_custom_call.1} parent=5 // pred_check_branch
        %606 = sbr.rel (%p603) target = $region12
      $region11: #{tpu_custom_call.1} parent=5 // pred_region
        %s607 = ssub.s32 %s37, 1
        // Predicated region
        $region13: #{tpu_custom_call.1} parent=11 // pred_check
          %p608 = pneg %p84
        $region14: #{tpu_custom_call.1} parent=11 // pred_check_branch
          %610 = sbr.rel (%p608) target = $region16
        $region15: #{tpu_custom_call.1} parent=11 // pred_region
          _
        $region16: #{tpu_custom_call.1} parent=11 // pred_fallthru
          _
        // Predicated region
        $region17: #{tpu_custom_call.1} parent=11 // pred_check
          %p611 = pneg %p105
        $region18: #{tpu_custom_call.1} parent=11 // pred_check_branch
          %613 = sbr.rel (%p611) target = $region20
        $region19: #{tpu_custom_call.1} parent=11 // pred_region
          %s615 = ssub.s32 16, 16
          %616 = vsyncadd [#allocation3], %s615
          %s618 = sshll.u32 [#allocation2], 4
          %s619 = int_to_ptr.vmem [resolvable:$true] %s618
          %621 = dma.hbm_to_vmem [thread:$0]  %s2, 16, %s619, [#allocation3]
        $region20: #{tpu_custom_call.1} parent=11 // pred_fallthru
          _
        // Predicated region
        $region21: #{tpu_custom_call.1} parent=11 // pred_check
          %p622 = pneg %p126
        $region22: #{tpu_custom_call.1} parent=11 // pred_check_branch
          %624 = sbr.rel (%p622) target = $region24
        $region23: #{tpu_custom_call.1} parent=11 // pred_region
          _
        $region24: #{tpu_custom_call.1} parent=11 // pred_fallthru
          _
        // Predicated region
        $region25: #{tpu_custom_call.1} parent=11 // pred_check
          %p625 = pneg %p147
        $region26: #{tpu_custom_call.1} parent=11 // pred_check_branch
          %627 = sbr.rel (%p625) target = $region28
        $region27: #{tpu_custom_call.1} parent=11 // pred_region
          _
        $region28: #{tpu_custom_call.1} parent=11 // pred_fallthru
          _
        // Predicated region
        $region29: #{tpu_custom_call.1} parent=11 // pred_check
          %p628 = pneg %p168
        $region30: #{tpu_custom_call.1} parent=11 // pred_check_branch
          %630 = sbr.rel (%p628) target = $region32
        $region31: #{tpu_custom_call.1} parent=11 // pred_region
          _
        $region32: #{tpu_custom_call.1} parent=11 // pred_fallthru
          _
        // Predicated region
        $region33: #{tpu_custom_call.1} parent=11 // pred_check
          %p631 = pneg %p189
        $region34: #{tpu_custom_call.1} parent=11 // pred_check_branch
          %633 = sbr.rel (%p631) target = $region36
        $region35: #{tpu_custom_call.1} parent=11 // pred_region
          _
        $region36: #{tpu_custom_call.1} parent=11 // pred_fallthru
          _
        // Predicated region
        $region37: #{tpu_custom_call.1} parent=11 // pred_check
          %p634 = pneg %p210
        $region38: #{tpu_custom_call.1} parent=11 // pred_check_branch
          %636 = sbr.rel (%p634) target = $region40
        $region39: #{tpu_custom_call.1} parent=11 // pred_region
          %s638 = ssub.s32 1024, 1024
          %639 = vsyncadd [#allocation6], %s638
          %s640 = sshll.u32 [#allocation5], 4
          %s641 = int_to_ptr.vmem [resolvable:$true] %s640
          %646 = dma.hbm_to_vmem [thread:$0]  %s7, 1024, %s641, [#allocation6], 128, 128, 8
        $region40: #{tpu_custom_call.1} parent=11 // pred_fallthru
          _
        // Predicated region
        $region41: #{tpu_custom_call.1} parent=11 // pred_check
          %p647 = pneg %p231
        $region42: #{tpu_custom_call.1} parent=11 // pred_check_branch
          %649 = sbr.rel (%p647) target = $region44
        $region43: #{tpu_custom_call.1} parent=11 // pred_region
          _
        $region44: #{tpu_custom_call.1} parent=11 // pred_fallthru
          _
        // Predicated region
        $region45: #{tpu_custom_call.1} parent=11 // pred_check
          %p650 = pneg %p252
        $region46: #{tpu_custom_call.1} parent=11 // pred_check_branch
          %652 = sbr.rel (%p650) target = $region48
        $region47: #{tpu_custom_call.1} parent=11 // pred_region
          _
        $region48: #{tpu_custom_call.1} parent=11 // pred_fallthru
          _
        // Predicated region
        $region49: #{tpu_custom_call.1} parent=11 // pred_check
          %p653 = pneg %p273
        $region50: #{tpu_custom_call.1} parent=11 // pred_check_branch
          %655 = sbr.rel (%p653) target = $region52
        $region51: #{tpu_custom_call.1} parent=11 // pred_region
          _
        $region52: #{tpu_custom_call.1} parent=11 // pred_fallthru
          _
        // Predicated region
        $region53: #{tpu_custom_call.1} parent=11 // pred_check
          %p656 = pneg %p294
        $region54: #{tpu_custom_call.1} parent=11 // pred_check_branch
          %658 = sbr.rel (%p656) target = $region56
        $region55: #{tpu_custom_call.1} parent=11 // pred_region
          %s660 = ssub.s32 1024, 1024
          %661 = vsyncadd [#allocation6], %s660
          %s662 = sshll.u32 [#allocation7], 4
          %s663 = int_to_ptr.vmem [resolvable:$true] %s662
          %668 = dma.hbm_to_vmem [thread:$0]  %s11, 1024, %s663, [#allocation6], 128, 128, 8
        $region56: #{tpu_custom_call.1} parent=11 // pred_fallthru
          _
        // Predicated region
        $region57: #{tpu_custom_call.1} parent=11 // pred_check
          %p669 = pneg %p315
        $region58: #{tpu_custom_call.1} parent=11 // pred_check_branch
          %671 = sbr.rel (%p669) target = $region60
        $region59: #{tpu_custom_call.1} parent=11 // pred_region
          _
        $region60: #{tpu_custom_call.1} parent=11 // pred_fallthru
          _
        // Predicated region
        $region61: #{tpu_custom_call.1} parent=11 // pred_check
          %p672 = pneg %p336
        $region62: #{tpu_custom_call.1} parent=11 // pred_check_branch
          %674 = sbr.rel (%p672) target = $region64
        $region63: #{tpu_custom_call.1} parent=11 // pred_region
          _
        $region64: #{tpu_custom_call.1} parent=11 // pred_fallthru
          _
        // Predicated region
        $region65: #{tpu_custom_call.1} parent=11 // pred_check
          %p675 = pneg %p357
        $region66: #{tpu_custom_call.1} parent=11 // pred_check_branch
          %677 = sbr.rel (%p675) target = $region68
        $region67: #{tpu_custom_call.1} parent=11 // pred_region
          %s679 = ssub.s32 32, 32
          %680 = vsyncadd [#allocation9], %s679
          %s681 = sshll.u32 [#allocation8], 4
          %s682 = int_to_ptr.vmem [resolvable:$true] %s681
          %687 = dma.hbm_to_vmem [thread:$0]  %s14, 32, %s682, [#allocation9], 16, 16, 1
        $region68: #{tpu_custom_call.1} parent=11 // pred_fallthru
          _
        // Predicated region
        $region69: #{tpu_custom_call.1} parent=11 // pred_check
          %p688 = pneg %p378
        $region70: #{tpu_custom_call.1} parent=11 // pred_check_branch
          %690 = sbr.rel (%p688) target = $region72
        $region71: #{tpu_custom_call.1} parent=11 // pred_region
          _
        $region72: #{tpu_custom_call.1} parent=11 // pred_fallthru
          _
        // Predicated region
        $region73: #{tpu_custom_call.1} parent=11 // pred_check
          %p691 = pneg %p399
        $region74: #{tpu_custom_call.1} parent=11 // pred_check_branch
          %693 = sbr.rel (%p691) target = $region76
        $region75: #{tpu_custom_call.1} parent=11 // pred_region
          _
        $region76: #{tpu_custom_call.1} parent=11 // pred_fallthru
          _
        // Predicated region
        $region77: #{tpu_custom_call.1} parent=11 // pred_check
          %p694 = pneg %p420
        $region78: #{tpu_custom_call.1} parent=11 // pred_check_branch
          %696 = sbr.rel (%p694) target = $region80
        $region79: #{tpu_custom_call.1} parent=11 // pred_region
          _
        $region80: #{tpu_custom_call.1} parent=11 // pred_fallthru
          _
        // Predicated region
        $region81: #{tpu_custom_call.1} parent=11 // pred_check
          %p697 = pneg %p441
        $region82: #{tpu_custom_call.1} parent=11 // pred_check_branch
          %699 = sbr.rel (%p697) target = $region84
        $region83: #{tpu_custom_call.1} parent=11 // pred_region
          _
        $region84: #{tpu_custom_call.1} parent=11 // pred_fallthru
          _
        // Predicated region
        $region85: #{tpu_custom_call.1} parent=11 // pred_check
          %p700 = pneg %p462
        $region86: #{tpu_custom_call.1} parent=11 // pred_check_branch
          %702 = sbr.rel (%p700) target = $region88
        $region87: #{tpu_custom_call.1} parent=11 // pred_region
          _
        $region88: #{tpu_custom_call.1} parent=11 // pred_fallthru
          _
        // Predicated region
        $region89: #{tpu_custom_call.1} parent=11 // pred_check
          %p703 = pneg %p483
        $region90: #{tpu_custom_call.1} parent=11 // pred_check_branch
          %705 = sbr.rel (%p703) target = $region92
        $region91: #{tpu_custom_call.1} parent=11 // pred_region
          _
        $region92: #{tpu_custom_call.1} parent=11 // pred_fallthru
          _
        // Predicated region
        $region93: #{tpu_custom_call.1} parent=11 // pred_check
          %p706 = pneg %p504
        $region94: #{tpu_custom_call.1} parent=11 // pred_check_branch
          %708 = sbr.rel (%p706) target = $region96
        $region95: #{tpu_custom_call.1} parent=11 // pred_region
          _
        $region96: #{tpu_custom_call.1} parent=11 // pred_fallthru
          _
        // Predicated region
        $region97: #{tpu_custom_call.1} parent=11 // pred_check
          %p709 = pneg %p525
        $region98: #{tpu_custom_call.1} parent=11 // pred_check_branch
          %711 = sbr.rel (%p709) target = $region100
        $region99: #{tpu_custom_call.1} parent=11 // pred_region
          _
        $region100: #{tpu_custom_call.1} parent=11 // pred_fallthru
          _
        // Predicated region
        $region101: #{tpu_custom_call.1} parent=11 // pred_check
          %p712 = pneg %p546
        $region102: #{tpu_custom_call.1} parent=11 // pred_check_branch
          %714 = sbr.rel (%p712) target = $region104
        $region103: #{tpu_custom_call.1} parent=11 // pred_region
          _
        $region104: #{tpu_custom_call.1} parent=11 // pred_fallthru
          _
        // Predicated region
        $region105: #{tpu_custom_call.1} parent=11 // pred_check
          %p715 = pneg %p567
        $region106: #{tpu_custom_call.1} parent=11 // pred_check_branch
          %717 = sbr.rel (%p715) target = $region108
        $region107: #{tpu_custom_call.1} parent=11 // pred_region
          _
        $region108: #{tpu_custom_call.1} parent=11 // pred_fallthru
          _
      $region12: #{tpu_custom_call.1} parent=5 // pred_fallthru
        _
      %p718 = scmp.lt.s32.totalorder %s37, 2
      // Predicated region
      $region109: #{tpu_custom_call.1} parent=5 // pred_check
        %p719 = pneg %p718
      $region110: #{tpu_custom_call.1} parent=5 // pred_check_branch
        %721 = sbr.rel (%p719) target = $region112
      $region111: #{tpu_custom_call.1} parent=5 // pred_region
        // Predicated region
        $region113: #{tpu_custom_call.1} parent=111 // pred_check
          %p722 = pneg %p57
        $region114: #{tpu_custom_call.1} parent=111 // pred_check_branch
          %724 = sbr.rel (%p722) target = $region116
        $region115: #{tpu_custom_call.1} parent=111 // pred_region
          %p725 = scmp.lt.s32.totalorder %s37, 1
          %s726 = scalar_select %p725, %s37, 1
          %s727 = smul.addr %s726, 8
          %s728 = scalar_lea.vmem %s0, %s727
        $region116: #{tpu_custom_call.1} parent=111 // pred_fallthru
          _
      $region112: #{tpu_custom_call.1} parent=5 // pred_fallthru
        _
      %p729 = scmp.le.s32.totalorder 1, %s37
      %p730 = scmp.lt.s32.totalorder %s37, 3
      %p731 = pnand %p729, %p730
      %p732 = pneg %p731
      // Predicated region
      $region117: #{tpu_custom_call.1} parent=5 // pred_check
        _
      $region118: #{tpu_custom_call.1} parent=5 // pred_check_branch
        %734 = sbr.rel (%p731) target = $region120
      $region119: #{tpu_custom_call.1} parent=5 // pred_region
        %s735 = ssub.s32 %s37, 1
        // Predicated region
        $region121: #{tpu_custom_call.1} parent=119 // pred_check
          %p736 = pneg %p105
        $region122: #{tpu_custom_call.1} parent=119 // pred_check_branch
          %738 = sbr.rel (%p736) target = $region124
        $region123: #{tpu_custom_call.1} parent=119 // pred_region
          %739 = dma.done [#allocation3], 16
        $region124: #{tpu_custom_call.1} parent=119 // pred_fallthru
          _
        // Predicated region
        $region125: #{tpu_custom_call.1} parent=119 // pred_check
          %p740 = pneg %p210
        $region126: #{tpu_custom_call.1} parent=119 // pred_check_branch
          %742 = sbr.rel (%p740) target = $region128
        $region127: #{tpu_custom_call.1} parent=119 // pred_region
          %743 = dma.done [#allocation6], 1024
        $region128: #{tpu_custom_call.1} parent=119 // pred_fallthru
          _
        // Predicated region
        $region129: #{tpu_custom_call.1} parent=119 // pred_check
          %p744 = pneg %p294
        $region130: #{tpu_custom_call.1} parent=119 // pred_check_branch
          %746 = sbr.rel (%p744) target = $region132
        $region131: #{tpu_custom_call.1} parent=119 // pred_region
          %747 = dma.done [#allocation6], 1024
        $region132: #{tpu_custom_call.1} parent=119 // pred_fallthru
          _
        // Predicated region
        $region133: #{tpu_custom_call.1} parent=119 // pred_check
          %p748 = pneg %p357
        $region134: #{tpu_custom_call.1} parent=119 // pred_check_branch
          %750 = sbr.rel (%p748) target = $region136
        $region135: #{tpu_custom_call.1} parent=119 // pred_region
          %751 = dma.done [#allocation9], 32
        $region136: #{tpu_custom_call.1} parent=119 // pred_fallthru
          _
        %p752 = scmp.lt.s32.totalorder %s42, 1
        %s753 = scalar_select %p752, %s42, 1
        %s754 = smul.addr %s753, 8
        %s755 = scalar_lea.vmem %s0, %s754
        %p756 = pneg %p63
        %p757 = pneg %p60
        %p758 = pneg %p84
        %p759 = pneg %p81
        %p760 = pneg %p105
        %p761 = pneg %p102
        %p762 = pneg %p126
        %p763 = pneg %p123
        %p764 = pneg %p147
        %p765 = pneg %p144
        %p766 = pneg %p168
        %p767 = pneg %p165
        %p768 = pneg %p189
        %p769 = pneg %p186
        %p770 = pneg %p210
        %p771 = pneg %p207
        %p772 = pneg %p231
        %p773 = pneg %p228
        %p774 = pneg %p252
        %p775 = pneg %p249
        %p776 = pneg %p273
        %p777 = pneg %p270
        %p778 = pneg %p294
        %p779 = pneg %p291
        %p780 = pneg %p315
        %p781 = pneg %p312
        %p782 = pneg %p336
        %p783 = pneg %p333
        %p784 = pneg %p357
        %p785 = pneg %p354
        %p786 = pneg %p378
        %p787 = pneg %p375
        %p788 = pneg %p399
        %p789 = pneg %p396
        %p790 = pneg %p420
        %p791 = pneg %p417
        %p792 = pneg %p441
        %p793 = pneg %p438
        %p794 = pneg %p462
        %p795 = pneg %p459
        %p796 = pneg %p483
        %p797 = pneg %p480
        %p798 = pneg %p504
        %p799 = pneg %p501
        %p800 = pneg %p525
        %p801 = pneg %p522
        %p802 = pneg %p546
        %p803 = pneg %p543
        %p804 = pneg %p567
        %p805 = pneg %p564
        %p806 = pneg %p593
        %p807 = pneg %p590
        %s808 = sand.u32 %s580, 1
        %s809 = scalar_lea.sflag [#allocation4], %s808
        %s810 = sand.u32 %s580, 1
        %s811 = smul.addr %s810, 8
        %s812 = scalar_lea.vmem [#allocation10], %s811
        %p813 = scmp.lt.s32.totalorder %s42, 1
        %s814 = scalar_select %p813, %s42, 1
        %s815 = smul.addr %s814, 8
        %s816 = scalar_lea.vmem %s0, %s815
        %v817 = vld [vmem:[%s816] sm:$0xff]
        %v818 = vld [vmem:[%s1] sm:$0xff]
        %v819 = vld [vmem:[%s1 + $0x8] sm:$0xf]
        %v820 = vld [vmem:[#allocation2] sm:$0x1]
        %v822 = vlaneseq
        %v823 = vshrl.u32 %v822, 7
        %v824 = vsub.s32 0, %v823
        %v825 = vrot.slane %v820, %v824
        %vm827 = vcmask 97280
        %v829 = vsel %vm827, %v817, 0
        %vm831 = vcmask 1043456
        %v833 = vsel %vm831, %v819, 0
        %835 = vmatprep.subr.mxu0 0.0
        %836 = vmatpush1.msra.mxu0 %v818
        %837 = vmatprep.subr.mxu0 0.0
        %838 = vmatpush1.msra.mxu0 %v833
        %839 = vmatprep.subr.mxu0 0.0
        %840 = vmatpush1.msra.mxu0 0.0
        %841 = vmatprep.subr.mxu0 0.0
        %842 = vmatpush1.msra.mxu0 0.0
        %843 = vmatprep.subr.mxu0 0.0
        %844 = vmatpush1.msra.mxu0 0.0
        %845 = vmatprep.subr.mxu0 0.0
        %846 = vmatpush1.msra.mxu0 0.0
        %847 = vmatprep.subr.mxu0 0.0
        %848 = vmatpush1.msra.mxu0 0.0
        %849 = vmatprep.subr.mxu0 0.0
        %850 = vmatpush1.msra.mxu0 0.0
        %851 = vmatprep.subr.mxu0 0.0
        %852 = vmatpush1.msra.mxu0 0.0
        %853 = vmatprep.subr.mxu0 0.0
        %854 = vmatpush1.msra.mxu0 0.0
        %855 = vmatprep.subr.mxu0 0.0
        %856 = vmatpush1.msra.mxu0 0.0
        %857 = vmatprep.subr.mxu0 0.0
        %858 = vmatpush1.msra.mxu0 0.0
        %859 = vmatprep.subr.mxu0 0.0
        %860 = vmatpush1.msra.mxu0 0.0
        %861 = vmatprep.subr.mxu0 0.0
        %862 = vmatpush1.msra.mxu0 0.0
        %863 = vmatprep.subr.mxu0 0.0
        %864 = vmatpush1.msra.mxu0 0.0
        %865 = vmatprep.subr.mxu0 0.0
        %866 = vmatpush1.msra.mxu0 0.0
        %867 = vmatprep.subr.mxu0 0.0
        %868 = vmatpush1.msra.mxu0 0.0
        %869 = vmatprep.subr.mxu0 0.0
        %870 = vmatpush1.msra.mxu0 0.0
        %871 = vmatprep.subr.mxu0 0.0
        %872 = vmatpush1.msra.mxu0 0.0
        %873 = vmatprep.subr.mxu0 0.0
        %874 = vmatpush1.msra.mxu0 0.0
        %875 = vmatprep.subr.mxu0 0.0
        %876 = vmatpush1.msra.mxu0 0.0
        %877 = vmatprep.subr.mxu0 0.0
        %878 = vmatpush1.msra.mxu0 0.0
        %879 = vmatprep.subr.mxu0 0.0
        %880 = vmatpush1.msra.mxu0 0.0
        %881 = vmatprep.subr.mxu0 0.0
        %882 = vmatpush1.msra.mxu0 0.0
        %883 = vmatprep.subr.mxu0 0.0
        %884 = vmatpush1.msra.mxu0 0.0
        %885 = vmatprep.subr.mxu0 0.0
        %886 = vmatpush1.msra.mxu0 0.0
        %887 = vmatprep.subr.mxu0 0.0
        %888 = vmatpush1.msra.mxu0 0.0
        %889 = vmatprep.subr.mxu0 0.0
        %890 = vmatpush1.msra.mxu0 0.0
        %891 = vmatprep.subr.mxu0 0.0
        %892 = vmatpush1.msra.mxu0 0.0
        %893 = vmatprep.subr.mxu0 0.0
        %894 = vmatpush1.msra.mxu0 0.0
        %895 = vmatprep.subr.mxu0 0.0
        %896 = vmatpush1.msra.mxu0 0.0
        %897 = vmatprep.subr.mxu0 0.0
        %898 = vmatpush1.msra.mxu0 0.0
        %899 = vmatprep.mubr.f32.mxu0 0.0
        %900 = vmatmul.mubr.f32.gmra.mrb[0].mxu0 %v829
        %v901 = vpop.f32.mrb[0].mxu0
        %v902 = vadd.f32 %v825, %v901
        %v903 = vpop.f32.mrb[0].mxu0
        %904 = vdwg.mxu0
        %v905 = vmul.f32 %v902, 0.5
        %v906 = vmul.f32 %v902, 0.044715
        %v907 = vmul.f32 %v906, %v902
        %v908 = vmul.f32 %v907, %v902
        %v909 = vadd.f32 %v902, %v908
        %v910 = vmul.f32 %v909, 0.7978846
        %v911 = vtanh.pop %v910
        %v912 = vadd.f32 %v911, 1.0
        %v913 = vmul.f32 %v905, %v912
        %v914 = vld [vmem:[%s3] sm:$0xff]
        %v915 = vld [vmem:[%s3 + $0x8] sm:$0xff]
        %v916 = vld [vmem:[%s3 + $0x10] sm:$0xff]
        %v917 = vld [vmem:[%s3 + $0x18] sm:$0xff]
        %v918 = vld [vmem:[%s4] sm:$0x1]
        %v920 = vlaneseq
        %v921 = vshrl.u32 %v920, 7
        %v922 = vsub.s32 0, %v921
        %v923 = vrot.slane %v918, %v922
        %vm925 = vcmask 261120
        %v927 = vsel %vm925, %v913, 0
        %929 = vmatprep.subr.mxu0 0.0
        %930 = vmatpush1.msra.mxu0 %v914
        %931 = vmatprep.subr.mxu0 0.0
        %932 = vmatpush1.msra.mxu0 %v915
        %933 = vmatprep.subr.mxu0 0.0
        %934 = vmatpush1.msra.mxu0 %v916
        %935 = vmatprep.subr.mxu0 0.0
        %936 = vmatpush1.msra.mxu0 %v917
        %937 = vmatprep.subr.mxu0 0.0
        %938 = vmatpush1.msra.mxu0 0.0
        %939 = vmatprep.subr.mxu0 0.0
        %940 = vmatpush1.msra.mxu0 0.0
        %941 = vmatprep.subr.mxu0 0.0
        %942 = vmatpush1.msra.mxu0 0.0
        %943 = vmatprep.subr.mxu0 0.0
        %944 = vmatpush1.msra.mxu0 0.0
        %945 = vmatprep.subr.mxu0 0.0
        %946 = vmatpush1.msra.mxu0 0.0
        %947 = vmatprep.subr.mxu0 0.0
        %948 = vmatpush1.msra.mxu0 0.0
        %949 = vmatprep.subr.mxu0 0.0
        %950 = vmatpush1.msra.mxu0 0.0
        %951 = vmatprep.subr.mxu0 0.0
        %952 = vmatpush1.msra.mxu0 0.0
        %953 = vmatprep.subr.mxu0 0.0
        %954 = vmatpush1.msra.mxu0 0.0
        %955 = vmatprep.subr.mxu0 0.0
        %956 = vmatpush1.msra.mxu0 0.0
        %957 = vmatprep.subr.mxu0 0.0
        %958 = vmatpush1.msra.mxu0 0.0
        %959 = vmatprep.subr.mxu0 0.0
        %960 = vmatpush1.msra.mxu0 0.0
        %961 = vmatprep.subr.mxu0 0.0
        %962 = vmatpush1.msra.mxu0 0.0
        %963 = vmatprep.subr.mxu0 0.0
        %964 = vmatpush1.msra.mxu0 0.0
        %965 = vmatprep.subr.mxu0 0.0
        %966 = vmatpush1.msra.mxu0 0.0
        %967 = vmatprep.subr.mxu0 0.0
        %968 = vmatpush1.msra.mxu0 0.0
        %969 = vmatprep.subr.mxu0 0.0
        %970 = vmatpush1.msra.mxu0 0.0
        %971 = vmatprep.subr.mxu0 0.0
        %972 = vmatpush1.msra.mxu0 0.0
        %973 = vmatprep.subr.mxu0 0.0
        %974 = vmatpush1.msra.mxu0 0.0
        %975 = vmatprep.subr.mxu0 0.0
        %976 = vmatpush1.msra.mxu0 0.0
        %977 = vmatprep.subr.mxu0 0.0
        %978 = vmatpush1.msra.mxu0 0.0
        %979 = vmatprep.subr.mxu0 0.0
        %980 = vmatpush1.msra.mxu0 0.0
        %981 = vmatprep.subr.mxu0 0.0
        %982 = vmatpush1.msra.mxu0 0.0
        %983 = vmatprep.subr.mxu0 0.0
        %984 = vmatpush1.msra.mxu0 0.0
        %985 = vmatprep.subr.mxu0 0.0
        %986 = vmatpush1.msra.mxu0 0.0
        %987 = vmatprep.subr.mxu0 0.0
        %988 = vmatpush1.msra.mxu0 0.0
        %989 = vmatprep.subr.mxu0 0.0
        %990 = vmatpush1.msra.mxu0 0.0
        %991 = vmatprep.subr.mxu0 0.0
        %992 = vmatpush1.msra.mxu0 0.0
        %993 = vmatprep.mubr.f32.mxu0 0.0
        %994 = vmatmul.mubr.f32.gmra.mrb[0].mxu0 %v927
        %v995 = vpop.f32.mrb[0].mxu0
        %v996 = vadd.f32 %v923, %v995
        %v997 = vpop.f32.mrb[0].mxu0
        %998 = vdwg.mxu0
        %v999 = vmul.f32 %v996, 0.5
        %v1000 = vmul.f32 %v996, 0.044715
        %v1001 = vmul.f32 %v1000, %v996
        %v1002 = vmul.f32 %v1001, %v996
        %v1003 = vadd.f32 %v996, %v1002
        %v1004 = vmul.f32 %v1003, 0.7978846
        %v1005 = vtanh.pop %v1004
        %v1006 = vadd.f32 %v1005, 1.0
        %v1007 = vmul.f32 %v999, %v1006
        %s1008 = scalar_lea.vmem %s3, 32
        %v1009 = vld [vmem:[%s1008] sm:$0xff]
        %v1010 = vld [vmem:[%s1008 + $0x8] sm:$0xff]
        %v1011 = vld [vmem:[%s1008 + $0x10] sm:$0xff]
        %v1012 = vld [vmem:[%s1008 + $0x18] sm:$0xff]
        %s1013 = scalar_lea.vmem %s4, 1
        %v1014 = vld [vmem:[%s1013] sm:$0x1]
        %v1016 = vlaneseq
        %v1017 = vshrl.u32 %v1016, 7
        %v1018 = vsub.s32 0, %v1017
        %v1019 = vrot.slane %v1014, %v1018
        %v1022 = vsel %vm925, %v1007, 0
        %1024 = vmatprep.subr.mxu0 0.0
        %1025 = vmatpush1.msra.mxu0 %v1009
        %1026 = vmatprep.subr.mxu0 0.0
        %1027 = vmatpush1.msra.mxu0 %v1010
        %1028 = vmatprep.subr.mxu0 0.0
        %1029 = vmatpush1.msra.mxu0 %v1011
        %1030 = vmatprep.subr.mxu0 0.0
        %1031 = vmatpush1.msra.mxu0 %v1012
        %1032 = vmatprep.subr.mxu0 0.0
        %1033 = vmatpush1.msra.mxu0 0.0
        %1034 = vmatprep.subr.mxu0 0.0
        %1035 = vmatpush1.msra.mxu0 0.0
        %1036 = vmatprep.subr.mxu0 0.0
        %1037 = vmatpush1.msra.mxu0 0.0
        %1038 = vmatprep.subr.mxu0 0.0
        %1039 = vmatpush1.msra.mxu0 0.0
        %1040 = vmatprep.subr.mxu0 0.0
        %1041 = vmatpush1.msra.mxu0 0.0
        %1042 = vmatprep.subr.mxu0 0.0
        %1043 = vmatpush1.msra.mxu0 0.0
        %1044 = vmatprep.subr.mxu0 0.0
        %1045 = vmatpush1.msra.mxu0 0.0
        %1046 = vmatprep.subr.mxu0 0.0
        %1047 = vmatpush1.msra.mxu0 0.0
        %1048 = vmatprep.subr.mxu0 0.0
        %1049 = vmatpush1.msra.mxu0 0.0
        %1050 = vmatprep.subr.mxu0 0.0
        %1051 = vmatpush1.msra.mxu0 0.0
        %1052 = vmatprep.subr.mxu0 0.0
        %1053 = vmatpush1.msra.mxu0 0.0
        %1054 = vmatprep.subr.mxu0 0.0
        %1055 = vmatpush1.msra.mxu0 0.0
        %1056 = vmatprep.subr.mxu0 0.0
        %1057 = vmatpush1.msra.mxu0 0.0
        %1058 = vmatprep.subr.mxu0 0.0
        %1059 = vmatpush1.msra.mxu0 0.0
        %1060 = vmatprep.subr.mxu0 0.0
        %1061 = vmatpush1.msra.mxu0 0.0
        %1062 = vmatprep.subr.mxu0 0.0
        %1063 = vmatpush1.msra.mxu0 0.0
        %1064 = vmatprep.subr.mxu0 0.0
        %1065 = vmatpush1.msra.mxu0 0.0
        %1066 = vmatprep.subr.mxu0 0.0
        %1067 = vmatpush1.msra.mxu0 0.0
        %1068 = vmatprep.subr.mxu0 0.0
        %1069 = vmatpush1.msra.mxu0 0.0
        %1070 = vmatprep.subr.mxu0 0.0
        %1071 = vmatpush1.msra.mxu0 0.0
        %1072 = vmatprep.subr.mxu0 0.0
        %1073 = vmatpush1.msra.mxu0 0.0
        %1074 = vmatprep.subr.mxu0 0.0
        %1075 = vmatpush1.msra.mxu0 0.0
        %1076 = vmatprep.subr.mxu0 0.0
        %1077 = vmatpush1.msra.mxu0 0.0
        %1078 = vmatprep.subr.mxu0 0.0
        %1079 = vmatpush1.msra.mxu0 0.0
        %1080 = vmatprep.subr.mxu0 0.0
        %1081 = vmatpush1.msra.mxu0 0.0
        %1082 = vmatprep.subr.mxu0 0.0
        %1083 = vmatpush1.msra.mxu0 0.0
        %1084 = vmatprep.subr.mxu0 0.0
        %1085 = vmatpush1.msra.mxu0 0.0
        %1086 = vmatprep.subr.mxu0 0.0
        %1087 = vmatpush1.msra.mxu0 0.0
        %1088 = vmatprep.mubr.f32.mxu0 0.0
        %1089 = vmatmul.mubr.f32.gmra.mrb[0].mxu0 %v1022
        %v1090 = vpop.f32.mrb[0].mxu0
        %v1091 = vadd.f32 %v1019, %v1090
        %v1092 = vpop.f32.mrb[0].mxu0
        %1093 = vdwg.mxu0
        %v1094 = vmul.f32 %v1091, 0.5
        %v1095 = vmul.f32 %v1091, 0.044715
        %v1096 = vmul.f32 %v1095, %v1091
        %v1097 = vmul.f32 %v1096, %v1091
        %v1098 = vadd.f32 %v1091, %v1097
        %v1099 = vmul.f32 %v1098, 0.7978846
        %v1100 = vtanh.pop %v1099
        %v1101 = vadd.f32 %v1100, 1.0
        %v1102 = vmul.f32 %v1094, %v1101
        %s1103 = scalar_lea.vmem %s3, 64
        %v1104 = vld [vmem:[%s1103] sm:$0xff]
        %v1105 = vld [vmem:[%s1103 + $0x8] sm:$0xff]
        %v1106 = vld [vmem:[%s1103 + $0x10] sm:$0xff]
        %v1107 = vld [vmem:[%s1103 + $0x18] sm:$0xff]
        %s1108 = scalar_lea.vmem %s4, 2
        %v1109 = vld [vmem:[%s1108] sm:$0x1]
        %v1111 = vlaneseq
        %v1112 = vshrl.u32 %v1111, 7
        %v1113 = vsub.s32 0, %v1112
        %v1114 = vrot.slane %v1109, %v1113
        %v1117 = vsel %vm925, %v1102, 0
        %1119 = vmatprep.subr.mxu0 0.0
        %1120 = vmatpush1.msra.mxu0 %v1104
        %1121 = vmatprep.subr.mxu0 0.0
        %1122 = vmatpush1.msra.mxu0 %v1105
        %1123 = vmatprep.subr.mxu0 0.0
        %1124 = vmatpush1.msra.mxu0 %v1106
        %1125 = vmatprep.subr.mxu0 0.0
        %1126 = vmatpush1.msra.mxu0 %v1107
        %1127 = vmatprep.subr.mxu0 0.0
        %1128 = vmatpush1.msra.mxu0 0.0
        %1129 = vmatprep.subr.mxu0 0.0
        %1130 = vmatpush1.msra.mxu0 0.0
        %1131 = vmatprep.subr.mxu0 0.0
        %1132 = vmatpush1.msra.mxu0 0.0
        %1133 = vmatprep.subr.mxu0 0.0
        %1134 = vmatpush1.msra.mxu0 0.0
        %1135 = vmatprep.subr.mxu0 0.0
        %1136 = vmatpush1.msra.mxu0 0.0
        %1137 = vmatprep.subr.mxu0 0.0
        %1138 = vmatpush1.msra.mxu0 0.0
        %1139 = vmatprep.subr.mxu0 0.0
        %1140 = vmatpush1.msra.mxu0 0.0
        %1141 = vmatprep.subr.mxu0 0.0
        %1142 = vmatpush1.msra.mxu0 0.0
        %1143 = vmatprep.subr.mxu0 0.0
        %1144 = vmatpush1.msra.mxu0 0.0
        %1145 = vmatprep.subr.mxu0 0.0
        %1146 = vmatpush1.msra.mxu0 0.0
        %1147 = vmatprep.subr.mxu0 0.0
        %1148 = vmatpush1.msra.mxu0 0.0
        %1149 = vmatprep.subr.mxu0 0.0
        %1150 = vmatpush1.msra.mxu0 0.0
        %1151 = vmatprep.subr.mxu0 0.0
        %1152 = vmatpush1.msra.mxu0 0.0
        %1153 = vmatprep.subr.mxu0 0.0
        %1154 = vmatpush1.msra.mxu0 0.0
        %1155 = vmatprep.subr.mxu0 0.0
        %1156 = vmatpush1.msra.mxu0 0.0
        %1157 = vmatprep.subr.mxu0 0.0
        %1158 = vmatpush1.msra.mxu0 0.0
        %1159 = vmatprep.subr.mxu0 0.0
        %1160 = vmatpush1.msra.mxu0 0.0
        %1161 = vmatprep.subr.mxu0 0.0
        %1162 = vmatpush1.msra.mxu0 0.0
        %1163 = vmatprep.subr.mxu0 0.0
        %1164 = vmatpush1.msra.mxu0 0.0
        %1165 = vmatprep.subr.mxu0 0.0
        %1166 = vmatpush1.msra.mxu0 0.0
        %1167 = vmatprep.subr.mxu0 0.0
        %1168 = vmatpush1.msra.mxu0 0.0
        %1169 = vmatprep.subr.mxu0 0.0
        %1170 = vmatpush1.msra.mxu0 0.0
        %1171 = vmatprep.subr.mxu0 0.0
        %1172 = vmatpush1.msra.mxu0 0.0
        %1173 = vmatprep.subr.mxu0 0.0
        %1174 = vmatpush1.msra.mxu0 0.0
        %1175 = vmatprep.subr.mxu0 0.0
        %1176 = vmatpush1.msra.mxu0 0.0
        %1177 = vmatprep.subr.mxu0 0.0
        %1178 = vmatpush1.msra.mxu0 0.0
        %1179 = vmatprep.subr.mxu0 0.0
        %1180 = vmatpush1.msra.mxu0 0.0
        %1181 = vmatprep.subr.mxu0 0.0
        %1182 = vmatpush1.msra.mxu0 0.0
        %1183 = vmatprep.mubr.f32.mxu0 0.0
        %1184 = vmatmul.mubr.f32.gmra.mrb[0].mxu0 %v1117
        %v1185 = vpop.f32.mrb[0].mxu0
        %v1186 = vadd.f32 %v1114, %v1185
        %v1187 = vpop.f32.mrb[0].mxu0
        %1188 = vdwg.mxu0
        %v1189 = vmul.f32 %v1186, 0.5
        %v1190 = vmul.f32 %v1186, 0.044715
        %v1191 = vmul.f32 %v1190, %v1186
        %v1192 = vmul.f32 %v1191, %v1186
        %v1193 = vadd.f32 %v1186, %v1192
        %v1194 = vmul.f32 %v1193, 0.7978846
        %v1195 = vtanh.pop %v1194
        %v1196 = vadd.f32 %v1195, 1.0
        %v1197 = vmul.f32 %v1189, %v1196
        %v1198 = vld [vmem:[%s5] sm:$0xff]
        %v1199 = vld [vmem:[%s5 + $0x8] sm:$0xff]
        %v1200 = vld [vmem:[%s5 + $0x10] sm:$0xff]
        %v1201 = vld [vmem:[%s5 + $0x18] sm:$0xff]
        %v1202 = vld [vmem:[%s6] sm:$0x1]
        %v1204 = vlaneseq
        %v1205 = vshrl.u32 %v1204, 7
        %v1206 = vsub.s32 0, %v1205
        %v1207 = vrot.slane %v1202, %v1206
        %v1210 = vsel %vm925, %v1197, 0
        %1212 = vmatprep.subr.mxu0 0.0
        %1213 = vmatpush1.msra.mxu0 %v1198
        %1214 = vmatprep.subr.mxu0 0.0
        %1215 = vmatpush1.msra.mxu0 %v1199
        %1216 = vmatprep.subr.mxu0 0.0
        %1217 = vmatpush1.msra.mxu0 %v1200
        %1218 = vmatprep.subr.mxu0 0.0
        %1219 = vmatpush1.msra.mxu0 %v1201
        %1220 = vmatprep.subr.mxu0 0.0
        %1221 = vmatpush1.msra.mxu0 0.0
        %1222 = vmatprep.subr.mxu0 0.0
        %1223 = vmatpush1.msra.mxu0 0.0
        %1224 = vmatprep.subr.mxu0 0.0
        %1225 = vmatpush1.msra.mxu0 0.0
        %1226 = vmatprep.subr.mxu0 0.0
        %1227 = vmatpush1.msra.mxu0 0.0
        %1228 = vmatprep.subr.mxu0 0.0
        %1229 = vmatpush1.msra.mxu0 0.0
        %1230 = vmatprep.subr.mxu0 0.0
        %1231 = vmatpush1.msra.mxu0 0.0
        %1232 = vmatprep.subr.mxu0 0.0
        %1233 = vmatpush1.msra.mxu0 0.0
        %1234 = vmatprep.subr.mxu0 0.0
        %1235 = vmatpush1.msra.mxu0 0.0
        %1236 = vmatprep.subr.mxu0 0.0
        %1237 = vmatpush1.msra.mxu0 0.0
        %1238 = vmatprep.subr.mxu0 0.0
        %1239 = vmatpush1.msra.mxu0 0.0
        %1240 = vmatprep.subr.mxu0 0.0
        %1241 = vmatpush1.msra.mxu0 0.0
        %1242 = vmatprep.subr.mxu0 0.0
        %1243 = vmatpush1.msra.mxu0 0.0
        %1244 = vmatprep.subr.mxu0 0.0
        %1245 = vmatpush1.msra.mxu0 0.0
        %1246 = vmatprep.subr.mxu0 0.0
        %1247 = vmatpush1.msra.mxu0 0.0
        %1248 = vmatprep.subr.mxu0 0.0
        %1249 = vmatpush1.msra.mxu0 0.0
        %1250 = vmatprep.subr.mxu0 0.0
        %1251 = vmatpush1.msra.mxu0 0.0
        %1252 = vmatprep.subr.mxu0 0.0
        %1253 = vmatpush1.msra.mxu0 0.0
        %1254 = vmatprep.subr.mxu0 0.0
        %1255 = vmatpush1.msra.mxu0 0.0
        %1256 = vmatprep.subr.mxu0 0.0
        %1257 = vmatpush1.msra.mxu0 0.0
        %1258 = vmatprep.subr.mxu0 0.0
        %1259 = vmatpush1.msra.mxu0 0.0
        %1260 = vmatprep.subr.mxu0 0.0
        %1261 = vmatpush1.msra.mxu0 0.0
        %1262 = vmatprep.subr.mxu0 0.0
        %1263 = vmatpush1.msra.mxu0 0.0
        %1264 = vmatprep.subr.mxu0 0.0
        %1265 = vmatpush1.msra.mxu0 0.0
        %1266 = vmatprep.subr.mxu0 0.0
        %1267 = vmatpush1.msra.mxu0 0.0
        %1268 = vmatprep.subr.mxu0 0.0
        %1269 = vmatpush1.msra.mxu0 0.0
        %1270 = vmatprep.subr.mxu0 0.0
        %1271 = vmatpush1.msra.mxu0 0.0
        %1272 = vmatprep.subr.mxu0 0.0
        %1273 = vmatpush1.msra.mxu0 0.0
        %1274 = vmatprep.subr.mxu0 0.0
        %1275 = vmatpush1.msra.mxu0 0.0
        %1276 = vmatprep.mubr.f32.mxu0 0.0
        %1277 = vmatmul.mubr.f32.gmra.mrb[0].mxu0 %v1210
        %v1278 = vpop.f32.mrb[0].mxu0
        %v1279 = vadd.f32 %v1207, %v1278
        %v1280 = vpop.f32.mrb[0].mxu0
        %1281 = vdwg.mxu0
        %1283 = vrot.lane.b32.xlu0 %v1279, 96
        %v1284 = vpop.permute.xlu0 %1283
        %vm1285 = vcmask 64512
        %v1286 = vsel %vm1285, %v1279, 0
        %v1288 = vsel %vm1285, %v1284, 0
        %1290 = vmatprep.subr.mxu0 0.0
        %1291 = vmatpush1.xpose.msra.mxu0 %v1288
        %1292 = vmatprep.subr.mxu0 0.0
        %1293 = vmatpush1.xpose.msra.mxu0 0.0
        %1294 = vmatprep.subr.mxu0 0.0
        %1295 = vmatpush1.xpose.msra.mxu0 0.0
        %1296 = vmatprep.subr.mxu0 0.0
        %1297 = vmatpush1.xpose.msra.mxu0 0.0
        %1298 = vmatprep.subr.mxu0 0.0
        %1299 = vmatpush1.xpose.msra.mxu0 0.0
        %1300 = vmatprep.subr.mxu0 0.0
        %1301 = vmatpush1.xpose.msra.mxu0 0.0
        %1302 = vmatprep.subr.mxu0 0.0
        %1303 = vmatpush1.xpose.msra.mxu0 0.0
        %1304 = vmatprep.subr.mxu0 0.0
        %1305 = vmatpush1.xpose.msra.mxu0 0.0
        %1306 = vmatprep.subr.mxu0 0.0
        %1307 = vmatpush1.xpose.msra.mxu0 0.0
        %1308 = vmatprep.subr.mxu0 0.0
        %1309 = vmatpush1.xpose.msra.mxu0 0.0
        %1310 = vmatprep.subr.mxu0 0.0
        %1311 = vmatpush1.xpose.msra.mxu0 0.0
        %1312 = vmatprep.subr.mxu0 0.0
        %1313 = vmatpush1.xpose.msra.mxu0 0.0
        %1314 = vmatprep.subr.mxu0 0.0
        %1315 = vmatpush1.xpose.msra.mxu0 0.0
        %1316 = vmatprep.subr.mxu0 0.0
        %1317 = vmatpush1.xpose.msra.mxu0 0.0
        %1318 = vmatprep.subr.mxu0 0.0
        %1319 = vmatpush1.xpose.msra.mxu0 0.0
        %1320 = vmatprep.subr.mxu0 0.0
        %1321 = vmatpush1.xpose.msra.mxu0 0.0
        %1322 = vmatprep.subr.mxu0 0.0
        %1323 = vmatpush1.xpose.msra.mxu0 0.0
        %1324 = vmatprep.subr.mxu0 0.0
        %1325 = vmatpush1.xpose.msra.mxu0 0.0
        %1326 = vmatprep.subr.mxu0 0.0
        %1327 = vmatpush1.xpose.msra.mxu0 0.0
        %1328 = vmatprep.subr.mxu0 0.0
        %1329 = vmatpush1.xpose.msra.mxu0 0.0
        %1330 = vmatprep.subr.mxu0 0.0
        %1331 = vmatpush1.xpose.msra.mxu0 0.0
        %1332 = vmatprep.subr.mxu0 0.0
        %1333 = vmatpush1.xpose.msra.mxu0 0.0
        %1334 = vmatprep.subr.mxu0 0.0
        %1335 = vmatpush1.xpose.msra.mxu0 0.0
        %1336 = vmatprep.subr.mxu0 0.0
        %1337 = vmatpush1.xpose.msra.mxu0 0.0
        %1338 = vmatprep.subr.mxu0 0.0
        %1339 = vmatpush1.xpose.msra.mxu0 0.0
        %1340 = vmatprep.subr.mxu0 0.0
        %1341 = vmatpush1.xpose.msra.mxu0 0.0
        %1342 = vmatprep.subr.mxu0 0.0
        %1343 = vmatpush1.xpose.msra.mxu0 0.0
        %1344 = vmatprep.subr.mxu0 0.0
        %1345 = vmatpush1.xpose.msra.mxu0 0.0
        %1346 = vmatprep.subr.mxu0 0.0
        %1347 = vmatpush1.xpose.msra.mxu0 0.0
        %1348 = vmatprep.subr.mxu0 0.0
        %1349 = vmatpush1.xpose.msra.mxu0 0.0
        %1350 = vmatprep.subr.mxu0 0.0
        %1351 = vmatpush1.xpose.msra.mxu0 0.0
        %1352 = vmatprep.subr.mxu0 0.0
        %1353 = vmatpush1.xpose.msra.mxu0 0.0
        %1354 = vmatprep.mubr.f32.mxu0 0.0
        %1355 = vmatmul.mubr.f32.gmra.mrb[0].mxu0 %v1286
        %v1356 = vpop.f32.mrb[0].mxu0
        %v1357 = vadd.f32 0.0, %v1356
        %v1358 = vpop.f32.mrb[0].mxu0
        %1359 = vdwg.mxu0
        %v1360 = vmul.f32 %v1357, 0.35355338
        %v1361 = vsel %vm1285, %v1360, -inf
        %1362 = vmax.xlane.f32.xlu0 %v1361
        %v1363 = vpop.xlane.xlu0 %1362
        %v1364 = vsub.f32 %v1360, %v1363
        %v1365 = vmul.f32 %v1364, 1.442695
        %v1366 = vpow.pop %v1365
        %v1367 = vsel %vm1285, %v1366, 0.0
        %1368 = vadd.xlane.f32.xlu0 %v1367
        %v1369 = vpop.xlane.xlu0 %1368
        %v1370 = vrcp.pop %v1369
        %v1371 = vmul.f32 %v1366, %v1370
        %1372 = vrot.lane.b32.xlu0 %v1279, 64
        %v1373 = vpop.permute.xlu0 %1372
        %v1376 = vsel %vm1285, %v1371, 0
        %1378 = vmatprep.subr.mxu0 0.0
        %1379 = vmatpush1.msra.mxu0 %v1373
        %1380 = vmatprep.subr.mxu0 0.0
        %1381 = vmatpush1.msra.mxu0 0.0
        %1382 = vmatprep.subr.mxu0 0.0
        %1383 = vmatpush1.msra.mxu0 0.0
        %1384 = vmatprep.subr.mxu0 0.0
        %1385 = vmatpush1.msra.mxu0 0.0
        %1386 = vmatprep.subr.mxu0 0.0
        %1387 = vmatpush1.msra.mxu0 0.0
        %1388 = vmatprep.subr.mxu0 0.0
        %1389 = vmatpush1.msra.mxu0 0.0
        %1390 = vmatprep.subr.mxu0 0.0
        %1391 = vmatpush1.msra.mxu0 0.0
        %1392 = vmatprep.subr.mxu0 0.0
        %1393 = vmatpush1.msra.mxu0 0.0
        %1394 = vmatprep.subr.mxu0 0.0
        %1395 = vmatpush1.msra.mxu0 0.0
        %1396 = vmatprep.subr.mxu0 0.0
        %1397 = vmatpush1.msra.mxu0 0.0
        %1398 = vmatprep.subr.mxu0 0.0
        %1399 = vmatpush1.msra.mxu0 0.0
        %1400 = vmatprep.subr.mxu0 0.0
        %1401 = vmatpush1.msra.mxu0 0.0
        %1402 = vmatprep.subr.mxu0 0.0
        %1403 = vmatpush1.msra.mxu0 0.0
        %1404 = vmatprep.subr.mxu0 0.0
        %1405 = vmatpush1.msra.mxu0 0.0
        %1406 = vmatprep.subr.mxu0 0.0
        %1407 = vmatpush1.msra.mxu0 0.0
        %1408 = vmatprep.subr.mxu0 0.0
        %1409 = vmatpush1.msra.mxu0 0.0
        %1410 = vmatprep.subr.mxu0 0.0
        %1411 = vmatpush1.msra.mxu0 0.0
        %1412 = vmatprep.subr.mxu0 0.0
        %1413 = vmatpush1.msra.mxu0 0.0
        %1414 = vmatprep.subr.mxu0 0.0
        %1415 = vmatpush1.msra.mxu0 0.0
        %1416 = vmatprep.subr.mxu0 0.0
        %1417 = vmatpush1.msra.mxu0 0.0
        %1418 = vmatprep.subr.mxu0 0.0
        %1419 = vmatpush1.msra.mxu0 0.0
        %1420 = vmatprep.subr.mxu0 0.0
        %1421 = vmatpush1.msra.mxu0 0.0
        %1422 = vmatprep.subr.mxu0 0.0
        %1423 = vmatpush1.msra.mxu0 0.0
        %1424 = vmatprep.subr.mxu0 0.0
        %1425 = vmatpush1.msra.mxu0 0.0
        %1426 = vmatprep.subr.mxu0 0.0
        %1427 = vmatpush1.msra.mxu0 0.0
        %1428 = vmatprep.subr.mxu0 0.0
        %1429 = vmatpush1.msra.mxu0 0.0
        %1430 = vmatprep.subr.mxu0 0.0
        %1431 = vmatpush1.msra.mxu0 0.0
        %1432 = vmatprep.subr.mxu0 0.0
        %1433 = vmatpush1.msra.mxu0 0.0
        %1434 = vmatprep.subr.mxu0 0.0
        %1435 = vmatpush1.msra.mxu0 0.0
        %1436 = vmatprep.subr.mxu0 0.0
        %1437 = vmatpush1.msra.mxu0 0.0
        %1438 = vmatprep.subr.mxu0 0.0
        %1439 = vmatpush1.msra.mxu0 0.0
        %1440 = vmatprep.subr.mxu0 0.0
        %1441 = vmatpush1.msra.mxu0 0.0
        %1442 = vmatprep.mubr.f32.mxu0 0.0
        %1443 = vmatmul.mubr.f32.gmra.mrb[0].mxu0 %v1376
        %v1444 = vpop.f32.mrb[0].mxu0
        %v1445 = vadd.f32 0.0, %v1444
        %v1446 = vpop.f32.mrb[0].mxu0
        %1447 = vdwg.mxu0
        %1448 = vrot.lane.b32.xlu0 %v1279, 120
        %v1449 = vpop.permute.xlu0 %1448
        %1450 = vrot.lane.b32.xlu0 %v1279, 88
        %v1451 = vpop.permute.xlu0 %1450
        %v1452 = vsel %vm1285, %v1449, 0
        %v1454 = vsel %vm1285, %v1451, 0
        %1456 = vmatprep.subr.mxu0 0.0
        %1457 = vmatpush1.xpose.msra.mxu0 %v1454
        %1458 = vmatprep.subr.mxu0 0.0
        %1459 = vmatpush1.xpose.msra.mxu0 0.0
        %1460 = vmatprep.subr.mxu0 0.0
        %1461 = vmatpush1.xpose.msra.mxu0 0.0
        %1462 = vmatprep.subr.mxu0 0.0
        %1463 = vmatpush1.xpose.msra.mxu0 0.0
        %1464 = vmatprep.subr.mxu0 0.0
        %1465 = vmatpush1.xpose.msra.mxu0 0.0
        %1466 = vmatprep.subr.mxu0 0.0
        %1467 = vmatpush1.xpose.msra.mxu0 0.0
        %1468 = vmatprep.subr.mxu0 0.0
        %1469 = vmatpush1.xpose.msra.mxu0 0.0
        %1470 = vmatprep.subr.mxu0 0.0
        %1471 = vmatpush1.xpose.msra.mxu0 0.0
        %1472 = vmatprep.subr.mxu0 0.0
        %1473 = vmatpush1.xpose.msra.mxu0 0.0
        %1474 = vmatprep.subr.mxu0 0.0
        %1475 = vmatpush1.xpose.msra.mxu0 0.0
        %1476 = vmatprep.subr.mxu0 0.0
        %1477 = vmatpush1.xpose.msra.mxu0 0.0
        %1478 = vmatprep.subr.mxu0 0.0
        %1479 = vmatpush1.xpose.msra.mxu0 0.0
        %1480 = vmatprep.subr.mxu0 0.0
        %1481 = vmatpush1.xpose.msra.mxu0 0.0
        %1482 = vmatprep.subr.mxu0 0.0
        %1483 = vmatpush1.xpose.msra.mxu0 0.0
        %1484 = vmatprep.subr.mxu0 0.0
        %1485 = vmatpush1.xpose.msra.mxu0 0.0
        %1486 = vmatprep.subr.mxu0 0.0
        %1487 = vmatpush1.xpose.msra.mxu0 0.0
        %1488 = vmatprep.subr.mxu0 0.0
        %1489 = vmatpush1.xpose.msra.mxu0 0.0
        %1490 = vmatprep.subr.mxu0 0.0
        %1491 = vmatpush1.xpose.msra.mxu0 0.0
        %1492 = vmatprep.subr.mxu0 0.0
        %1493 = vmatpush1.xpose.msra.mxu0 0.0
        %1494 = vmatprep.subr.mxu0 0.0
        %1495 = vmatpush1.xpose.msra.mxu0 0.0
        %1496 = vmatprep.subr.mxu0 0.0
        %1497 = vmatpush1.xpose.msra.mxu0 0.0
        %1498 = vmatprep.subr.mxu0 0.0
        %1499 = vmatpush1.xpose.msra.mxu0 0.0
        %1500 = vmatprep.subr.mxu0 0.0
        %1501 = vmatpush1.xpose.msra.mxu0 0.0
        %1502 = vmatprep.subr.mxu0 0.0
        %1503 = vmatpush1.xpose.msra.mxu0 0.0
        %1504 = vmatprep.subr.mxu0 0.0
        %1505 = vmatpush1.xpose.msra.mxu0 0.0
        %1506 = vmatprep.subr.mxu0 0.0
        %1507 = vmatpush1.xpose.msra.mxu0 0.0
        %1508 = vmatprep.subr.mxu0 0.0
        %1509 = vmatpush1.xpose.msra.mxu0 0.0
        %1510 = vmatprep.subr.mxu0 0.0
        %1511 = vmatpush1.xpose.msra.mxu0 0.0
        %1512 = vmatprep.subr.mxu0 0.0
        %1513 = vmatpush1.xpose.msra.mxu0 0.0
        %1514 = vmatprep.subr.mxu0 0.0
        %1515 = vmatpush1.xpose.msra.mxu0 0.0
        %1516 = vmatprep.subr.mxu0 0.0
        %1517 = vmatpush1.xpose.msra.mxu0 0.0
        %1518 = vmatprep.subr.mxu0 0.0
        %1519 = vmatpush1.xpose.msra.mxu0 0.0
        %1520 = vmatprep.mubr.f32.mxu0 0.0
        %1521 = vmatmul.mubr.f32.gmra.mrb[0].mxu0 %v1452
        %v1522 = vpop.f32.mrb[0].mxu0
        %v1523 = vadd.f32 0.0, %v1522
        %v1524 = vpop.f32.mrb[0].mxu0
        %1525 = vdwg.mxu0
        %v1526 = vmul.f32 %v1523, 0.35355338
        %v1527 = vsel %vm1285, %v1526, -inf
        %1528 = vmax.xlane.f32.xlu0 %v1527
        %v1529 = vpop.xlane.xlu0 %1528
        %v1530 = vsub.f32 %v1526, %v1529
        %v1531 = vmul.f32 %v1530, 1.442695
        %v1532 = vpow.pop %v1531
        %v1533 = vsel %vm1285, %v1532, 0.0
        %1534 = vadd.xlane.f32.xlu0 %v1533
        %v1535 = vpop.xlane.xlu0 %1534
        %v1536 = vrcp.pop %v1535
        %v1537 = vmul.f32 %v1532, %v1536
        %1538 = vrot.lane.b32.xlu0 %v1279, 56
        %v1539 = vpop.permute.xlu0 %1538
        %v1542 = vsel %vm1285, %v1537, 0
        %1544 = vmatprep.subr.mxu0 0.0
        %1545 = vmatpush1.msra.mxu0 %v1539
        %1546 = vmatprep.subr.mxu0 0.0
        %1547 = vmatpush1.msra.mxu0 0.0
        %1548 = vmatprep.subr.mxu0 0.0
        %1549 = vmatpush1.msra.mxu0 0.0
        %1550 = vmatprep.subr.mxu0 0.0
        %1551 = vmatpush1.msra.mxu0 0.0
        %1552 = vmatprep.subr.mxu0 0.0
        %1553 = vmatpush1.msra.mxu0 0.0
        %1554 = vmatprep.subr.mxu0 0.0
        %1555 = vmatpush1.msra.mxu0 0.0
        %1556 = vmatprep.subr.mxu0 0.0
        %1557 = vmatpush1.msra.mxu0 0.0
        %1558 = vmatprep.subr.mxu0 0.0
        %1559 = vmatpush1.msra.mxu0 0.0
        %1560 = vmatprep.subr.mxu0 0.0
        %1561 = vmatpush1.msra.mxu0 0.0
        %1562 = vmatprep.subr.mxu0 0.0
        %1563 = vmatpush1.msra.mxu0 0.0
        %1564 = vmatprep.subr.mxu0 0.0
        %1565 = vmatpush1.msra.mxu0 0.0
        %1566 = vmatprep.subr.mxu0 0.0
        %1567 = vmatpush1.msra.mxu0 0.0
        %1568 = vmatprep.subr.mxu0 0.0
        %1569 = vmatpush1.msra.mxu0 0.0
        %1570 = vmatprep.subr.mxu0 0.0
        %1571 = vmatpush1.msra.mxu0 0.0
        %1572 = vmatprep.subr.mxu0 0.0
        %1573 = vmatpush1.msra.mxu0 0.0
        %1574 = vmatprep.subr.mxu0 0.0
        %1575 = vmatpush1.msra.mxu0 0.0
        %1576 = vmatprep.subr.mxu0 0.0
        %1577 = vmatpush1.msra.mxu0 0.0
        %1578 = vmatprep.subr.mxu0 0.0
        %1579 = vmatpush1.msra.mxu0 0.0
        %1580 = vmatprep.subr.mxu0 0.0
        %1581 = vmatpush1.msra.mxu0 0.0
        %1582 = vmatprep.subr.mxu0 0.0
        %1583 = vmatpush1.msra.mxu0 0.0
        %1584 = vmatprep.subr.mxu0 0.0
        %1585 = vmatpush1.msra.mxu0 0.0
        %1586 = vmatprep.subr.mxu0 0.0
        %1587 = vmatpush1.msra.mxu0 0.0
        %1588 = vmatprep.subr.mxu0 0.0
        %1589 = vmatpush1.msra.mxu0 0.0
        %1590 = vmatprep.subr.mxu0 0.0
        %1591 = vmatpush1.msra.mxu0 0.0
        %1592 = vmatprep.subr.mxu0 0.0
        %1593 = vmatpush1.msra.mxu0 0.0
        %1594 = vmatprep.subr.mxu0 0.0
        %1595 = vmatpush1.msra.mxu0 0.0
        %1596 = vmatprep.subr.mxu0 0.0
        %1597 = vmatpush1.msra.mxu0 0.0
        %1598 = vmatprep.subr.mxu0 0.0
        %1599 = vmatpush1.msra.mxu0 0.0
        %1600 = vmatprep.subr.mxu0 0.0
        %1601 = vmatpush1.msra.mxu0 0.0
        %1602 = vmatprep.subr.mxu0 0.0
        %1603 = vmatpush1.msra.mxu0 0.0
        %1604 = vmatprep.subr.mxu0 0.0
        %1605 = vmatpush1.msra.mxu0 0.0
        %1606 = vmatprep.subr.mxu0 0.0
        %1607 = vmatpush1.msra.mxu0 0.0
        %1608 = vmatprep.mubr.f32.mxu0 0.0
        %1609 = vmatmul.mubr.f32.gmra.mrb[0].mxu0 %v1542
        %v1610 = vpop.f32.mrb[0].mxu0
        %v1611 = vadd.f32 0.0, %v1610
        %v1612 = vpop.f32.mrb[0].mxu0
        %1613 = vdwg.mxu0
        %1614 = vrot.lane.b32.xlu0 %v1279, 112
        %v1615 = vpop.permute.xlu0 %1614
        %1616 = vrot.lane.b32.xlu0 %v1279, 80
        %v1617 = vpop.permute.xlu0 %1616
        %v1618 = vsel %vm1285, %v1615, 0
        %v1620 = vsel %vm1285, %v1617, 0
        %1622 = vmatprep.subr.mxu0 0.0
        %1623 = vmatpush1.xpose.msra.mxu0 %v1620
        %1624 = vmatprep.subr.mxu0 0.0
        %1625 = vmatpush1.xpose.msra.mxu0 0.0
        %1626 = vmatprep.subr.mxu0 0.0
        %1627 = vmatpush1.xpose.msra.mxu0 0.0
        %1628 = vmatprep.subr.mxu0 0.0
        %1629 = vmatpush1.xpose.msra.mxu0 0.0
        %1630 = vmatprep.subr.mxu0 0.0
        %1631 = vmatpush1.xpose.msra.mxu0 0.0
        %1632 = vmatprep.subr.mxu0 0.0
        %1633 = vmatpush1.xpose.msra.mxu0 0.0
        %1634 = vmatprep.subr.mxu0 0.0
        %1635 = vmatpush1.xpose.msra.mxu0 0.0
        %1636 = vmatprep.subr.mxu0 0.0
        %1637 = vmatpush1.xpose.msra.mxu0 0.0
        %1638 = vmatprep.subr.mxu0 0.0
        %1639 = vmatpush1.xpose.msra.mxu0 0.0
        %1640 = vmatprep.subr.mxu0 0.0
        %1641 = vmatpush1.xpose.msra.mxu0 0.0
        %1642 = vmatprep.subr.mxu0 0.0
        %1643 = vmatpush1.xpose.msra.mxu0 0.0
        %1644 = vmatprep.subr.mxu0 0.0
        %1645 = vmatpush1.xpose.msra.mxu0 0.0
        %1646 = vmatprep.subr.mxu0 0.0
        %1647 = vmatpush1.xpose.msra.mxu0 0.0
        %1648 = vmatprep.subr.mxu0 0.0
        %1649 = vmatpush1.xpose.msra.mxu0 0.0
        %1650 = vmatprep.subr.mxu0 0.0
        %1651 = vmatpush1.xpose.msra.mxu0 0.0
        %1652 = vmatprep.subr.mxu0 0.0
        %1653 = vmatpush1.xpose.msra.mxu0 0.0
        %1654 = vmatprep.subr.mxu0 0.0
        %1655 = vmatpush1.xpose.msra.mxu0 0.0
        %1656 = vmatprep.subr.mxu0 0.0
        %1657 = vmatpush1.xpose.msra.mxu0 0.0
        %1658 = vmatprep.subr.mxu0 0.0
        %1659 = vmatpush1.xpose.msra.mxu0 0.0
        %1660 = vmatprep.subr.mxu0 0.0
        %1661 = vmatpush1.xpose.msra.mxu0 0.0
        %1662 = vmatprep.subr.mxu0 0.0
        %1663 = vmatpush1.xpose.msra.mxu0 0.0
        %1664 = vmatprep.subr.mxu0 0.0
        %1665 = vmatpush1.xpose.msra.mxu0 0.0
        %1666 = vmatprep.subr.mxu0 0.0
        %1667 = vmatpush1.xpose.msra.mxu0 0.0
        %1668 = vmatprep.subr.mxu0 0.0
        %1669 = vmatpush1.xpose.msra.mxu0 0.0
        %1670 = vmatprep.subr.mxu0 0.0
        %1671 = vmatpush1.xpose.msra.mxu0 0.0
        %1672 = vmatprep.subr.mxu0 0.0
        %1673 = vmatpush1.xpose.msra.mxu0 0.0
        %1674 = vmatprep.subr.mxu0 0.0
        %1675 = vmatpush1.xpose.msra.mxu0 0.0
        %1676 = vmatprep.subr.mxu0 0.0
        %1677 = vmatpush1.xpose.msra.mxu0 0.0
        %1678 = vmatprep.subr.mxu0 0.0
        %1679 = vmatpush1.xpose.msra.mxu0 0.0
        %1680 = vmatprep.subr.mxu0 0.0
        %1681 = vmatpush1.xpose.msra.mxu0 0.0
        %1682 = vmatprep.subr.mxu0 0.0
        %1683 = vmatpush1.xpose.msra.mxu0 0.0
        %1684 = vmatprep.subr.mxu0 0.0
        %1685 = vmatpush1.xpose.msra.mxu0 0.0
        %1686 = vmatprep.mubr.f32.mxu0 0.0
        %1687 = vmatmul.mubr.f32.gmra.mrb[0].mxu0 %v1618
        %v1688 = vpop.f32.mrb[0].mxu0
        %v1689 = vadd.f32 0.0, %v1688
        %v1690 = vpop.f32.mrb[0].mxu0
        %1691 = vdwg.mxu0
        %v1692 = vmul.f32 %v1689, 0.35355338
        %v1693 = vsel %vm1285, %v1692, -inf
        %1694 = vmax.xlane.f32.xlu0 %v1693
        %v1695 = vpop.xlane.xlu0 %1694
        %v1696 = vsub.f32 %v1692, %v1695
        %v1697 = vmul.f32 %v1696, 1.442695
        %v1698 = vpow.pop %v1697
        %v1699 = vsel %vm1285, %v1698, 0.0
        %1700 = vadd.xlane.f32.xlu0 %v1699
        %v1701 = vpop.xlane.xlu0 %1700
        %v1702 = vrcp.pop %v1701
        %v1703 = vmul.f32 %v1698, %v1702
        %1704 = vrot.lane.b32.xlu0 %v1279, 48
        %v1705 = vpop.permute.xlu0 %1704
        %v1708 = vsel %vm1285, %v1703, 0
        %1710 = vmatprep.subr.mxu0 0.0
        %1711 = vmatpush1.msra.mxu0 %v1705
        %1712 = vmatprep.subr.mxu0 0.0
        %1713 = vmatpush1.msra.mxu0 0.0
        %1714 = vmatprep.subr.mxu0 0.0
        %1715 = vmatpush1.msra.mxu0 0.0
        %1716 = vmatprep.subr.mxu0 0.0
        %1717 = vmatpush1.msra.mxu0 0.0
        %1718 = vmatprep.subr.mxu0 0.0
        %1719 = vmatpush1.msra.mxu0 0.0
        %1720 = vmatprep.subr.mxu0 0.0
        %1721 = vmatpush1.msra.mxu0 0.0
        %1722 = vmatprep.subr.mxu0 0.0
        %1723 = vmatpush1.msra.mxu0 0.0
        %1724 = vmatprep.subr.mxu0 0.0
        %1725 = vmatpush1.msra.mxu0 0.0
        %1726 = vmatprep.subr.mxu0 0.0
        %1727 = vmatpush1.msra.mxu0 0.0
        %1728 = vmatprep.subr.mxu0 0.0
        %1729 = vmatpush1.msra.mxu0 0.0
        %1730 = vmatprep.subr.mxu0 0.0
        %1731 = vmatpush1.msra.mxu0 0.0
        %1732 = vmatprep.subr.mxu0 0.0
        %1733 = vmatpush1.msra.mxu0 0.0
        %1734 = vmatprep.subr.mxu0 0.0
        %1735 = vmatpush1.msra.mxu0 0.0
        %1736 = vmatprep.subr.mxu0 0.0
        %1737 = vmatpush1.msra.mxu0 0.0
        %1738 = vmatprep.subr.mxu0 0.0
        %1739 = vmatpush1.msra.mxu0 0.0
        %1740 = vmatprep.subr.mxu0 0.0
        %1741 = vmatpush1.msra.mxu0 0.0
        %1742 = vmatprep.subr.mxu0 0.0
        %1743 = vmatpush1.msra.mxu0 0.0
        %1744 = vmatprep.subr.mxu0 0.0
        %1745 = vmatpush1.msra.mxu0 0.0
        %1746 = vmatprep.subr.mxu0 0.0
        %1747 = vmatpush1.msra.mxu0 0.0
        %1748 = vmatprep.subr.mxu0 0.0
        %1749 = vmatpush1.msra.mxu0 0.0
        %1750 = vmatprep.subr.mxu0 0.0
        %1751 = vmatpush1.msra.mxu0 0.0
        %1752 = vmatprep.subr.mxu0 0.0
        %1753 = vmatpush1.msra.mxu0 0.0
        %1754 = vmatprep.subr.mxu0 0.0
        %1755 = vmatpush1.msra.mxu0 0.0
        %1756 = vmatprep.subr.mxu0 0.0
        %1757 = vmatpush1.msra.mxu0 0.0
        %1758 = vmatprep.subr.mxu0 0.0
        %1759 = vmatpush1.msra.mxu0 0.0
        %1760 = vmatprep.subr.mxu0 0.0
        %1761 = vmatpush1.msra.mxu0 0.0
        %1762 = vmatprep.subr.mxu0 0.0
        %1763 = vmatpush1.msra.mxu0 0.0
        %1764 = vmatprep.subr.mxu0 0.0
        %1765 = vmatpush1.msra.mxu0 0.0
        %1766 = vmatprep.subr.mxu0 0.0
        %1767 = vmatpush1.msra.mxu0 0.0
        %1768 = vmatprep.subr.mxu0 0.0
        %1769 = vmatpush1.msra.mxu0 0.0
        %1770 = vmatprep.subr.mxu0 0.0
        %1771 = vmatpush1.msra.mxu0 0.0
        %1772 = vmatprep.subr.mxu0 0.0
        %1773 = vmatpush1.msra.mxu0 0.0
        %1774 = vmatprep.mubr.f32.mxu0 0.0
        %1775 = vmatmul.mubr.f32.gmra.mrb[0].mxu0 %v1708
        %v1776 = vpop.f32.mrb[0].mxu0
        %v1777 = vadd.f32 0.0, %v1776
        %v1778 = vpop.f32.mrb[0].mxu0
        %1779 = vdwg.mxu0
        %1780 = vrot.lane.b32.xlu0 %v1279, 104
        %v1781 = vpop.permute.xlu0 %1780
        %1782 = vrot.lane.b32.xlu0 %v1279, 72
        %v1783 = vpop.permute.xlu0 %1782
        %v1784 = vsel %vm1285, %v1781, 0
        %v1786 = vsel %vm1285, %v1783, 0
        %1788 = vmatprep.subr.mxu0 0.0
        %1789 = vmatpush1.xpose.msra.mxu0 %v1786
        %1790 = vmatprep.subr.mxu0 0.0
        %1791 = vmatpush1.xpose.msra.mxu0 0.0
        %1792 = vmatprep.subr.mxu0 0.0
        %1793 = vmatpush1.xpose.msra.mxu0 0.0
        %1794 = vmatprep.subr.mxu0 0.0
        %1795 = vmatpush1.xpose.msra.mxu0 0.0
        %1796 = vmatprep.subr.mxu0 0.0
        %1797 = vmatpush1.xpose.msra.mxu0 0.0
        %1798 = vmatprep.subr.mxu0 0.0
        %1799 = vmatpush1.xpose.msra.mxu0 0.0
        %1800 = vmatprep.subr.mxu0 0.0
        %1801 = vmatpush1.xpose.msra.mxu0 0.0
        %1802 = vmatprep.subr.mxu0 0.0
        %1803 = vmatpush1.xpose.msra.mxu0 0.0
        %1804 = vmatprep.subr.mxu0 0.0
        %1805 = vmatpush1.xpose.msra.mxu0 0.0
        %1806 = vmatprep.subr.mxu0 0.0
        %1807 = vmatpush1.xpose.msra.mxu0 0.0
        %1808 = vmatprep.subr.mxu0 0.0
        %1809 = vmatpush1.xpose.msra.mxu0 0.0
        %1810 = vmatprep.subr.mxu0 0.0
        %1811 = vmatpush1.xpose.msra.mxu0 0.0
        %1812 = vmatprep.subr.mxu0 0.0
        %1813 = vmatpush1.xpose.msra.mxu0 0.0
        %1814 = vmatprep.subr.mxu0 0.0
        %1815 = vmatpush1.xpose.msra.mxu0 0.0
        %1816 = vmatprep.subr.mxu0 0.0
        %1817 = vmatpush1.xpose.msra.mxu0 0.0
        %1818 = vmatprep.subr.mxu0 0.0
        %1819 = vmatpush1.xpose.msra.mxu0 0.0
        %1820 = vmatprep.subr.mxu0 0.0
        %1821 = vmatpush1.xpose.msra.mxu0 0.0
        %1822 = vmatprep.subr.mxu0 0.0
        %1823 = vmatpush1.xpose.msra.mxu0 0.0
        %1824 = vmatprep.subr.mxu0 0.0
        %1825 = vmatpush1.xpose.msra.mxu0 0.0
        %1826 = vmatprep.subr.mxu0 0.0
        %1827 = vmatpush1.xpose.msra.mxu0 0.0
        %1828 = vmatprep.subr.mxu0 0.0
        %1829 = vmatpush1.xpose.msra.mxu0 0.0
        %1830 = vmatprep.subr.mxu0 0.0
        %1831 = vmatpush1.xpose.msra.mxu0 0.0
        %1832 = vmatprep.subr.mxu0 0.0
        %1833 = vmatpush1.xpose.msra.mxu0 0.0
        %1834 = vmatprep.subr.mxu0 0.0
        %1835 = vmatpush1.xpose.msra.mxu0 0.0
        %1836 = vmatprep.subr.mxu0 0.0
        %1837 = vmatpush1.xpose.msra.mxu0 0.0
        %1838 = vmatprep.subr.mxu0 0.0
        %1839 = vmatpush1.xpose.msra.mxu0 0.0
        %1840 = vmatprep.subr.mxu0 0.0
        %1841 = vmatpush1.xpose.msra.mxu0 0.0
        %1842 = vmatprep.subr.mxu0 0.0
        %1843 = vmatpush1.xpose.msra.mxu0 0.0
        %1844 = vmatprep.subr.mxu0 0.0
        %1845 = vmatpush1.xpose.msra.mxu0 0.0
        %1846 = vmatprep.subr.mxu0 0.0
        %1847 = vmatpush1.xpose.msra.mxu0 0.0
        %1848 = vmatprep.subr.mxu0 0.0
        %1849 = vmatpush1.xpose.msra.mxu0 0.0
        %1850 = vmatprep.subr.mxu0 0.0
        %1851 = vmatpush1.xpose.msra.mxu0 0.0
        %1852 = vmatprep.mubr.f32.mxu0 0.0
        %1853 = vmatmul.mubr.f32.gmra.mrb[0].mxu0 %v1784
        %v1854 = vpop.f32.mrb[0].mxu0
        %v1855 = vadd.f32 0.0, %v1854
        %v1856 = vpop.f32.mrb[0].mxu0
        %1857 = vdwg.mxu0
        %v1858 = vmul.f32 %v1855, 0.35355338
        %v1859 = vsel %vm1285, %v1858, -inf
        %1860 = vmax.xlane.f32.xlu0 %v1859
        %v1861 = vpop.xlane.xlu0 %1860
        %v1862 = vsub.f32 %v1858, %v1861
        %v1863 = vmul.f32 %v1862, 1.442695
        %v1864 = vpow.pop %v1863
        %v1865 = vsel %vm1285, %v1864, 0.0
        %1866 = vadd.xlane.f32.xlu0 %v1865
        %v1867 = vpop.xlane.xlu0 %1866
        %v1868 = vrcp.pop %v1867
        %v1869 = vmul.f32 %v1864, %v1868
        %1870 = vrot.lane.b32.xlu0 %v1279, 40
        %v1871 = vpop.permute.xlu0 %1870
        %v1874 = vsel %vm1285, %v1869, 0
        %1876 = vmatprep.subr.mxu0 0.0
        %1877 = vmatpush1.msra.mxu0 %v1871
        %1878 = vmatprep.subr.mxu0 0.0
        %1879 = vmatpush1.msra.mxu0 0.0
        %1880 = vmatprep.subr.mxu0 0.0
        %1881 = vmatpush1.msra.mxu0 0.0
        %1882 = vmatprep.subr.mxu0 0.0
        %1883 = vmatpush1.msra.mxu0 0.0
        %1884 = vmatprep.subr.mxu0 0.0
        %1885 = vmatpush1.msra.mxu0 0.0
        %1886 = vmatprep.subr.mxu0 0.0
        %1887 = vmatpush1.msra.mxu0 0.0
        %1888 = vmatprep.subr.mxu0 0.0
        %1889 = vmatpush1.msra.mxu0 0.0
        %1890 = vmatprep.subr.mxu0 0.0
        %1891 = vmatpush1.msra.mxu0 0.0
        %1892 = vmatprep.subr.mxu0 0.0
        %1893 = vmatpush1.msra.mxu0 0.0
        %1894 = vmatprep.subr.mxu0 0.0
        %1895 = vmatpush1.msra.mxu0 0.0
        %1896 = vmatprep.subr.mxu0 0.0
        %1897 = vmatpush1.msra.mxu0 0.0
        %1898 = vmatprep.subr.mxu0 0.0
        %1899 = vmatpush1.msra.mxu0 0.0
        %1900 = vmatprep.subr.mxu0 0.0
        %1901 = vmatpush1.msra.mxu0 0.0
        %1902 = vmatprep.subr.mxu0 0.0
        %1903 = vmatpush1.msra.mxu0 0.0
        %1904 = vmatprep.subr.mxu0 0.0
        %1905 = vmatpush1.msra.mxu0 0.0
        %1906 = vmatprep.subr.mxu0 0.0
        %1907 = vmatpush1.msra.mxu0 0.0
        %1908 = vmatprep.subr.mxu0 0.0
        %1909 = vmatpush1.msra.mxu0 0.0
        %1910 = vmatprep.subr.mxu0 0.0
        %1911 = vmatpush1.msra.mxu0 0.0
        %1912 = vmatprep.subr.mxu0 0.0
        %1913 = vmatpush1.msra.mxu0 0.0
        %1914 = vmatprep.subr.mxu0 0.0
        %1915 = vmatpush1.msra.mxu0 0.0
        %1916 = vmatprep.subr.mxu0 0.0
        %1917 = vmatpush1.msra.mxu0 0.0
        %1918 = vmatprep.subr.mxu0 0.0
        %1919 = vmatpush1.msra.mxu0 0.0
        %1920 = vmatprep.subr.mxu0 0.0
        %1921 = vmatpush1.msra.mxu0 0.0
        %1922 = vmatprep.subr.mxu0 0.0
        %1923 = vmatpush1.msra.mxu0 0.0
        %1924 = vmatprep.subr.mxu0 0.0
        %1925 = vmatpush1.msra.mxu0 0.0
        %1926 = vmatprep.subr.mxu0 0.0
        %1927 = vmatpush1.msra.mxu0 0.0
        %1928 = vmatprep.subr.mxu0 0.0
        %1929 = vmatpush1.msra.mxu0 0.0
        %1930 = vmatprep.subr.mxu0 0.0
        %1931 = vmatpush1.msra.mxu0 0.0
        %1932 = vmatprep.subr.mxu0 0.0
        %1933 = vmatpush1.msra.mxu0 0.0
        %1934 = vmatprep.subr.mxu0 0.0
        %1935 = vmatpush1.msra.mxu0 0.0
        %1936 = vmatprep.subr.mxu0 0.0
        %1937 = vmatpush1.msra.mxu0 0.0
        %1938 = vmatprep.subr.mxu0 0.0
        %1939 = vmatpush1.msra.mxu0 0.0
        %1940 = vmatprep.mubr.f32.mxu0 0.0
        %1941 = vmatmul.mubr.f32.gmra.mrb[0].mxu0 %v1874
        %v1942 = vpop.f32.mrb[0].mxu0
        %v1943 = vadd.f32 0.0, %v1942
        %v1944 = vpop.f32.mrb[0].mxu0
        %1945 = vdwg.mxu0
        %1947 = vrot.lane.b32.xlu0 %v1611, 8
        %v1948 = vpop.permute.xlu0 %1947
        %1951 = vrot.lane.b32.xlu0 %v1777, 16
        %v1952 = vpop.permute.xlu0 %1951
        %1955 = vrot.lane.b32.xlu0 %v1943, 24
        %v1956 = vpop.permute.xlu0 %1955
        %v1958 = vsel %vm1285, %v1445, %v1948
        %vm1959 = vcmask 130048
        %v1960 = vsel %vm1959, %v1958, %v1952
        %vm1961 = vcmask 195584
        %v1962 = vsel %vm1961, %v1960, %v1956
        %v1963 = vld [vmem:[#allocation5] sm:$0xff]
        %v1964 = vld [vmem:[#allocation5 + $0x8] sm:$0xff]
        %v1965 = vld [vmem:[#allocation5 + $0x10] sm:$0xff]
        %v1966 = vld [vmem:[#allocation5 + $0x18] sm:$0xff]
        %v1967 = vld [vmem:[%s8] sm:$0x1]
        %v1969 = vlaneseq
        %v1970 = vshrl.u32 %v1969, 7
        %v1971 = vsub.s32 0, %v1970
        %v1972 = vrot.slane %v1967, %v1971
        %v1975 = vsel %vm925, %v1962, 0
        %1977 = vmatprep.subr.mxu0 0.0
        %1978 = vmatpush1.msra.mxu0 %v1963
        %1979 = vmatprep.subr.mxu0 0.0
        %1980 = vmatpush1.msra.mxu0 %v1964
        %1981 = vmatprep.subr.mxu0 0.0
        %1982 = vmatpush1.msra.mxu0 %v1965
        %1983 = vmatprep.subr.mxu0 0.0
        %1984 = vmatpush1.msra.mxu0 %v1966
        %1985 = vmatprep.subr.mxu0 0.0
        %1986 = vmatpush1.msra.mxu0 0.0
        %1987 = vmatprep.subr.mxu0 0.0
        %1988 = vmatpush1.msra.mxu0 0.0
        %1989 = vmatprep.subr.mxu0 0.0
        %1990 = vmatpush1.msra.mxu0 0.0
        %1991 = vmatprep.subr.mxu0 0.0
        %1992 = vmatpush1.msra.mxu0 0.0
        %1993 = vmatprep.subr.mxu0 0.0
        %1994 = vmatpush1.msra.mxu0 0.0
        %1995 = vmatprep.subr.mxu0 0.0
        %1996 = vmatpush1.msra.mxu0 0.0
        %1997 = vmatprep.subr.mxu0 0.0
        %1998 = vmatpush1.msra.mxu0 0.0
        %1999 = vmatprep.subr.mxu0 0.0
        %2000 = vmatpush1.msra.mxu0 0.0
        %2001 = vmatprep.subr.mxu0 0.0
        %2002 = vmatpush1.msra.mxu0 0.0
        %2003 = vmatprep.subr.mxu0 0.0
        %2004 = vmatpush1.msra.mxu0 0.0
        %2005 = vmatprep.subr.mxu0 0.0
        %2006 = vmatpush1.msra.mxu0 0.0
        %2007 = vmatprep.subr.mxu0 0.0
        %2008 = vmatpush1.msra.mxu0 0.0
        %2009 = vmatprep.subr.mxu0 0.0
        %2010 = vmatpush1.msra.mxu0 0.0
        %2011 = vmatprep.subr.mxu0 0.0
        %2012 = vmatpush1.msra.mxu0 0.0
        %2013 = vmatprep.subr.mxu0 0.0
        %2014 = vmatpush1.msra.mxu0 0.0
        %2015 = vmatprep.subr.mxu0 0.0
        %2016 = vmatpush1.msra.mxu0 0.0
        %2017 = vmatprep.subr.mxu0 0.0
        %2018 = vmatpush1.msra.mxu0 0.0
        %2019 = vmatprep.subr.mxu0 0.0
        %2020 = vmatpush1.msra.mxu0 0.0
        %2021 = vmatprep.subr.mxu0 0.0
        %2022 = vmatpush1.msra.mxu0 0.0
        %2023 = vmatprep.subr.mxu0 0.0
        %2024 = vmatpush1.msra.mxu0 0.0
        %2025 = vmatprep.subr.mxu0 0.0
        %2026 = vmatpush1.msra.mxu0 0.0
        %2027 = vmatprep.subr.mxu0 0.0
        %2028 = vmatpush1.msra.mxu0 0.0
        %2029 = vmatprep.subr.mxu0 0.0
        %2030 = vmatpush1.msra.mxu0 0.0
        %2031 = vmatprep.subr.mxu0 0.0
        %2032 = vmatpush1.msra.mxu0 0.0
        %2033 = vmatprep.subr.mxu0 0.0
        %2034 = vmatpush1.msra.mxu0 0.0
        %2035 = vmatprep.subr.mxu0 0.0
        %2036 = vmatpush1.msra.mxu0 0.0
        %2037 = vmatprep.subr.mxu0 0.0
        %2038 = vmatpush1.msra.mxu0 0.0
        %2039 = vmatprep.subr.mxu0 0.0
        %2040 = vmatpush1.msra.mxu0 0.0
        %2041 = vmatprep.mubr.f32.mxu0 0.0
        %2042 = vmatmul.mubr.f32.gmra.mrb[0].mxu0 %v1975
        %v2043 = vpop.f32.mrb[0].mxu0
        %v2044 = vadd.f32 %v1972, %v2043
        %v2045 = vpop.f32.mrb[0].mxu0
        %2046 = vdwg.mxu0
        %v2047 = vadd.f32 %v1197, %v2044
        %v2048 = vld [vmem:[%s9] sm:$0x1]
        %v2049 = vld [vmem:[%s10] sm:$0x1]
        %v2050 = vsel %vm925, %v2047, 0.0
        %2051 = vadd.xlane.f32.xlu0 %v2050
        %v2052 = vpop.xlane.xlu0 %2051
        %v2053 = vrcp.pop 32.0
        %v2054 = vmul.f32 %v2052, %v2053
        %v2055 = vsub.f32 %v2047, %v2054
        %v2056 = vmul.f32 %v2055, %v2055
        %v2057 = vsel %vm925, %v2056, 0.0
        %2058 = vadd.xlane.f32.xlu0 %v2057
        %v2059 = vpop.xlane.xlu0 %2058
        %v2060 = vmul.f32 %v2059, %v2053
        %v2061 = vadd.f32 %v2060, 1e-05
        %v2062 = vrsqrt.pop %v2061
        %v2063 = vmul.f32 %v2055, %v2062
        %v2065 = vlaneseq
        %v2066 = vshrl.u32 %v2065, 7
        %v2067 = vsub.s32 0, %v2066
        %v2068 = vrot.slane %v2048, %v2067
        %v2070 = vmul.f32 %v2063, %v2068
        %v2072 = vlaneseq
        %v2073 = vshrl.u32 %v2072, 7
        %v2074 = vsub.s32 0, %v2073
        %v2075 = vrot.slane %v2049, %v2074
        %v2077 = vadd.f32 %v2070, %v2075
        %v2078 = vld [vmem:[#allocation7] sm:$0xff]
        %v2079 = vld [vmem:[#allocation7 + $0x8] sm:$0xff]
        %v2080 = vld [vmem:[#allocation7 + $0x10] sm:$0xff]
        %v2081 = vld [vmem:[#allocation7 + $0x18] sm:$0xff]
        %v2082 = vld [vmem:[%s12] sm:$0x1]
        %v2084 = vlaneseq
        %v2085 = vshrl.u32 %v2084, 7
        %v2086 = vsub.s32 0, %v2085
        %v2087 = vrot.slane %v2082, %v2086
        %v2090 = vsel %vm925, %v2077, 0
        %2092 = vmatprep.subr.mxu0 0.0
        %2093 = vmatpush1.msra.mxu0 %v2078
        %2094 = vmatprep.subr.mxu0 0.0
        %2095 = vmatpush1.msra.mxu0 %v2079
        %2096 = vmatprep.subr.mxu0 0.0
        %2097 = vmatpush1.msra.mxu0 %v2080
        %2098 = vmatprep.subr.mxu0 0.0
        %2099 = vmatpush1.msra.mxu0 %v2081
        %2100 = vmatprep.subr.mxu0 0.0
        %2101 = vmatpush1.msra.mxu0 0.0
        %2102 = vmatprep.subr.mxu0 0.0
        %2103 = vmatpush1.msra.mxu0 0.0
        %2104 = vmatprep.subr.mxu0 0.0
        %2105 = vmatpush1.msra.mxu0 0.0
        %2106 = vmatprep.subr.mxu0 0.0
        %2107 = vmatpush1.msra.mxu0 0.0
        %2108 = vmatprep.subr.mxu0 0.0
        %2109 = vmatpush1.msra.mxu0 0.0
        %2110 = vmatprep.subr.mxu0 0.0
        %2111 = vmatpush1.msra.mxu0 0.0
        %2112 = vmatprep.subr.mxu0 0.0
        %2113 = vmatpush1.msra.mxu0 0.0
        %2114 = vmatprep.subr.mxu0 0.0
        %2115 = vmatpush1.msra.mxu0 0.0
        %2116 = vmatprep.subr.mxu0 0.0
        %2117 = vmatpush1.msra.mxu0 0.0
        %2118 = vmatprep.subr.mxu0 0.0
        %2119 = vmatpush1.msra.mxu0 0.0
        %2120 = vmatprep.subr.mxu0 0.0
        %2121 = vmatpush1.msra.mxu0 0.0
        %2122 = vmatprep.subr.mxu0 0.0
        %2123 = vmatpush1.msra.mxu0 0.0
        %2124 = vmatprep.subr.mxu0 0.0
        %2125 = vmatpush1.msra.mxu0 0.0
        %2126 = vmatprep.subr.mxu0 0.0
        %2127 = vmatpush1.msra.mxu0 0.0
        %2128 = vmatprep.subr.mxu0 0.0
        %2129 = vmatpush1.msra.mxu0 0.0
        %2130 = vmatprep.subr.mxu0 0.0
        %2131 = vmatpush1.msra.mxu0 0.0
        %2132 = vmatprep.subr.mxu0 0.0
        %2133 = vmatpush1.msra.mxu0 0.0
        %2134 = vmatprep.subr.mxu0 0.0
        %2135 = vmatpush1.msra.mxu0 0.0
        %2136 = vmatprep.subr.mxu0 0.0
        %2137 = vmatpush1.msra.mxu0 0.0
        %2138 = vmatprep.subr.mxu0 0.0
        %2139 = vmatpush1.msra.mxu0 0.0
        %2140 = vmatprep.subr.mxu0 0.0
        %2141 = vmatpush1.msra.mxu0 0.0
        %2142 = vmatprep.subr.mxu0 0.0
        %2143 = vmatpush1.msra.mxu0 0.0
        %2144 = vmatprep.subr.mxu0 0.0
        %2145 = vmatpush1.msra.mxu0 0.0
        %2146 = vmatprep.subr.mxu0 0.0
        %2147 = vmatpush1.msra.mxu0 0.0
        %2148 = vmatprep.subr.mxu0 0.0
        %2149 = vmatpush1.msra.mxu0 0.0
        %2150 = vmatprep.subr.mxu0 0.0
        %2151 = vmatpush1.msra.mxu0 0.0
        %2152 = vmatprep.subr.mxu0 0.0
        %2153 = vmatpush1.msra.mxu0 0.0
        %2154 = vmatprep.subr.mxu0 0.0
        %2155 = vmatpush1.msra.mxu0 0.0
        %2156 = vmatprep.mubr.f32.mxu0 0.0
        %2157 = vmatmul.mubr.f32.gmra.mrb[0].mxu0 %v2090
        %v2158 = vpop.f32.mrb[0].mxu0
        %v2159 = vadd.f32 %v2087, %v2158
        %v2160 = vpop.f32.mrb[0].mxu0
        %2161 = vdwg.mxu0
        %v2162 = vmul.f32 %v2159, 0.5
        %v2163 = vmul.f32 %v2159, 0.044715
        %v2164 = vmul.f32 %v2163, %v2159
        %v2165 = vmul.f32 %v2164, %v2159
        %v2166 = vadd.f32 %v2159, %v2165
        %v2167 = vmul.f32 %v2166, 0.7978846
        %v2168 = vtanh.pop %v2167
        %v2169 = vadd.f32 %v2168, 1.0
        %v2170 = vmul.f32 %v2162, %v2169
        %v2171 = vld [vmem:[%s13] sm:$0xff]
        %v2172 = vld [vmem:[%s13 + $0x8] sm:$0xff]
        %v2173 = vld [vmem:[%s13 + $0x10] sm:$0xff]
        %v2174 = vld [vmem:[%s13 + $0x18] sm:$0xff]
        %v2175 = vld [vmem:[%s13 + $0x20] sm:$0xff]
        %v2176 = vld [vmem:[%s13 + $0x28] sm:$0xff]
        %v2177 = vld [vmem:[%s13 + $0x30] sm:$0xff]
        %v2178 = vld [vmem:[%s13 + $0x38] sm:$0xff]
        %v2179 = vld [vmem:[#allocation8] sm:$0x1]
        %v2181 = vlaneseq
        %v2182 = vshrl.u32 %v2181, 7
        %v2183 = vsub.s32 0, %v2182
        %v2184 = vrot.slane %v2179, %v2183
        %vm2186 = vcmask 523264
        %v2188 = vsel %vm2186, %v2170, 0
        %2190 = vmatprep.subr.mxu0 0.0
        %2191 = vmatpush1.msra.mxu0 %v2171
        %2192 = vmatprep.subr.mxu0 0.0
        %2193 = vmatpush1.msra.mxu0 %v2172
        %2194 = vmatprep.subr.mxu0 0.0
        %2195 = vmatpush1.msra.mxu0 %v2173
        %2196 = vmatprep.subr.mxu0 0.0
        %2197 = vmatpush1.msra.mxu0 %v2174
        %2198 = vmatprep.subr.mxu0 0.0
        %2199 = vmatpush1.msra.mxu0 %v2175
        %2200 = vmatprep.subr.mxu0 0.0
        %2201 = vmatpush1.msra.mxu0 %v2176
        %2202 = vmatprep.subr.mxu0 0.0
        %2203 = vmatpush1.msra.mxu0 %v2177
        %2204 = vmatprep.subr.mxu0 0.0
        %2205 = vmatpush1.msra.mxu0 %v2178
        %2206 = vmatprep.subr.mxu0 0.0
        %2207 = vmatpush1.msra.mxu0 0.0
        %2208 = vmatprep.subr.mxu0 0.0
        %2209 = vmatpush1.msra.mxu0 0.0
        %2210 = vmatprep.subr.mxu0 0.0
        %2211 = vmatpush1.msra.mxu0 0.0
        %2212 = vmatprep.subr.mxu0 0.0
        %2213 = vmatpush1.msra.mxu0 0.0
        %2214 = vmatprep.subr.mxu0 0.0
        %2215 = vmatpush1.msra.mxu0 0.0
        %2216 = vmatprep.subr.mxu0 0.0
        %2217 = vmatpush1.msra.mxu0 0.0
        %2218 = vmatprep.subr.mxu0 0.0
        %2219 = vmatpush1.msra.mxu0 0.0
        %2220 = vmatprep.subr.mxu0 0.0
        %2221 = vmatpush1.msra.mxu0 0.0
        %2222 = vmatprep.subr.mxu0 0.0
        %2223 = vmatpush1.msra.mxu0 0.0
        %2224 = vmatprep.subr.mxu0 0.0
        %2225 = vmatpush1.msra.mxu0 0.0
        %2226 = vmatprep.subr.mxu0 0.0
        %2227 = vmatpush1.msra.mxu0 0.0
        %2228 = vmatprep.subr.mxu0 0.0
        %2229 = vmatpush1.msra.mxu0 0.0
        %2230 = vmatprep.subr.mxu0 0.0
        %2231 = vmatpush1.msra.mxu0 0.0
        %2232 = vmatprep.subr.mxu0 0.0
        %2233 = vmatpush1.msra.mxu0 0.0
        %2234 = vmatprep.subr.mxu0 0.0
        %2235 = vmatpush1.msra.mxu0 0.0
        %2236 = vmatprep.subr.mxu0 0.0
        %2237 = vmatpush1.msra.mxu0 0.0
        %2238 = vmatprep.subr.mxu0 0.0
        %2239 = vmatpush1.msra.mxu0 0.0
        %2240 = vmatprep.subr.mxu0 0.0
        %2241 = vmatpush1.msra.mxu0 0.0
        %2242 = vmatprep.subr.mxu0 0.0
        %2243 = vmatpush1.msra.mxu0 0.0
        %2244 = vmatprep.subr.mxu0 0.0
        %2245 = vmatpush1.msra.mxu0 0.0
        %2246 = vmatprep.subr.mxu0 0.0
        %2247 = vmatpush1.msra.mxu0 0.0
        %2248 = vmatprep.subr.mxu0 0.0
        %2249 = vmatpush1.msra.mxu0 0.0
        %2250 = vmatprep.subr.mxu0 0.0
        %2251 = vmatpush1.msra.mxu0 0.0
        %2252 = vmatprep.subr.mxu0 0.0
        %2253 = vmatpush1.msra.mxu0 0.0
        %2254 = vmatprep.mubr.f32.mxu0 0.0
        %2255 = vmatmul.mubr.f32.gmra.mrb[0].mxu0 %v2188
        %v2256 = vpop.f32.mrb[0].mxu0
        %v2257 = vadd.f32 %v2184, %v2256
        %v2258 = vpop.f32.mrb[0].mxu0
        %2259 = vdwg.mxu0
        %v2260 = vadd.f32 %v2077, %v2257
        %v2261 = vld [vmem:[%s15] sm:$0x1]
        %v2262 = vld [vmem:[%s16] sm:$0x1]
        %v2263 = vsel %vm925, %v2260, 0.0
        %2264 = vadd.xlane.f32.xlu0 %v2263
        %v2265 = vpop.xlane.xlu0 %2264
        %v2266 = vmul.f32 %v2265, %v2053
        %v2267 = vsub.f32 %v2260, %v2266
        %v2268 = vmul.f32 %v2267, %v2267
        %v2269 = vsel %vm925, %v2268, 0.0
        %2270 = vadd.xlane.f32.xlu0 %v2269
        %v2271 = vpop.xlane.xlu0 %2270
        %v2272 = vmul.f32 %v2271, %v2053
        %v2273 = vadd.f32 %v2272, 1e-05
        %v2274 = vrsqrt.pop %v2273
        %v2275 = vmul.f32 %v2267, %v2274
        %v2277 = vlaneseq
        %v2278 = vshrl.u32 %v2277, 7
        %v2279 = vsub.s32 0, %v2278
        %v2280 = vrot.slane %v2261, %v2279
        %v2282 = vmul.f32 %v2275, %v2280
        %v2284 = vlaneseq
        %v2285 = vshrl.u32 %v2284, 7
        %v2286 = vsub.s32 0, %v2285
        %v2287 = vrot.slane %v2262, %v2286
        %v2289 = vadd.f32 %v2282, %v2287
        %s2290 = scalar_lea.vmem %s5, 32
        %v2291 = vld [vmem:[%s2290] sm:$0xff]
        %v2292 = vld [vmem:[%s2290 + $0x8] sm:$0xff]
        %v2293 = vld [vmem:[%s2290 + $0x10] sm:$0xff]
        %v2294 = vld [vmem:[%s2290 + $0x18] sm:$0xff]
        %s2295 = scalar_lea.vmem %s6, 1
        %v2296 = vld [vmem:[%s2295] sm:$0x1]
        %v2298 = vlaneseq
        %v2299 = vshrl.u32 %v2298, 7
        %v2300 = vsub.s32 0, %v2299
        %v2301 = vrot.slane %v2296, %v2300
        %v2304 = vsel %vm925, %v2289, 0
        %2306 = vmatprep.subr.mxu0 0.0
        %2307 = vmatpush1.msra.mxu0 %v2291
        %2308 = vmatprep.subr.mxu0 0.0
        %2309 = vmatpush1.msra.mxu0 %v2292
        %2310 = vmatprep.subr.mxu0 0.0
        %2311 = vmatpush1.msra.mxu0 %v2293
        %2312 = vmatprep.subr.mxu0 0.0
        %2313 = vmatpush1.msra.mxu0 %v2294
        %2314 = vmatprep.subr.mxu0 0.0
        %2315 = vmatpush1.msra.mxu0 0.0
        %2316 = vmatprep.subr.mxu0 0.0
        %2317 = vmatpush1.msra.mxu0 0.0
        %2318 = vmatprep.subr.mxu0 0.0
        %2319 = vmatpush1.msra.mxu0 0.0
        %2320 = vmatprep.subr.mxu0 0.0
        %2321 = vmatpush1.msra.mxu0 0.0
        %2322 = vmatprep.subr.mxu0 0.0
        %2323 = vmatpush1.msra.mxu0 0.0
        %2324 = vmatprep.subr.mxu0 0.0
        %2325 = vmatpush1.msra.mxu0 0.0
        %2326 = vmatprep.subr.mxu0 0.0
        %2327 = vmatpush1.msra.mxu0 0.0
        %2328 = vmatprep.subr.mxu0 0.0
        %2329 = vmatpush1.msra.mxu0 0.0
        %2330 = vmatprep.subr.mxu0 0.0
        %2331 = vmatpush1.msra.mxu0 0.0
        %2332 = vmatprep.subr.mxu0 0.0
        %2333 = vmatpush1.msra.mxu0 0.0
        %2334 = vmatprep.subr.mxu0 0.0
        %2335 = vmatpush1.msra.mxu0 0.0
        %2336 = vmatprep.subr.mxu0 0.0
        %2337 = vmatpush1.msra.mxu0 0.0
        %2338 = vmatprep.subr.mxu0 0.0
        %2339 = vmatpush1.msra.mxu0 0.0
        %2340 = vmatprep.subr.mxu0 0.0
        %2341 = vmatpush1.msra.mxu0 0.0
        %2342 = vmatprep.subr.mxu0 0.0
        %2343 = vmatpush1.msra.mxu0 0.0
        %2344 = vmatprep.subr.mxu0 0.0
        %2345 = vmatpush1.msra.mxu0 0.0
        %2346 = vmatprep.subr.mxu0 0.0
        %2347 = vmatpush1.msra.mxu0 0.0
        %2348 = vmatprep.subr.mxu0 0.0
        %2349 = vmatpush1.msra.mxu0 0.0
        %2350 = vmatprep.subr.mxu0 0.0
        %2351 = vmatpush1.msra.mxu0 0.0
        %2352 = vmatprep.subr.mxu0 0.0
        %2353 = vmatpush1.msra.mxu0 0.0
        %2354 = vmatprep.subr.mxu0 0.0
        %2355 = vmatpush1.msra.mxu0 0.0
        %2356 = vmatprep.subr.mxu0 0.0
        %2357 = vmatpush1.msra.mxu0 0.0
        %2358 = vmatprep.subr.mxu0 0.0
        %2359 = vmatpush1.msra.mxu0 0.0
        %2360 = vmatprep.subr.mxu0 0.0
        %2361 = vmatpush1.msra.mxu0 0.0
        %2362 = vmatprep.subr.mxu0 0.0
        %2363 = vmatpush1.msra.mxu0 0.0
        %2364 = vmatprep.subr.mxu0 0.0
        %2365 = vmatpush1.msra.mxu0 0.0
        %2366 = vmatprep.subr.mxu0 0.0
        %2367 = vmatpush1.msra.mxu0 0.0
        %2368 = vmatprep.subr.mxu0 0.0
        %2369 = vmatpush1.msra.mxu0 0.0
        %2370 = vmatprep.mubr.f32.mxu0 0.0
        %2371 = vmatmul.mubr.f32.gmra.mrb[0].mxu0 %v2304
        %v2372 = vpop.f32.mrb[0].mxu0
        %v2373 = vadd.f32 %v2301, %v2372
        %v2374 = vpop.f32.mrb[0].mxu0
        %2375 = vdwg.mxu0
        %2377 = vrot.lane.b32.xlu0 %v2373, 96
        %v2378 = vpop.permute.xlu0 %2377
        %v2379 = vsel %vm1285, %v2373, 0
        %v2381 = vsel %vm1285, %v2378, 0
        %2383 = vmatprep.subr.mxu0 0.0
        %2384 = vmatpush1.xpose.msra.mxu0 %v2381
        %2385 = vmatprep.subr.mxu0 0.0
        %2386 = vmatpush1.xpose.msra.mxu0 0.0
        %2387 = vmatprep.subr.mxu0 0.0
        %2388 = vmatpush1.xpose.msra.mxu0 0.0
        %2389 = vmatprep.subr.mxu0 0.0
        %2390 = vmatpush1.xpose.msra.mxu0 0.0
        %2391 = vmatprep.subr.mxu0 0.0
        %2392 = vmatpush1.xpose.msra.mxu0 0.0
        %2393 = vmatprep.subr.mxu0 0.0
        %2394 = vmatpush1.xpose.msra.mxu0 0.0
        %2395 = vmatprep.subr.mxu0 0.0
        %2396 = vmatpush1.xpose.msra.mxu0 0.0
        %2397 = vmatprep.subr.mxu0 0.0
        %2398 = vmatpush1.xpose.msra.mxu0 0.0
        %2399 = vmatprep.subr.mxu0 0.0
        %2400 = vmatpush1.xpose.msra.mxu0 0.0
        %2401 = vmatprep.subr.mxu0 0.0
        %2402 = vmatpush1.xpose.msra.mxu0 0.0
        %2403 = vmatprep.subr.mxu0 0.0
        %2404 = vmatpush1.xpose.msra.mxu0 0.0
        %2405 = vmatprep.subr.mxu0 0.0
        %2406 = vmatpush1.xpose.msra.mxu0 0.0
        %2407 = vmatprep.subr.mxu0 0.0
        %2408 = vmatpush1.xpose.msra.mxu0 0.0
        %2409 = vmatprep.subr.mxu0 0.0
        %2410 = vmatpush1.xpose.msra.mxu0 0.0
        %2411 = vmatprep.subr.mxu0 0.0
        %2412 = vmatpush1.xpose.msra.mxu0 0.0
        %2413 = vmatprep.subr.mxu0 0.0
        %2414 = vmatpush1.xpose.msra.mxu0 0.0
        %2415 = vmatprep.subr.mxu0 0.0
        %2416 = vmatpush1.xpose.msra.mxu0 0.0
        %2417 = vmatprep.subr.mxu0 0.0
        %2418 = vmatpush1.xpose.msra.mxu0 0.0
        %2419 = vmatprep.subr.mxu0 0.0
        %2420 = vmatpush1.xpose.msra.mxu0 0.0
        %2421 = vmatprep.subr.mxu0 0.0
        %2422 = vmatpush1.xpose.msra.mxu0 0.0
        %2423 = vmatprep.subr.mxu0 0.0
        %2424 = vmatpush1.xpose.msra.mxu0 0.0
        %2425 = vmatprep.subr.mxu0 0.0
        %2426 = vmatpush1.xpose.msra.mxu0 0.0
        %2427 = vmatprep.subr.mxu0 0.0
        %2428 = vmatpush1.xpose.msra.mxu0 0.0
        %2429 = vmatprep.subr.mxu0 0.0
        %2430 = vmatpush1.xpose.msra.mxu0 0.0
        %2431 = vmatprep.subr.mxu0 0.0
        %2432 = vmatpush1.xpose.msra.mxu0 0.0
        %2433 = vmatprep.subr.mxu0 0.0
        %2434 = vmatpush1.xpose.msra.mxu0 0.0
        %2435 = vmatprep.subr.mxu0 0.0
        %2436 = vmatpush1.xpose.msra.mxu0 0.0
        %2437 = vmatprep.subr.mxu0 0.0
        %2438 = vmatpush1.xpose.msra.mxu0 0.0
        %2439 = vmatprep.subr.mxu0 0.0
        %2440 = vmatpush1.xpose.msra.mxu0 0.0
        %2441 = vmatprep.subr.mxu0 0.0
        %2442 = vmatpush1.xpose.msra.mxu0 0.0
        %2443 = vmatprep.subr.mxu0 0.0
        %2444 = vmatpush1.xpose.msra.mxu0 0.0
        %2445 = vmatprep.subr.mxu0 0.0
        %2446 = vmatpush1.xpose.msra.mxu0 0.0
        %2447 = vmatprep.mubr.f32.mxu0 0.0
        %2448 = vmatmul.mubr.f32.gmra.mrb[0].mxu0 %v2379
        %v2449 = vpop.f32.mrb[0].mxu0
        %v2450 = vadd.f32 0.0, %v2449
        %v2451 = vpop.f32.mrb[0].mxu0
        %2452 = vdwg.mxu0
        %v2453 = vmul.f32 %v2450, 0.35355338
        %v2454 = vsel %vm1285, %v2453, -inf
        %2455 = vmax.xlane.f32.xlu0 %v2454
        %v2456 = vpop.xlane.xlu0 %2455
        %v2457 = vsub.f32 %v2453, %v2456
        %v2458 = vmul.f32 %v2457, 1.442695
        %v2459 = vpow.pop %v2458
        %v2460 = vsel %vm1285, %v2459, 0.0
        %2461 = vadd.xlane.f32.xlu0 %v2460
        %v2462 = vpop.xlane.xlu0 %2461
        %v2463 = vrcp.pop %v2462
        %v2464 = vmul.f32 %v2459, %v2463
        %2465 = vrot.lane.b32.xlu0 %v2373, 64
        %v2466 = vpop.permute.xlu0 %2465
        %v2469 = vsel %vm1285, %v2464, 0
        %2471 = vmatprep.subr.mxu0 0.0
        %2472 = vmatpush1.msra.mxu0 %v2466
        %2473 = vmatprep.subr.mxu0 0.0
        %2474 = vmatpush1.msra.mxu0 0.0
        %2475 = vmatprep.subr.mxu0 0.0
        %2476 = vmatpush1.msra.mxu0 0.0
        %2477 = vmatprep.subr.mxu0 0.0
        %2478 = vmatpush1.msra.mxu0 0.0
        %2479 = vmatprep.subr.mxu0 0.0
        %2480 = vmatpush1.msra.mxu0 0.0
        %2481 = vmatprep.subr.mxu0 0.0
        %2482 = vmatpush1.msra.mxu0 0.0
        %2483 = vmatprep.subr.mxu0 0.0
        %2484 = vmatpush1.msra.mxu0 0.0
        %2485 = vmatprep.subr.mxu0 0.0
        %2486 = vmatpush1.msra.mxu0 0.0
        %2487 = vmatprep.subr.mxu0 0.0
        %2488 = vmatpush1.msra.mxu0 0.0
        %2489 = vmatprep.subr.mxu0 0.0
        %2490 = vmatpush1.msra.mxu0 0.0
        %2491 = vmatprep.subr.mxu0 0.0
        %2492 = vmatpush1.msra.mxu0 0.0
        %2493 = vmatprep.subr.mxu0 0.0
        %2494 = vmatpush1.msra.mxu0 0.0
        %2495 = vmatprep.subr.mxu0 0.0
        %2496 = vmatpush1.msra.mxu0 0.0
        %2497 = vmatprep.subr.mxu0 0.0
        %2498 = vmatpush1.msra.mxu0 0.0
        %2499 = vmatprep.subr.mxu0 0.0
        %2500 = vmatpush1.msra.mxu0 0.0
        %2501 = vmatprep.subr.mxu0 0.0
        %2502 = vmatpush1.msra.mxu0 0.0
        %2503 = vmatprep.subr.mxu0 0.0
        %2504 = vmatpush1.msra.mxu0 0.0
        %2505 = vmatprep.subr.mxu0 0.0
        %2506 = vmatpush1.msra.mxu0 0.0
        %2507 = vmatprep.subr.mxu0 0.0
        %2508 = vmatpush1.msra.mxu0 0.0
        %2509 = vmatprep.subr.mxu0 0.0
        %2510 = vmatpush1.msra.mxu0 0.0
        %2511 = vmatprep.subr.mxu0 0.0
        %2512 = vmatpush1.msra.mxu0 0.0
        %2513 = vmatprep.subr.mxu0 0.0
        %2514 = vmatpush1.msra.mxu0 0.0
        %2515 = vmatprep.subr.mxu0 0.0
        %2516 = vmatpush1.msra.mxu0 0.0
        %2517 = vmatprep.subr.mxu0 0.0
        %2518 = vmatpush1.msra.mxu0 0.0
        %2519 = vmatprep.subr.mxu0 0.0
        %2520 = vmatpush1.msra.mxu0 0.0
        %2521 = vmatprep.subr.mxu0 0.0
        %2522 = vmatpush1.msra.mxu0 0.0
        %2523 = vmatprep.subr.mxu0 0.0
        %2524 = vmatpush1.msra.mxu0 0.0
        %2525 = vmatprep.subr.mxu0 0.0
        %2526 = vmatpush1.msra.mxu0 0.0
        %2527 = vmatprep.subr.mxu0 0.0
        %2528 = vmatpush1.msra.mxu0 0.0
        %2529 = vmatprep.subr.mxu0 0.0
        %2530 = vmatpush1.msra.mxu0 0.0
        %2531 = vmatprep.subr.mxu0 0.0
        %2532 = vmatpush1.msra.mxu0 0.0
        %2533 = vmatprep.subr.mxu0 0.0
        %2534 = vmatpush1.msra.mxu0 0.0
        %2535 = vmatprep.mubr.f32.mxu0 0.0
        %2536 = vmatmul.mubr.f32.gmra.mrb[0].mxu0 %v2469
        %v2537 = vpop.f32.mrb[0].mxu0
        %v2538 = vadd.f32 0.0, %v2537
        %v2539 = vpop.f32.mrb[0].mxu0
        %2540 = vdwg.mxu0
        %2541 = vrot.lane.b32.xlu0 %v2373, 120
        %v2542 = vpop.permute.xlu0 %2541
        %2543 = vrot.lane.b32.xlu0 %v2373, 88
        %v2544 = vpop.permute.xlu0 %2543
        %v2545 = vsel %vm1285, %v2542, 0
        %v2547 = vsel %vm1285, %v2544, 0
        %2549 = vmatprep.subr.mxu0 0.0
        %2550 = vmatpush1.xpose.msra.mxu0 %v2547
        %2551 = vmatprep.subr.mxu0 0.0
        %2552 = vmatpush1.xpose.msra.mxu0 0.0
        %2553 = vmatprep.subr.mxu0 0.0
        %2554 = vmatpush1.xpose.msra.mxu0 0.0
        %2555 = vmatprep.subr.mxu0 0.0
        %2556 = vmatpush1.xpose.msra.mxu0 0.0
        %2557 = vmatprep.subr.mxu0 0.0
        %2558 = vmatpush1.xpose.msra.mxu0 0.0
        %2559 = vmatprep.subr.mxu0 0.0
        %2560 = vmatpush1.xpose.msra.mxu0 0.0
        %2561 = vmatprep.subr.mxu0 0.0
        %2562 = vmatpush1.xpose.msra.mxu0 0.0
        %2563 = vmatprep.subr.mxu0 0.0
        %2564 = vmatpush1.xpose.msra.mxu0 0.0
        %2565 = vmatprep.subr.mxu0 0.0
        %2566 = vmatpush1.xpose.msra.mxu0 0.0
        %2567 = vmatprep.subr.mxu0 0.0
        %2568 = vmatpush1.xpose.msra.mxu0 0.0
        %2569 = vmatprep.subr.mxu0 0.0
        %2570 = vmatpush1.xpose.msra.mxu0 0.0
        %2571 = vmatprep.subr.mxu0 0.0
        %2572 = vmatpush1.xpose.msra.mxu0 0.0
        %2573 = vmatprep.subr.mxu0 0.0
        %2574 = vmatpush1.xpose.msra.mxu0 0.0
        %2575 = vmatprep.subr.mxu0 0.0
        %2576 = vmatpush1.xpose.msra.mxu0 0.0
        %2577 = vmatprep.subr.mxu0 0.0
        %2578 = vmatpush1.xpose.msra.mxu0 0.0
        %2579 = vmatprep.subr.mxu0 0.0
        %2580 = vmatpush1.xpose.msra.mxu0 0.0
        %2581 = vmatprep.subr.mxu0 0.0
        %2582 = vmatpush1.xpose.msra.mxu0 0.0
        %2583 = vmatprep.subr.mxu0 0.0
        %2584 = vmatpush1.xpose.msra.mxu0 0.0
        %2585 = vmatprep.subr.mxu0 0.0
        %2586 = vmatpush1.xpose.msra.mxu0 0.0
        %2587 = vmatprep.subr.mxu0 0.0
        %2588 = vmatpush1.xpose.msra.mxu0 0.0
        %2589 = vmatprep.subr.mxu0 0.0
        %2590 = vmatpush1.xpose.msra.mxu0 0.0
        %2591 = vmatprep.subr.mxu0 0.0
        %2592 = vmatpush1.xpose.msra.mxu0 0.0
        %2593 = vmatprep.subr.mxu0 0.0
        %2594 = vmatpush1.xpose.msra.mxu0 0.0
        %2595 = vmatprep.subr.mxu0 0.0
        %2596 = vmatpush1.xpose.msra.mxu0 0.0
        %2597 = vmatprep.subr.mxu0 0.0
        %2598 = vmatpush1.xpose.msra.mxu0 0.0
        %2599 = vmatprep.subr.mxu0 0.0
        %2600 = vmatpush1.xpose.msra.mxu0 0.0
        %2601 = vmatprep.subr.mxu0 0.0
        %2602 = vmatpush1.xpose.msra.mxu0 0.0
        %2603 = vmatprep.subr.mxu0 0.0
        %2604 = vmatpush1.xpose.msra.mxu0 0.0
        %2605 = vmatprep.subr.mxu0 0.0
        %2606 = vmatpush1.xpose.msra.mxu0 0.0
        %2607 = vmatprep.subr.mxu0 0.0
        %2608 = vmatpush1.xpose.msra.mxu0 0.0
        %2609 = vmatprep.subr.mxu0 0.0
        %2610 = vmatpush1.xpose.msra.mxu0 0.0
        %2611 = vmatprep.subr.mxu0 0.0
        %2612 = vmatpush1.xpose.msra.mxu0 0.0
        %2613 = vmatprep.mubr.f32.mxu0 0.0
        %2614 = vmatmul.mubr.f32.gmra.mrb[0].mxu0 %v2545
        %v2615 = vpop.f32.mrb[0].mxu0
        %v2616 = vadd.f32 0.0, %v2615
        %v2617 = vpop.f32.mrb[0].mxu0
        %2618 = vdwg.mxu0
        %v2619 = vmul.f32 %v2616, 0.35355338
        %v2620 = vsel %vm1285, %v2619, -inf
        %2621 = vmax.xlane.f32.xlu0 %v2620
        %v2622 = vpop.xlane.xlu0 %2621
        %v2623 = vsub.f32 %v2619, %v2622
        %v2624 = vmul.f32 %v2623, 1.442695
        %v2625 = vpow.pop %v2624
        %v2626 = vsel %vm1285, %v2625, 0.0
        %2627 = vadd.xlane.f32.xlu0 %v2626
        %v2628 = vpop.xlane.xlu0 %2627
        %v2629 = vrcp.pop %v2628
        %v2630 = vmul.f32 %v2625, %v2629
        %2631 = vrot.lane.b32.xlu0 %v2373, 56
        %v2632 = vpop.permute.xlu0 %2631
        %v2635 = vsel %vm1285, %v2630, 0
        %2637 = vmatprep.subr.mxu0 0.0
        %2638 = vmatpush1.msra.mxu0 %v2632
        %2639 = vmatprep.subr.mxu0 0.0
        %2640 = vmatpush1.msra.mxu0 0.0
        %2641 = vmatprep.subr.mxu0 0.0
        %2642 = vmatpush1.msra.mxu0 0.0
        %2643 = vmatprep.subr.mxu0 0.0
        %2644 = vmatpush1.msra.mxu0 0.0
        %2645 = vmatprep.subr.mxu0 0.0
        %2646 = vmatpush1.msra.mxu0 0.0
        %2647 = vmatprep.subr.mxu0 0.0
        %2648 = vmatpush1.msra.mxu0 0.0
        %2649 = vmatprep.subr.mxu0 0.0
        %2650 = vmatpush1.msra.mxu0 0.0
        %2651 = vmatprep.subr.mxu0 0.0
        %2652 = vmatpush1.msra.mxu0 0.0
        %2653 = vmatprep.subr.mxu0 0.0
        %2654 = vmatpush1.msra.mxu0 0.0
        %2655 = vmatprep.subr.mxu0 0.0
        %2656 = vmatpush1.msra.mxu0 0.0
        %2657 = vmatprep.subr.mxu0 0.0
        %2658 = vmatpush1.msra.mxu0 0.0
        %2659 = vmatprep.subr.mxu0 0.0
        %2660 = vmatpush1.msra.mxu0 0.0
        %2661 = vmatprep.subr.mxu0 0.0
        %2662 = vmatpush1.msra.mxu0 0.0
        %2663 = vmatprep.subr.mxu0 0.0
        %2664 = vmatpush1.msra.mxu0 0.0
        %2665 = vmatprep.subr.mxu0 0.0
        %2666 = vmatpush1.msra.mxu0 0.0
        %2667 = vmatprep.subr.mxu0 0.0
        %2668 = vmatpush1.msra.mxu0 0.0
        %2669 = vmatprep.subr.mxu0 0.0
        %2670 = vmatpush1.msra.mxu0 0.0
        %2671 = vmatprep.subr.mxu0 0.0
        %2672 = vmatpush1.msra.mxu0 0.0
        %2673 = vmatprep.subr.mxu0 0.0
        %2674 = vmatpush1.msra.mxu0 0.0
        %2675 = vmatprep.subr.mxu0 0.0
        %2676 = vmatpush1.msra.mxu0 0.0
        %2677 = vmatprep.subr.mxu0 0.0
        %2678 = vmatpush1.msra.mxu0 0.0
        %2679 = vmatprep.subr.mxu0 0.0
        %2680 = vmatpush1.msra.mxu0 0.0
        %2681 = vmatprep.subr.mxu0 0.0
        %2682 = vmatpush1.msra.mxu0 0.0
        %2683 = vmatprep.subr.mxu0 0.0
        %2684 = vmatpush1.msra.mxu0 0.0
        %2685 = vmatprep.subr.mxu0 0.0
        %2686 = vmatpush1.msra.mxu0 0.0
        %2687 = vmatprep.subr.mxu0 0.0
        %2688 = vmatpush1.msra.mxu0 0.0
        %2689 = vmatprep.subr.mxu0 0.0
        %2690 = vmatpush1.msra.mxu0 0.0
        %2691 = vmatprep.subr.mxu0 0.0
        %2692 = vmatpush1.msra.mxu0 0.0
        %2693 = vmatprep.subr.mxu0 0.0
        %2694 = vmatpush1.msra.mxu0 0.0
        %2695 = vmatprep.subr.mxu0 0.0
        %2696 = vmatpush1.msra.mxu0 0.0
        %2697 = vmatprep.subr.mxu0 0.0
        %2698 = vmatpush1.msra.mxu0 0.0
        %2699 = vmatprep.subr.mxu0 0.0
        %2700 = vmatpush1.msra.mxu0 0.0
        %2701 = vmatprep.mubr.f32.mxu0 0.0
        %2702 = vmatmul.mubr.f32.gmra.mrb[0].mxu0 %v2635
        %v2703 = vpop.f32.mrb[0].mxu0
        %v2704 = vadd.f32 0.0, %v2703
        %v2705 = vpop.f32.mrb[0].mxu0
        %2706 = vdwg.mxu0
        %2707 = vrot.lane.b32.xlu0 %v2373, 112
        %v2708 = vpop.permute.xlu0 %2707
        %2709 = vrot.lane.b32.xlu0 %v2373, 80
        %v2710 = vpop.permute.xlu0 %2709
        %v2711 = vsel %vm1285, %v2708, 0
        %v2713 = vsel %vm1285, %v2710, 0
        %2715 = vmatprep.subr.mxu0 0.0
        %2716 = vmatpush1.xpose.msra.mxu0 %v2713
        %2717 = vmatprep.subr.mxu0 0.0
        %2718 = vmatpush1.xpose.msra.mxu0 0.0
        %2719 = vmatprep.subr.mxu0 0.0
        %2720 = vmatpush1.xpose.msra.mxu0 0.0
        %2721 = vmatprep.subr.mxu0 0.0
        %2722 = vmatpush1.xpose.msra.mxu0 0.0
        %2723 = vmatprep.subr.mxu0 0.0
        %2724 = vmatpush1.xpose.msra.mxu0 0.0
        %2725 = vmatprep.subr.mxu0 0.0
        %2726 = vmatpush1.xpose.msra.mxu0 0.0
        %2727 = vmatprep.subr.mxu0 0.0
        %2728 = vmatpush1.xpose.msra.mxu0 0.0
        %2729 = vmatprep.subr.mxu0 0.0
        %2730 = vmatpush1.xpose.msra.mxu0 0.0
        %2731 = vmatprep.subr.mxu0 0.0
        %2732 = vmatpush1.xpose.msra.mxu0 0.0
        %2733 = vmatprep.subr.mxu0 0.0
        %2734 = vmatpush1.xpose.msra.mxu0 0.0
        %2735 = vmatprep.subr.mxu0 0.0
        %2736 = vmatpush1.xpose.msra.mxu0 0.0
        %2737 = vmatprep.subr.mxu0 0.0
        %2738 = vmatpush1.xpose.msra.mxu0 0.0
        %2739 = vmatprep.subr.mxu0 0.0
        %2740 = vmatpush1.xpose.msra.mxu0 0.0
        %2741 = vmatprep.subr.mxu0 0.0
        %2742 = vmatpush1.xpose.msra.mxu0 0.0
        %2743 = vmatprep.subr.mxu0 0.0
        %2744 = vmatpush1.xpose.msra.mxu0 0.0
        %2745 = vmatprep.subr.mxu0 0.0
        %2746 = vmatpush1.xpose.msra.mxu0 0.0
        %2747 = vmatprep.subr.mxu0 0.0
        %2748 = vmatpush1.xpose.msra.mxu0 0.0
        %2749 = vmatprep.subr.mxu0 0.0
        %2750 = vmatpush1.xpose.msra.mxu0 0.0
        %2751 = vmatprep.subr.mxu0 0.0
        %2752 = vmatpush1.xpose.msra.mxu0 0.0
        %2753 = vmatprep.subr.mxu0 0.0
        %2754 = vmatpush1.xpose.msra.mxu0 0.0
        %2755 = vmatprep.subr.mxu0 0.0
        %2756 = vmatpush1.xpose.msra.mxu0 0.0
        %2757 = vmatprep.subr.mxu0 0.0
        %2758 = vmatpush1.xpose.msra.mxu0 0.0
        %2759 = vmatprep.subr.mxu0 0.0
        %2760 = vmatpush1.xpose.msra.mxu0 0.0
        %2761 = vmatprep.subr.mxu0 0.0
        %2762 = vmatpush1.xpose.msra.mxu0 0.0
        %2763 = vmatprep.subr.mxu0 0.0
        %2764 = vmatpush1.xpose.msra.mxu0 0.0
        %2765 = vmatprep.subr.mxu0 0.0
        %2766 = vmatpush1.xpose.msra.mxu0 0.0
        %2767 = vmatprep.subr.mxu0 0.0
        %2768 = vmatpush1.xpose.msra.mxu0 0.0
        %2769 = vmatprep.subr.mxu0 0.0
        %2770 = vmatpush1.xpose.msra.mxu0 0.0
        %2771 = vmatprep.subr.mxu0 0.0
        %2772 = vmatpush1.xpose.msra.mxu0 0.0
        %2773 = vmatprep.subr.mxu0 0.0
        %2774 = vmatpush1.xpose.msra.mxu0 0.0
        %2775 = vmatprep.subr.mxu0 0.0
        %2776 = vmatpush1.xpose.msra.mxu0 0.0
        %2777 = vmatprep.subr.mxu0 0.0
        %2778 = vmatpush1.xpose.msra.mxu0 0.0
        %2779 = vmatprep.mubr.f32.mxu0 0.0
        %2780 = vmatmul.mubr.f32.gmra.mrb[0].mxu0 %v2711
        %v2781 = vpop.f32.mrb[0].mxu0
        %v2782 = vadd.f32 0.0, %v2781
        %v2783 = vpop.f32.mrb[0].mxu0
        %2784 = vdwg.mxu0
        %v2785 = vmul.f32 %v2782, 0.35355338
        %v2786 = vsel %vm1285, %v2785, -inf
        %2787 = vmax.xlane.f32.xlu0 %v2786
        %v2788 = vpop.xlane.xlu0 %2787
        %v2789 = vsub.f32 %v2785, %v2788
        %v2790 = vmul.f32 %v2789, 1.442695
        %v2791 = vpow.pop %v2790
        %v2792 = vsel %vm1285, %v2791, 0.0
        %2793 = vadd.xlane.f32.xlu0 %v2792
        %v2794 = vpop.xlane.xlu0 %2793
        %v2795 = vrcp.pop %v2794
        %v2796 = vmul.f32 %v2791, %v2795
        %2797 = vrot.lane.b32.xlu0 %v2373, 48
        %v2798 = vpop.permute.xlu0 %2797
        %v2801 = vsel %vm1285, %v2796, 0
        %2803 = vmatprep.subr.mxu0 0.0
        %2804 = vmatpush1.msra.mxu0 %v2798
        %2805 = vmatprep.subr.mxu0 0.0
        %2806 = vmatpush1.msra.mxu0 0.0
        %2807 = vmatprep.subr.mxu0 0.0
        %2808 = vmatpush1.msra.mxu0 0.0
        %2809 = vmatprep.subr.mxu0 0.0
        %2810 = vmatpush1.msra.mxu0 0.0
        %2811 = vmatprep.subr.mxu0 0.0
        %2812 = vmatpush1.msra.mxu0 0.0
        %2813 = vmatprep.subr.mxu0 0.0
        %2814 = vmatpush1.msra.mxu0 0.0
        %2815 = vmatprep.subr.mxu0 0.0
        %2816 = vmatpush1.msra.mxu0 0.0
        %2817 = vmatprep.subr.mxu0 0.0
        %2818 = vmatpush1.msra.mxu0 0.0
        %2819 = vmatprep.subr.mxu0 0.0
        %2820 = vmatpush1.msra.mxu0 0.0
        %2821 = vmatprep.subr.mxu0 0.0
        %2822 = vmatpush1.msra.mxu0 0.0
        %2823 = vmatprep.subr.mxu0 0.0
        %2824 = vmatpush1.msra.mxu0 0.0
        %2825 = vmatprep.subr.mxu0 0.0
        %2826 = vmatpush1.msra.mxu0 0.0
        %2827 = vmatprep.subr.mxu0 0.0
        %2828 = vmatpush1.msra.mxu0 0.0
        %2829 = vmatprep.subr.mxu0 0.0
        %2830 = vmatpush1.msra.mxu0 0.0
        %2831 = vmatprep.subr.mxu0 0.0
        %2832 = vmatpush1.msra.mxu0 0.0
        %2833 = vmatprep.subr.mxu0 0.0
        %2834 = vmatpush1.msra.mxu0 0.0
        %2835 = vmatprep.subr.mxu0 0.0
        %2836 = vmatpush1.msra.mxu0 0.0
        %2837 = vmatprep.subr.mxu0 0.0
        %2838 = vmatpush1.msra.mxu0 0.0
        %2839 = vmatprep.subr.mxu0 0.0
        %2840 = vmatpush1.msra.mxu0 0.0
        %2841 = vmatprep.subr.mxu0 0.0
        %2842 = vmatpush1.msra.mxu0 0.0
        %2843 = vmatprep.subr.mxu0 0.0
        %2844 = vmatpush1.msra.mxu0 0.0
        %2845 = vmatprep.subr.mxu0 0.0
        %2846 = vmatpush1.msra.mxu0 0.0
        %2847 = vmatprep.subr.mxu0 0.0
        %2848 = vmatpush1.msra.mxu0 0.0
        %2849 = vmatprep.subr.mxu0 0.0
        %2850 = vmatpush1.msra.mxu0 0.0
        %2851 = vmatprep.subr.mxu0 0.0
        %2852 = vmatpush1.msra.mxu0 0.0
        %2853 = vmatprep.subr.mxu0 0.0
        %2854 = vmatpush1.msra.mxu0 0.0
        %2855 = vmatprep.subr.mxu0 0.0
        %2856 = vmatpush1.msra.mxu0 0.0
        %2857 = vmatprep.subr.mxu0 0.0
        %2858 = vmatpush1.msra.mxu0 0.0
        %2859 = vmatprep.subr.mxu0 0.0
        %2860 = vmatpush1.msra.mxu0 0.0
        %2861 = vmatprep.subr.mxu0 0.0
        %2862 = vmatpush1.msra.mxu0 0.0
        %2863 = vmatprep.subr.mxu0 0.0
        %2864 = vmatpush1.msra.mxu0 0.0
        %2865 = vmatprep.subr.mxu0 0.0
        %2866 = vmatpush1.msra.mxu0 0.0
        %2867 = vmatprep.mubr.f32.mxu0 0.0
        %2868 = vmatmul.mubr.f32.gmra.mrb[0].mxu0 %v2801
        %v2869 = vpop.f32.mrb[0].mxu0
        %v2870 = vadd.f32 0.0, %v2869
        %v2871 = vpop.f32.mrb[0].mxu0
        %2872 = vdwg.mxu0
        %2873 = vrot.lane.b32.xlu0 %v2373, 104
        %v2874 = vpop.permute.xlu0 %2873
        %2875 = vrot.lane.b32.xlu0 %v2373, 72
        %v2876 = vpop.permute.xlu0 %2875
        %v2877 = vsel %vm1285, %v2874, 0
        %v2879 = vsel %vm1285, %v2876, 0
        %2881 = vmatprep.subr.mxu0 0.0
        %2882 = vmatpush1.xpose.msra.mxu0 %v2879
        %2883 = vmatprep.subr.mxu0 0.0
        %2884 = vmatpush1.xpose.msra.mxu0 0.0
        %2885 = vmatprep.subr.mxu0 0.0
        %2886 = vmatpush1.xpose.msra.mxu0 0.0
        %2887 = vmatprep.subr.mxu0 0.0
        %2888 = vmatpush1.xpose.msra.mxu0 0.0
        %2889 = vmatprep.subr.mxu0 0.0
        %2890 = vmatpush1.xpose.msra.mxu0 0.0
        %2891 = vmatprep.subr.mxu0 0.0
        %2892 = vmatpush1.xpose.msra.mxu0 0.0
        %2893 = vmatprep.subr.mxu0 0.0
        %2894 = vmatpush1.xpose.msra.mxu0 0.0
        %2895 = vmatprep.subr.mxu0 0.0
        %2896 = vmatpush1.xpose.msra.mxu0 0.0
        %2897 = vmatprep.subr.mxu0 0.0
        %2898 = vmatpush1.xpose.msra.mxu0 0.0
        %2899 = vmatprep.subr.mxu0 0.0
        %2900 = vmatpush1.xpose.msra.mxu0 0.0
        %2901 = vmatprep.subr.mxu0 0.0
        %2902 = vmatpush1.xpose.msra.mxu0 0.0
        %2903 = vmatprep.subr.mxu0 0.0
        %2904 = vmatpush1.xpose.msra.mxu0 0.0
        %2905 = vmatprep.subr.mxu0 0.0
        %2906 = vmatpush1.xpose.msra.mxu0 0.0
        %2907 = vmatprep.subr.mxu0 0.0
        %2908 = vmatpush1.xpose.msra.mxu0 0.0
        %2909 = vmatprep.subr.mxu0 0.0
        %2910 = vmatpush1.xpose.msra.mxu0 0.0
        %2911 = vmatprep.subr.mxu0 0.0
        %2912 = vmatpush1.xpose.msra.mxu0 0.0
        %2913 = vmatprep.subr.mxu0 0.0
        %2914 = vmatpush1.xpose.msra.mxu0 0.0
        %2915 = vmatprep.subr.mxu0 0.0
        %2916 = vmatpush1.xpose.msra.mxu0 0.0
        %2917 = vmatprep.subr.mxu0 0.0
        %2918 = vmatpush1.xpose.msra.mxu0 0.0
        %2919 = vmatprep.subr.mxu0 0.0
        %2920 = vmatpush1.xpose.msra.mxu0 0.0
        %2921 = vmatprep.subr.mxu0 0.0
        %2922 = vmatpush1.xpose.msra.mxu0 0.0
        %2923 = vmatprep.subr.mxu0 0.0
        %2924 = vmatpush1.xpose.msra.mxu0 0.0
        %2925 = vmatprep.subr.mxu0 0.0
        %2926 = vmatpush1.xpose.msra.mxu0 0.0
        %2927 = vmatprep.subr.mxu0 0.0
        %2928 = vmatpush1.xpose.msra.mxu0 0.0
        %2929 = vmatprep.subr.mxu0 0.0
        %2930 = vmatpush1.xpose.msra.mxu0 0.0
        %2931 = vmatprep.subr.mxu0 0.0
        %2932 = vmatpush1.xpose.msra.mxu0 0.0
        %2933 = vmatprep.subr.mxu0 0.0
        %2934 = vmatpush1.xpose.msra.mxu0 0.0
        %2935 = vmatprep.subr.mxu0 0.0
        %2936 = vmatpush1.xpose.msra.mxu0 0.0
        %2937 = vmatprep.subr.mxu0 0.0
        %2938 = vmatpush1.xpose.msra.mxu0 0.0
        %2939 = vmatprep.subr.mxu0 0.0
        %2940 = vmatpush1.xpose.msra.mxu0 0.0
        %2941 = vmatprep.subr.mxu0 0.0
        %2942 = vmatpush1.xpose.msra.mxu0 0.0
        %2943 = vmatprep.subr.mxu0 0.0
        %2944 = vmatpush1.xpose.msra.mxu0 0.0
        %2945 = vmatprep.mubr.f32.mxu0 0.0
        %2946 = vmatmul.mubr.f32.gmra.mrb[0].mxu0 %v2877
        %v2947 = vpop.f32.mrb[0].mxu0
        %v2948 = vadd.f32 0.0, %v2947
        %v2949 = vpop.f32.mrb[0].mxu0
        %2950 = vdwg.mxu0
        %v2951 = vmul.f32 %v2948, 0.35355338
        %v2952 = vsel %vm1285, %v2951, -inf
        %2953 = vmax.xlane.f32.xlu0 %v2952
        %v2954 = vpop.xlane.xlu0 %2953
        %v2955 = vsub.f32 %v2951, %v2954
        %v2956 = vmul.f32 %v2955, 1.442695
        %v2957 = vpow.pop %v2956
        %v2958 = vsel %vm1285, %v2957, 0.0
        %2959 = vadd.xlane.f32.xlu0 %v2958
        %v2960 = vpop.xlane.xlu0 %2959
        %v2961 = vrcp.pop %v2960
        %v2962 = vmul.f32 %v2957, %v2961
        %2963 = vrot.lane.b32.xlu0 %v2373, 40
        %v2964 = vpop.permute.xlu0 %2963
        %v2967 = vsel %vm1285, %v2962, 0
        %2969 = vmatprep.subr.mxu0 0.0
        %2970 = vmatpush1.msra.mxu0 %v2964
        %2971 = vmatprep.subr.mxu0 0.0
        %2972 = vmatpush1.msra.mxu0 0.0
        %2973 = vmatprep.subr.mxu0 0.0
        %2974 = vmatpush1.msra.mxu0 0.0
        %2975 = vmatprep.subr.mxu0 0.0
        %2976 = vmatpush1.msra.mxu0 0.0
        %2977 = vmatprep.subr.mxu0 0.0
        %2978 = vmatpush1.msra.mxu0 0.0
        %2979 = vmatprep.subr.mxu0 0.0
        %2980 = vmatpush1.msra.mxu0 0.0
        %2981 = vmatprep.subr.mxu0 0.0
        %2982 = vmatpush1.msra.mxu0 0.0
        %2983 = vmatprep.subr.mxu0 0.0
        %2984 = vmatpush1.msra.mxu0 0.0
        %2985 = vmatprep.subr.mxu0 0.0
        %2986 = vmatpush1.msra.mxu0 0.0
        %2987 = vmatprep.subr.mxu0 0.0
        %2988 = vmatpush1.msra.mxu0 0.0
        %2989 = vmatprep.subr.mxu0 0.0
        %2990 = vmatpush1.msra.mxu0 0.0
        %2991 = vmatprep.subr.mxu0 0.0
        %2992 = vmatpush1.msra.mxu0 0.0
        %2993 = vmatprep.subr.mxu0 0.0
        %2994 = vmatpush1.msra.mxu0 0.0
        %2995 = vmatprep.subr.mxu0 0.0
        %2996 = vmatpush1.msra.mxu0 0.0
        %2997 = vmatprep.subr.mxu0 0.0
        %2998 = vmatpush1.msra.mxu0 0.0
        %2999 = vmatprep.subr.mxu0 0.0
        %3000 = vmatpush1.msra.mxu0 0.0
        %3001 = vmatprep.subr.mxu0 0.0
        %3002 = vmatpush1.msra.mxu0 0.0
        %3003 = vmatprep.subr.mxu0 0.0
        %3004 = vmatpush1.msra.mxu0 0.0
        %3005 = vmatprep.subr.mxu0 0.0
        %3006 = vmatpush1.msra.mxu0 0.0
        %3007 = vmatprep.subr.mxu0 0.0
        %3008 = vmatpush1.msra.mxu0 0.0
        %3009 = vmatprep.subr.mxu0 0.0
        %3010 = vmatpush1.msra.mxu0 0.0
        %3011 = vmatprep.subr.mxu0 0.0
        %3012 = vmatpush1.msra.mxu0 0.0
        %3013 = vmatprep.subr.mxu0 0.0
        %3014 = vmatpush1.msra.mxu0 0.0
        %3015 = vmatprep.subr.mxu0 0.0
        %3016 = vmatpush1.msra.mxu0 0.0
        %3017 = vmatprep.subr.mxu0 0.0
        %3018 = vmatpush1.msra.mxu0 0.0
        %3019 = vmatprep.subr.mxu0 0.0
        %3020 = vmatpush1.msra.mxu0 0.0
        %3021 = vmatprep.subr.mxu0 0.0
        %3022 = vmatpush1.msra.mxu0 0.0
        %3023 = vmatprep.subr.mxu0 0.0
        %3024 = vmatpush1.msra.mxu0 0.0
        %3025 = vmatprep.subr.mxu0 0.0
        %3026 = vmatpush1.msra.mxu0 0.0
        %3027 = vmatprep.subr.mxu0 0.0
        %3028 = vmatpush1.msra.mxu0 0.0
        %3029 = vmatprep.subr.mxu0 0.0
        %3030 = vmatpush1.msra.mxu0 0.0
        %3031 = vmatprep.subr.mxu0 0.0
        %3032 = vmatpush1.msra.mxu0 0.0
        %3033 = vmatprep.mubr.f32.mxu0 0.0
        %3034 = vmatmul.mubr.f32.gmra.mrb[0].mxu0 %v2967
        %v3035 = vpop.f32.mrb[0].mxu0
        %v3036 = vadd.f32 0.0, %v3035
        %v3037 = vpop.f32.mrb[0].mxu0
        %3038 = vdwg.mxu0
        %3040 = vrot.lane.b32.xlu0 %v2704, 8
        %v3041 = vpop.permute.xlu0 %3040
        %3044 = vrot.lane.b32.xlu0 %v2870, 16
        %v3045 = vpop.permute.xlu0 %3044
        %3048 = vrot.lane.b32.xlu0 %v3036, 24
        %v3049 = vpop.permute.xlu0 %3048
        %v3051 = vsel %vm1285, %v2538, %v3041
        %v3052 = vsel %vm1959, %v3051, %v3045
        %v3053 = vsel %vm1961, %v3052, %v3049
        %s3054 = scalar_lea.vmem [#allocation5], 32
        %v3055 = vld [vmem:[%s3054] sm:$0xff]
        %v3056 = vld [vmem:[%s3054 + $0x8] sm:$0xff]
        %v3057 = vld [vmem:[%s3054 + $0x10] sm:$0xff]
        %v3058 = vld [vmem:[%s3054 + $0x18] sm:$0xff]
        %s3059 = scalar_lea.vmem %s8, 1
        %v3060 = vld [vmem:[%s3059] sm:$0x1]
        %v3062 = vlaneseq
        %v3063 = vshrl.u32 %v3062, 7
        %v3064 = vsub.s32 0, %v3063
        %v3065 = vrot.slane %v3060, %v3064
        %v3068 = vsel %vm925, %v3053, 0
        %3070 = vmatprep.subr.mxu0 0.0
        %3071 = vmatpush1.msra.mxu0 %v3055
        %3072 = vmatprep.subr.mxu0 0.0
        %3073 = vmatpush1.msra.mxu0 %v3056
        %3074 = vmatprep.subr.mxu0 0.0
        %3075 = vmatpush1.msra.mxu0 %v3057
        %3076 = vmatprep.subr.mxu0 0.0
        %3077 = vmatpush1.msra.mxu0 %v3058
        %3078 = vmatprep.subr.mxu0 0.0
        %3079 = vmatpush1.msra.mxu0 0.0
        %3080 = vmatprep.subr.mxu0 0.0
        %3081 = vmatpush1.msra.mxu0 0.0
        %3082 = vmatprep.subr.mxu0 0.0
        %3083 = vmatpush1.msra.mxu0 0.0
        %3084 = vmatprep.subr.mxu0 0.0
        %3085 = vmatpush1.msra.mxu0 0.0
        %3086 = vmatprep.subr.mxu0 0.0
        %3087 = vmatpush1.msra.mxu0 0.0
        %3088 = vmatprep.subr.mxu0 0.0
        %3089 = vmatpush1.msra.mxu0 0.0
        %3090 = vmatprep.subr.mxu0 0.0
        %3091 = vmatpush1.msra.mxu0 0.0
        %3092 = vmatprep.subr.mxu0 0.0
        %3093 = vmatpush1.msra.mxu0 0.0
        %3094 = vmatprep.subr.mxu0 0.0
        %3095 = vmatpush1.msra.mxu0 0.0
        %3096 = vmatprep.subr.mxu0 0.0
        %3097 = vmatpush1.msra.mxu0 0.0
        %3098 = vmatprep.subr.mxu0 0.0
        %3099 = vmatpush1.msra.mxu0 0.0
        %3100 = vmatprep.subr.mxu0 0.0
        %3101 = vmatpush1.msra.mxu0 0.0
        %3102 = vmatprep.subr.mxu0 0.0
        %3103 = vmatpush1.msra.mxu0 0.0
        %3104 = vmatprep.subr.mxu0 0.0
        %3105 = vmatpush1.msra.mxu0 0.0
        %3106 = vmatprep.subr.mxu0 0.0
        %3107 = vmatpush1.msra.mxu0 0.0
        %3108 = vmatprep.subr.mxu0 0.0
        %3109 = vmatpush1.msra.mxu0 0.0
        %3110 = vmatprep.subr.mxu0 0.0
        %3111 = vmatpush1.msra.mxu0 0.0
        %3112 = vmatprep.subr.mxu0 0.0
        %3113 = vmatpush1.msra.mxu0 0.0
        %3114 = vmatprep.subr.mxu0 0.0
        %3115 = vmatpush1.msra.mxu0 0.0
        %3116 = vmatprep.subr.mxu0 0.0
        %3117 = vmatpush1.msra.mxu0 0.0
        %3118 = vmatprep.subr.mxu0 0.0
        %3119 = vmatpush1.msra.mxu0 0.0
        %3120 = vmatprep.subr.mxu0 0.0
        %3121 = vmatpush1.msra.mxu0 0.0
        %3122 = vmatprep.subr.mxu0 0.0
        %3123 = vmatpush1.msra.mxu0 0.0
        %3124 = vmatprep.subr.mxu0 0.0
        %3125 = vmatpush1.msra.mxu0 0.0
        %3126 = vmatprep.subr.mxu0 0.0
        %3127 = vmatpush1.msra.mxu0 0.0
        %3128 = vmatprep.subr.mxu0 0.0
        %3129 = vmatpush1.msra.mxu0 0.0
        %3130 = vmatprep.subr.mxu0 0.0
        %3131 = vmatpush1.msra.mxu0 0.0
        %3132 = vmatprep.subr.mxu0 0.0
        %3133 = vmatpush1.msra.mxu0 0.0
        %3134 = vmatprep.mubr.f32.mxu0 0.0
        %3135 = vmatmul.mubr.f32.gmra.mrb[0].mxu0 %v3068
        %v3136 = vpop.f32.mrb[0].mxu0
        %v3137 = vadd.f32 %v3065, %v3136
        %v3138 = vpop.f32.mrb[0].mxu0
        %3139 = vdwg.mxu0
        %v3140 = vadd.f32 %v2289, %v3137
        %s3141 = scalar_lea.vmem %s9, 1
        %v3142 = vld [vmem:[%s3141] sm:$0x1]
        %s3143 = scalar_lea.vmem %s10, 1
        %v3144 = vld [vmem:[%s3143] sm:$0x1]
        %v3145 = vsel %vm925, %v3140, 0.0
        %3146 = vadd.xlane.f32.xlu0 %v3145
        %v3147 = vpop.xlane.xlu0 %3146
        %v3148 = vmul.f32 %v3147, %v2053
        %v3149 = vsub.f32 %v3140, %v3148
        %v3150 = vmul.f32 %v3149, %v3149
        %v3151 = vsel %vm925, %v3150, 0.0
        %3152 = vadd.xlane.f32.xlu0 %v3151
        %v3153 = vpop.xlane.xlu0 %3152
        %v3154 = vmul.f32 %v3153, %v2053
        %v3155 = vadd.f32 %v3154, 1e-05
        %v3156 = vrsqrt.pop %v3155
        %v3157 = vmul.f32 %v3149, %v3156
        %v3159 = vlaneseq
        %v3160 = vshrl.u32 %v3159, 7
        %v3161 = vsub.s32 0, %v3160
        %v3162 = vrot.slane %v3142, %v3161
        %v3164 = vmul.f32 %v3157, %v3162
        %v3166 = vlaneseq
        %v3167 = vshrl.u32 %v3166, 7
        %v3168 = vsub.s32 0, %v3167
        %v3169 = vrot.slane %v3144, %v3168
        %v3171 = vadd.f32 %v3164, %v3169
        %s3172 = scalar_lea.vmem [#allocation7], 32
        %v3173 = vld [vmem:[%s3172] sm:$0xff]
        %v3174 = vld [vmem:[%s3172 + $0x8] sm:$0xff]
        %v3175 = vld [vmem:[%s3172 + $0x10] sm:$0xff]
        %v3176 = vld [vmem:[%s3172 + $0x18] sm:$0xff]
        %s3177 = scalar_lea.vmem %s12, 1
        %v3178 = vld [vmem:[%s3177] sm:$0x1]
        %v3180 = vlaneseq
        %v3181 = vshrl.u32 %v3180, 7
        %v3182 = vsub.s32 0, %v3181
        %v3183 = vrot.slane %v3178, %v3182
        %v3186 = vsel %vm925, %v3171, 0
        %3188 = vmatprep.subr.mxu0 0.0
        %3189 = vmatpush1.msra.mxu0 %v3173
        %3190 = vmatprep.subr.mxu0 0.0
        %3191 = vmatpush1.msra.mxu0 %v3174
        %3192 = vmatprep.subr.mxu0 0.0
        %3193 = vmatpush1.msra.mxu0 %v3175
        %3194 = vmatprep.subr.mxu0 0.0
        %3195 = vmatpush1.msra.mxu0 %v3176
        %3196 = vmatprep.subr.mxu0 0.0
        %3197 = vmatpush1.msra.mxu0 0.0
        %3198 = vmatprep.subr.mxu0 0.0
        %3199 = vmatpush1.msra.mxu0 0.0
        %3200 = vmatprep.subr.mxu0 0.0
        %3201 = vmatpush1.msra.mxu0 0.0
        %3202 = vmatprep.subr.mxu0 0.0
        %3203 = vmatpush1.msra.mxu0 0.0
        %3204 = vmatprep.subr.mxu0 0.0
        %3205 = vmatpush1.msra.mxu0 0.0
        %3206 = vmatprep.subr.mxu0 0.0
        %3207 = vmatpush1.msra.mxu0 0.0
        %3208 = vmatprep.subr.mxu0 0.0
        %3209 = vmatpush1.msra.mxu0 0.0
        %3210 = vmatprep.subr.mxu0 0.0
        %3211 = vmatpush1.msra.mxu0 0.0
        %3212 = vmatprep.subr.mxu0 0.0
        %3213 = vmatpush1.msra.mxu0 0.0
        %3214 = vmatprep.subr.mxu0 0.0
        %3215 = vmatpush1.msra.mxu0 0.0
        %3216 = vmatprep.subr.mxu0 0.0
        %3217 = vmatpush1.msra.mxu0 0.0
        %3218 = vmatprep.subr.mxu0 0.0
        %3219 = vmatpush1.msra.mxu0 0.0
        %3220 = vmatprep.subr.mxu0 0.0
        %3221 = vmatpush1.msra.mxu0 0.0
        %3222 = vmatprep.subr.mxu0 0.0
        %3223 = vmatpush1.msra.mxu0 0.0
        %3224 = vmatprep.subr.mxu0 0.0
        %3225 = vmatpush1.msra.mxu0 0.0
        %3226 = vmatprep.subr.mxu0 0.0
        %3227 = vmatpush1.msra.mxu0 0.0
        %3228 = vmatprep.subr.mxu0 0.0
        %3229 = vmatpush1.msra.mxu0 0.0
        %3230 = vmatprep.subr.mxu0 0.0
        %3231 = vmatpush1.msra.mxu0 0.0
        %3232 = vmatprep.subr.mxu0 0.0
        %3233 = vmatpush1.msra.mxu0 0.0
        %3234 = vmatprep.subr.mxu0 0.0
        %3235 = vmatpush1.msra.mxu0 0.0
        %3236 = vmatprep.subr.mxu0 0.0
        %3237 = vmatpush1.msra.mxu0 0.0
        %3238 = vmatprep.subr.mxu0 0.0
        %3239 = vmatpush1.msra.mxu0 0.0
        %3240 = vmatprep.subr.mxu0 0.0
        %3241 = vmatpush1.msra.mxu0 0.0
        %3242 = vmatprep.subr.mxu0 0.0
        %3243 = vmatpush1.msra.mxu0 0.0
        %3244 = vmatprep.subr.mxu0 0.0
        %3245 = vmatpush1.msra.mxu0 0.0
        %3246 = vmatprep.subr.mxu0 0.0
        %3247 = vmatpush1.msra.mxu0 0.0
        %3248 = vmatprep.subr.mxu0 0.0
        %3249 = vmatpush1.msra.mxu0 0.0
        %3250 = vmatprep.subr.mxu0 0.0
        %3251 = vmatpush1.msra.mxu0 0.0
        %3252 = vmatprep.mubr.f32.mxu0 0.0
        %3253 = vmatmul.mubr.f32.gmra.mrb[0].mxu0 %v3186
        %v3254 = vpop.f32.mrb[0].mxu0
        %v3255 = vadd.f32 %v3183, %v3254
        %v3256 = vpop.f32.mrb[0].mxu0
        %3257 = vdwg.mxu0
        %v3258 = vmul.f32 %v3255, 0.5
        %v3259 = vmul.f32 %v3255, 0.044715
        %v3260 = vmul.f32 %v3259, %v3255
        %v3261 = vmul.f32 %v3260, %v3255
        %v3262 = vadd.f32 %v3255, %v3261
        %v3263 = vmul.f32 %v3262, 0.7978846
        %v3264 = vtanh.pop %v3263
        %v3265 = vadd.f32 %v3264, 1.0
        %v3266 = vmul.f32 %v3258, %v3265
        %s3267 = scalar_lea.vmem %s13, 64
        %v3268 = vld [vmem:[%s3267] sm:$0xff]
        %v3269 = vld [vmem:[%s3267 + $0x8] sm:$0xff]
        %v3270 = vld [vmem:[%s3267 + $0x10] sm:$0xff]
        %v3271 = vld [vmem:[%s3267 + $0x18] sm:$0xff]
        %v3272 = vld [vmem:[%s3267 + $0x20] sm:$0xff]
        %v3273 = vld [vmem:[%s3267 + $0x28] sm:$0xff]
        %v3274 = vld [vmem:[%s3267 + $0x30] sm:$0xff]
        %v3275 = vld [vmem:[%s3267 + $0x38] sm:$0xff]
        %s3276 = scalar_lea.vmem [#allocation8], 1
        %v3277 = vld [vmem:[%s3276] sm:$0x1]
        %v3279 = vlaneseq
        %v3280 = vshrl.u32 %v3279, 7
        %v3281 = vsub.s32 0, %v3280
        %v3282 = vrot.slane %v3277, %v3281
        %v3285 = vsel %vm2186, %v3266, 0
        %3287 = vmatprep.subr.mxu0 0.0
        %3288 = vmatpush1.msra.mxu0 %v3268
        %3289 = vmatprep.subr.mxu0 0.0
        %3290 = vmatpush1.msra.mxu0 %v3269
        %3291 = vmatprep.subr.mxu0 0.0
        %3292 = vmatpush1.msra.mxu0 %v3270
        %3293 = vmatprep.subr.mxu0 0.0
        %3294 = vmatpush1.msra.mxu0 %v3271
        %3295 = vmatprep.subr.mxu0 0.0
        %3296 = vmatpush1.msra.mxu0 %v3272
        %3297 = vmatprep.subr.mxu0 0.0
        %3298 = vmatpush1.msra.mxu0 %v3273
        %3299 = vmatprep.subr.mxu0 0.0
        %3300 = vmatpush1.msra.mxu0 %v3274
        %3301 = vmatprep.subr.mxu0 0.0
        %3302 = vmatpush1.msra.mxu0 %v3275
        %3303 = vmatprep.subr.mxu0 0.0
        %3304 = vmatpush1.msra.mxu0 0.0
        %3305 = vmatprep.subr.mxu0 0.0
        %3306 = vmatpush1.msra.mxu0 0.0
        %3307 = vmatprep.subr.mxu0 0.0
        %3308 = vmatpush1.msra.mxu0 0.0
        %3309 = vmatprep.subr.mxu0 0.0
        %3310 = vmatpush1.msra.mxu0 0.0
        %3311 = vmatprep.subr.mxu0 0.0
        %3312 = vmatpush1.msra.mxu0 0.0
        %3313 = vmatprep.subr.mxu0 0.0
        %3314 = vmatpush1.msra.mxu0 0.0
        %3315 = vmatprep.subr.mxu0 0.0
        %3316 = vmatpush1.msra.mxu0 0.0
        %3317 = vmatprep.subr.mxu0 0.0
        %3318 = vmatpush1.msra.mxu0 0.0
        %3319 = vmatprep.subr.mxu0 0.0
        %3320 = vmatpush1.msra.mxu0 0.0
        %3321 = vmatprep.subr.mxu0 0.0
        %3322 = vmatpush1.msra.mxu0 0.0
        %3323 = vmatprep.subr.mxu0 0.0
        %3324 = vmatpush1.msra.mxu0 0.0
        %3325 = vmatprep.subr.mxu0 0.0
        %3326 = vmatpush1.msra.mxu0 0.0
        %3327 = vmatprep.subr.mxu0 0.0
        %3328 = vmatpush1.msra.mxu0 0.0
        %3329 = vmatprep.subr.mxu0 0.0
        %3330 = vmatpush1.msra.mxu0 0.0
        %3331 = vmatprep.subr.mxu0 0.0
        %3332 = vmatpush1.msra.mxu0 0.0
        %3333 = vmatprep.subr.mxu0 0.0
        %3334 = vmatpush1.msra.mxu0 0.0
        %3335 = vmatprep.subr.mxu0 0.0
        %3336 = vmatpush1.msra.mxu0 0.0
        %3337 = vmatprep.subr.mxu0 0.0
        %3338 = vmatpush1.msra.mxu0 0.0
        %3339 = vmatprep.subr.mxu0 0.0
        %3340 = vmatpush1.msra.mxu0 0.0
        %3341 = vmatprep.subr.mxu0 0.0
        %3342 = vmatpush1.msra.mxu0 0.0
        %3343 = vmatprep.subr.mxu0 0.0
        %3344 = vmatpush1.msra.mxu0 0.0
        %3345 = vmatprep.subr.mxu0 0.0
        %3346 = vmatpush1.msra.mxu0 0.0
        %3347 = vmatprep.subr.mxu0 0.0
        %3348 = vmatpush1.msra.mxu0 0.0
        %3349 = vmatprep.subr.mxu0 0.0
        %3350 = vmatpush1.msra.mxu0 0.0
        %3351 = vmatprep.mubr.f32.mxu0 0.0
        %3352 = vmatmul.mubr.f32.gmra.mrb[0].mxu0 %v3285
        %v3353 = vpop.f32.mrb[0].mxu0
        %v3354 = vadd.f32 %v3282, %v3353
        %v3355 = vpop.f32.mrb[0].mxu0
        %3356 = vdwg.mxu0
        %v3357 = vadd.f32 %v3171, %v3354
        %s3358 = scalar_lea.vmem %s15, 1
        %v3359 = vld [vmem:[%s3358] sm:$0x1]
        %s3360 = scalar_lea.vmem %s16, 1
        %v3361 = vld [vmem:[%s3360] sm:$0x1]
        %v3362 = vsel %vm925, %v3357, 0.0
        %3363 = vadd.xlane.f32.xlu0 %v3362
        %v3364 = vpop.xlane.xlu0 %3363
        %v3365 = vmul.f32 %v3364, %v2053
        %v3366 = vsub.f32 %v3357, %v3365
        %v3367 = vmul.f32 %v3366, %v3366
        %v3368 = vsel %vm925, %v3367, 0.0
        %3369 = vadd.xlane.f32.xlu0 %v3368
        %v3370 = vpop.xlane.xlu0 %3369
        %v3371 = vmul.f32 %v3370, %v2053
        %v3372 = vadd.f32 %v3371, 1e-05
        %v3373 = vrsqrt.pop %v3372
        %v3374 = vmul.f32 %v3366, %v3373
        %v3376 = vlaneseq
        %v3377 = vshrl.u32 %v3376, 7
        %v3378 = vsub.s32 0, %v3377
        %v3379 = vrot.slane %v3359, %v3378
        %v3381 = vmul.f32 %v3374, %v3379
        %v3383 = vlaneseq
        %v3384 = vshrl.u32 %v3383, 7
        %v3385 = vsub.s32 0, %v3384
        %v3386 = vrot.slane %v3361, %v3385
        %v3388 = vadd.f32 %v3381, %v3386
        %v3389 = vld [vmem:[%s17] sm:$0x1]
        %v3390 = vld [vmem:[%s18] sm:$0x1]
        %v3391 = vsel %vm925, %v3388, 0.0
        %3392 = vadd.xlane.f32.xlu0 %v3391
        %v3393 = vpop.xlane.xlu0 %3392
        %v3394 = vmul.f32 %v3393, %v2053
        %v3395 = vsub.f32 %v3388, %v3394
        %v3396 = vmul.f32 %v3395, %v3395
        %v3397 = vsel %vm925, %v3396, 0.0
        %3398 = vadd.xlane.f32.xlu0 %v3397
        %v3399 = vpop.xlane.xlu0 %3398
        %v3400 = vmul.f32 %v3399, %v2053
        %v3401 = vadd.f32 %v3400, 1e-05
        %v3402 = vrsqrt.pop %v3401
        %v3403 = vmul.f32 %v3395, %v3402
        %v3405 = vlaneseq
        %v3406 = vshrl.u32 %v3405, 7
        %v3407 = vsub.s32 0, %v3406
        %v3408 = vrot.slane %v3389, %v3407
        %v3410 = vmul.f32 %v3403, %v3408
        %v3412 = vlaneseq
        %v3413 = vshrl.u32 %v3412, 7
        %v3414 = vsub.s32 0, %v3413
        %v3415 = vrot.slane %v3390, %v3414
        %v3417 = vadd.f32 %v3410, %v3415
        %v3418 = vld [vmem:[%s19] sm:$0x1]
        %v3419 = vld [vmem:[%s20] sm:$0x1]
        %v3420 = vsel %vm925, %v3417, 0.0
        %3421 = vadd.xlane.f32.xlu0 %v3420
        %v3422 = vpop.xlane.xlu0 %3421
        %v3423 = vmul.f32 %v3422, %v2053
        %v3424 = vsub.f32 %v3417, %v3423
        %v3425 = vmul.f32 %v3424, %v3424
        %v3426 = vsel %vm925, %v3425, 0.0
        %3427 = vadd.xlane.f32.xlu0 %v3426
        %v3428 = vpop.xlane.xlu0 %3427
        %v3429 = vmul.f32 %v3428, %v2053
        %v3430 = vadd.f32 %v3429, 1e-05
        %v3431 = vrsqrt.pop %v3430
        %v3432 = vmul.f32 %v3424, %v3431
        %v3434 = vlaneseq
        %v3435 = vshrl.u32 %v3434, 7
        %v3436 = vsub.s32 0, %v3435
        %v3437 = vrot.slane %v3418, %v3436
        %v3439 = vmul.f32 %v3432, %v3437
        %v3441 = vlaneseq
        %v3442 = vshrl.u32 %v3441, 7
        %v3443 = vsub.s32 0, %v3442
        %v3444 = vrot.slane %v3419, %v3443
        %v3446 = vadd.f32 %v3439, %v3444
        %v3447 = vld [vmem:[%s21] sm:$0xff]
        %v3448 = vld [vmem:[%s21 + $0x8] sm:$0xff]
        %v3449 = vld [vmem:[%s21 + $0x10] sm:$0xff]
        %v3450 = vld [vmem:[%s21 + $0x18] sm:$0xff]
        %v3451 = vld [vmem:[%s22] sm:$0x1]
        %v3453 = vlaneseq
        %v3454 = vshrl.u32 %v3453, 7
        %v3455 = vsub.s32 0, %v3454
        %v3456 = vrot.slane %v3451, %v3455
        %v3459 = vsel %vm925, %v3446, 0
        %3461 = vmatprep.subr.mxu0 0.0
        %3462 = vmatpush1.msra.mxu0 %v3447
        %3463 = vmatprep.subr.mxu0 0.0
        %3464 = vmatpush1.msra.mxu0 %v3448
        %3465 = vmatprep.subr.mxu0 0.0
        %3466 = vmatpush1.msra.mxu0 %v3449
        %3467 = vmatprep.subr.mxu0 0.0
        %3468 = vmatpush1.msra.mxu0 %v3450
        %3469 = vmatprep.subr.mxu0 0.0
        %3470 = vmatpush1.msra.mxu0 0.0
        %3471 = vmatprep.subr.mxu0 0.0
        %3472 = vmatpush1.msra.mxu0 0.0
        %3473 = vmatprep.subr.mxu0 0.0
        %3474 = vmatpush1.msra.mxu0 0.0
        %3475 = vmatprep.subr.mxu0 0.0
        %3476 = vmatpush1.msra.mxu0 0.0
        %3477 = vmatprep.subr.mxu0 0.0
        %3478 = vmatpush1.msra.mxu0 0.0
        %3479 = vmatprep.subr.mxu0 0.0
        %3480 = vmatpush1.msra.mxu0 0.0
        %3481 = vmatprep.subr.mxu0 0.0
        %3482 = vmatpush1.msra.mxu0 0.0
        %3483 = vmatprep.subr.mxu0 0.0
        %3484 = vmatpush1.msra.mxu0 0.0
        %3485 = vmatprep.subr.mxu0 0.0
        %3486 = vmatpush1.msra.mxu0 0.0
        %3487 = vmatprep.subr.mxu0 0.0
        %3488 = vmatpush1.msra.mxu0 0.0
        %3489 = vmatprep.subr.mxu0 0.0
        %3490 = vmatpush1.msra.mxu0 0.0
        %3491 = vmatprep.subr.mxu0 0.0
        %3492 = vmatpush1.msra.mxu0 0.0
        %3493 = vmatprep.subr.mxu0 0.0
        %3494 = vmatpush1.msra.mxu0 0.0
        %3495 = vmatprep.subr.mxu0 0.0
        %3496 = vmatpush1.msra.mxu0 0.0
        %3497 = vmatprep.subr.mxu0 0.0
        %3498 = vmatpush1.msra.mxu0 0.0
        %3499 = vmatprep.subr.mxu0 0.0
        %3500 = vmatpush1.msra.mxu0 0.0
        %3501 = vmatprep.subr.mxu0 0.0
        %3502 = vmatpush1.msra.mxu0 0.0
        %3503 = vmatprep.subr.mxu0 0.0
        %3504 = vmatpush1.msra.mxu0 0.0
        %3505 = vmatprep.subr.mxu0 0.0
        %3506 = vmatpush1.msra.mxu0 0.0
        %3507 = vmatprep.subr.mxu0 0.0
        %3508 = vmatpush1.msra.mxu0 0.0
        %3509 = vmatprep.subr.mxu0 0.0
        %3510 = vmatpush1.msra.mxu0 0.0
        %3511 = vmatprep.subr.mxu0 0.0
        %3512 = vmatpush1.msra.mxu0 0.0
        %3513 = vmatprep.subr.mxu0 0.0
        %3514 = vmatpush1.msra.mxu0 0.0
        %3515 = vmatprep.subr.mxu0 0.0
        %3516 = vmatpush1.msra.mxu0 0.0
        %3517 = vmatprep.subr.mxu0 0.0
        %3518 = vmatpush1.msra.mxu0 0.0
        %3519 = vmatprep.subr.mxu0 0.0
        %3520 = vmatpush1.msra.mxu0 0.0
        %3521 = vmatprep.subr.mxu0 0.0
        %3522 = vmatpush1.msra.mxu0 0.0
        %3523 = vmatprep.subr.mxu0 0.0
        %3524 = vmatpush1.msra.mxu0 0.0
        %3525 = vmatprep.mubr.f32.mxu0 0.0
        %3526 = vmatmul.mubr.f32.gmra.mrb[0].mxu0 %v3459
        %v3527 = vpop.f32.mrb[0].mxu0
        %v3528 = vadd.f32 %v3456, %v3527
        %v3529 = vpop.f32.mrb[0].mxu0
        %3530 = vdwg.mxu0
        %v3531 = vmul.f32 %v3528, 0.5
        %v3532 = vmul.f32 %v3528, 0.044715
        %v3533 = vmul.f32 %v3532, %v3528
        %v3534 = vmul.f32 %v3533, %v3528
        %v3535 = vadd.f32 %v3528, %v3534
        %v3536 = vmul.f32 %v3535, 0.7978846
        %v3537 = vtanh.pop %v3536
        %v3538 = vadd.f32 %v3537, 1.0
        %v3539 = vmul.f32 %v3531, %v3538
        %v3540 = vld [vmem:[%s23] sm:$0xff]
        %v3541 = vld [vmem:[%s24] sm:$0x1]
        %v3543 = vlaneseq
        %v3544 = vshrl.u32 %v3543, 7
        %v3545 = vsub.s32 0, %v3544
        %v3546 = vrot.slane %v3541, %v3545
        %v3549 = vsel %vm1285, %v3539, 0
        %3551 = vmatprep.subr.mxu0 0.0
        %3552 = vmatpush1.msra.mxu0 %v3540
        %3553 = vmatprep.subr.mxu0 0.0
        %3554 = vmatpush1.msra.mxu0 0.0
        %3555 = vmatprep.subr.mxu0 0.0
        %3556 = vmatpush1.msra.mxu0 0.0
        %3557 = vmatprep.subr.mxu0 0.0
        %3558 = vmatpush1.msra.mxu0 0.0
        %3559 = vmatprep.subr.mxu0 0.0
        %3560 = vmatpush1.msra.mxu0 0.0
        %3561 = vmatprep.subr.mxu0 0.0
        %3562 = vmatpush1.msra.mxu0 0.0
        %3563 = vmatprep.subr.mxu0 0.0
        %3564 = vmatpush1.msra.mxu0 0.0
        %3565 = vmatprep.subr.mxu0 0.0
        %3566 = vmatpush1.msra.mxu0 0.0
        %3567 = vmatprep.subr.mxu0 0.0
        %3568 = vmatpush1.msra.mxu0 0.0
        %3569 = vmatprep.subr.mxu0 0.0
        %3570 = vmatpush1.msra.mxu0 0.0
        %3571 = vmatprep.subr.mxu0 0.0
        %3572 = vmatpush1.msra.mxu0 0.0
        %3573 = vmatprep.subr.mxu0 0.0
        %3574 = vmatpush1.msra.mxu0 0.0
        %3575 = vmatprep.subr.mxu0 0.0
        %3576 = vmatpush1.msra.mxu0 0.0
        %3577 = vmatprep.subr.mxu0 0.0
        %3578 = vmatpush1.msra.mxu0 0.0
        %3579 = vmatprep.subr.mxu0 0.0
        %3580 = vmatpush1.msra.mxu0 0.0
        %3581 = vmatprep.subr.mxu0 0.0
        %3582 = vmatpush1.msra.mxu0 0.0
        %3583 = vmatprep.subr.mxu0 0.0
        %3584 = vmatpush1.msra.mxu0 0.0
        %3585 = vmatprep.subr.mxu0 0.0
        %3586 = vmatpush1.msra.mxu0 0.0
        %3587 = vmatprep.subr.mxu0 0.0
        %3588 = vmatpush1.msra.mxu0 0.0
        %3589 = vmatprep.subr.mxu0 0.0
        %3590 = vmatpush1.msra.mxu0 0.0
        %3591 = vmatprep.subr.mxu0 0.0
        %3592 = vmatpush1.msra.mxu0 0.0
        %3593 = vmatprep.subr.mxu0 0.0
        %3594 = vmatpush1.msra.mxu0 0.0
        %3595 = vmatprep.subr.mxu0 0.0
        %3596 = vmatpush1.msra.mxu0 0.0
        %3597 = vmatprep.subr.mxu0 0.0
        %3598 = vmatpush1.msra.mxu0 0.0
        %3599 = vmatprep.subr.mxu0 0.0
        %3600 = vmatpush1.msra.mxu0 0.0
        %3601 = vmatprep.subr.mxu0 0.0
        %3602 = vmatpush1.msra.mxu0 0.0
        %3603 = vmatprep.subr.mxu0 0.0
        %3604 = vmatpush1.msra.mxu0 0.0
        %3605 = vmatprep.subr.mxu0 0.0
        %3606 = vmatpush1.msra.mxu0 0.0
        %3607 = vmatprep.subr.mxu0 0.0
        %3608 = vmatpush1.msra.mxu0 0.0
        %3609 = vmatprep.subr.mxu0 0.0
        %3610 = vmatpush1.msra.mxu0 0.0
        %3611 = vmatprep.subr.mxu0 0.0
        %3612 = vmatpush1.msra.mxu0 0.0
        %3613 = vmatprep.subr.mxu0 0.0
        %3614 = vmatpush1.msra.mxu0 0.0
        %3615 = vmatprep.mubr.f32.mxu0 0.0
        %3616 = vmatmul.mubr.f32.gmra.mrb[0].mxu0 %v3549
        %v3617 = vpop.f32.mrb[0].mxu0
        %v3618 = vadd.f32 %v3546, %v3617
        %v3619 = vpop.f32.mrb[0].mxu0
        %3620 = vdwg.mxu0
        %3621 = vst.msk [vmem:[%s812] sm:$0xff] %vm1961, %v3618
        %s3622 = sand.u32 %s580, 1
        %s3623 = scalar_lea.sflag [#allocation4], %s3622
        %s3624 = sand.u32 %s580, 1
        %s3625 = smul.addr %s3624, 8
        %s3626 = scalar_lea.vmem [#allocation10], %s3625
        // Predicated region
        $region137: #{tpu_custom_call.1} parent=119 // pred_check
          %p3627 = pneg %p590
        $region138: #{tpu_custom_call.1} parent=119 // pred_check_branch
          %3629 = sbr.rel (%p3627) target = $region140
        $region139: #{tpu_custom_call.1} parent=119 // pred_region
          %s3631 = ssub.s32 128, 128
          %3632 = vsyncadd %s3623, %s3631
          %s3633 = smul.addr %s42, 128
          %s3634 = scalar_lea.hbm %s25, %s3633
          %s3636 = sshll.u32 %s3626, 4
          %s3637 = int_to_ptr.vmem [resolvable:$true] %s3636
          %3639 = dma.vmem_to_hbm [thread:$0]  %s3637, 128, %s3634, %s3623
        $region140: #{tpu_custom_call.1} parent=119 // pred_fallthru
          _
      $region120: #{tpu_custom_call.1} parent=5 // pred_fallthru
        _
      %p3640 = scmp.le.s32.totalorder 2, %s37
      // Predicated region
      $region141: #{tpu_custom_call.1} parent=5 // pred_check
        %p3641 = pneg %p3640
      $region142: #{tpu_custom_call.1} parent=5 // pred_check_branch
        %3643 = sbr.rel (%p3641) target = $region144
      $region143: #{tpu_custom_call.1} parent=5 // pred_region
        %s3644 = ssub.s32 %s37, 2
        // Predicated region
        $region145: #{tpu_custom_call.1} parent=143 // pred_check
          %p3645 = pneg %p596
        $region146: #{tpu_custom_call.1} parent=143 // pred_check_branch
          %3647 = sbr.rel (%p3645) target = $region148
        $region147: #{tpu_custom_call.1} parent=143 // pred_region
          %s3648 = sand.u32 %s581, 1
          %s3649 = scalar_lea.sflag [#allocation4], %s3648
          %s3650 = sand.u32 %s581, 1
          %s3651 = smul.addr %s3650, 8
          %s3652 = scalar_lea.vmem [#allocation10], %s3651
          %3653 = dma.done %s3649, 128
        $region148: #{tpu_custom_call.1} parent=143 // pred_fallthru
          _
      $region144: #{tpu_custom_call.1} parent=5 // pred_fallthru
        _
    $region6: #{tpu_custom_call.1} parent=1 // loop_footer
      %s41 = sadd.s32 1, %s37
    $region7: #{tpu_custom_call.1} parent=1 // loop_footer_branch
      %36 = sbr.rel target = $region3
    $region8: #{tpu_custom_call.1} parent=1 // loop_exit
      _
    %3654 = vsyncpa [#allocation3], 1
    %s3655 = scalar_lea.sflag [#allocation3], 1
    %3656 = vsyncpa %s3655, 1
    %3657 = vsyncpa [#allocation6], 1
    %3658 = vsyncpa [#allocation9], 1
    %3659 = vsyncpa [#allocation4], 1
    %s3660 = scalar_lea.sflag [#allocation4], 1
    %3661 = vsyncpa %s3660, 1

</llo_original>
